<compile_context>
chip_gen: v5e
topology: v5e:2x2
jax: 0.10.0
libtpu: 0.0.40
codegen_flags: <defaults>
</compile_context>

<pallas_src>
import functools

import jax
import jax.numpy as jnp
from jax.experimental import pallas as pl
from jax.experimental.pallas import tpu as pltpu


def _rqnet_kernel(x_ref,                                   # (T*Bp, S) time-major rows
                  wxr_ref, wxz_ref, wxn_ref,               # (S, H) per-gate x weights
                  wpr_ref, wpz_ref, wpn_ref,               # (S, H) per-gate pred weights
                  whr_ref, whz_ref, whn_ref,               # (H, H) per-gate hidden weights
                  br_ref, bz_ref, bnx_ref, bnh_ref,        # (1, H) biases (r/z pre-summed)
                  cb1w_ref, cb1b_ref,                      # (H, H), (1, H)
                  cb2w_ref, cb2b_ref,                      # (H, S), (1, S)
                  fcw_ref, fcb_ref,                        # (H, H), (1, H)
                  outw_ref, outb_ref,                      # (H, A), (1, A)
                  q_ref, cb_ref, hid_ref, ca1_ref,         # outputs (T*Bp,A),(T*Bp,S),(Bp,H),(T*Bp,H)
                  h_slab,                                   # scratch (T*Bp, H)
                  *, T, Bp):
    f32 = jnp.float32
    dot = lambda a, b: jnp.dot(a, b, preferred_element_type=f32)

    H = hid_ref.shape[1]
    S = cb_ref.shape[1]

    # --- hoisted x-projections for all timesteps (one batched matmul per gate) ---
    x_all = x_ref[...]                                       # (T*Bp, S)
    xr = dot(x_all, wxr_ref[...]) + br_ref[...]              # (T*Bp, H)
    xz = dot(x_all, wxz_ref[...]) + bz_ref[...]
    xn = dot(x_all, wxn_ref[...]) + bnx_ref[...]

    # --- hoist weight loads out of the recurrence ---
    whr = whr_ref[...]; whz = whz_ref[...]; whn = whn_ref[...]
    wpr = wpr_ref[...]; wpz = wpz_ref[...]; wpn = wpn_ref[...]
    cb1w = cb1w_ref[...]; cb1b = cb1b_ref[...]
    cb2w = cb2w_ref[...]; cb2b = cb2b_ref[...]
    bnh = bnh_ref[...]

    # --- recurrence: only GRU + cerebellum on the serial path ---
    h = jnp.zeros((Bp, H), f32)                              # init_hidden
    pred = jnp.zeros((Bp, S), f32)                           # init_pred
    for t in range(T):                                        # T is small & static -> unrolled
        gh_r = dot(h, whr)
        gh_z = dot(h, whz)
        gh_n = dot(h, whn) + bnh
        pp_r = dot(pred, wpr)
        pp_z = dot(pred, wpz)
        pp_n = dot(pred, wpn)

        xs = slice(t * Bp, (t + 1) * Bp)
        r = jax.nn.sigmoid(xr[xs] + pp_r + gh_r)
        z = jax.nn.sigmoid(xz[xs] + pp_z + gh_z)
        n = jnp.tanh(xn[xs] + pp_n + r * gh_n)
        h = (1.0 - z) * n + z * h                             # (Bp, H)

        cb_h = jnp.maximum(dot(h, cb1w) + cb1b, 0.0)
        pred = dot(cb_h, cb2w) + cb2b                         # (Bp, S)

        h_slab[pl.ds(t * Bp, Bp), :] = h
        cb_ref[pl.ds(t * Bp, Bp), :] = pred

    hid_ref[...] = h                                          # final hidden state

    # --- Q heads hoisted out of the recurrence: two batched matmuls, dense stores ---
    h_all = h_slab[...]                                       # (T*Bp, H)
    ca1 = jnp.maximum(dot(h_all, fcw_ref[...]) + fcb_ref[...], 0.0)
    ca1_ref[...] = ca1
    q_ref[...] = dot(ca1, outw_ref[...]) + outb_ref[...]


_WEIGHT_KEYS = ("wx_r", "wx_z", "wx_n", "wp_r", "wp_z", "wp_n",
                "wh_r", "wh_z", "wh_n",
                "b_r", "b_z", "b_nx", "b_nh",
                "cb1_w", "cb1_b", "cb2_w", "cb2_b",
                "fc_w", "fc_b", "out_w", "out_b")


def prepare_params(params):
    """One-time weight prep: split gru_w_ih into x/pred parts, split per gate,
    pre-transpose everything, and pre-sum the r/z biases."""
    H = params["fc_w"].shape[0]
    S = params["cb_w2"].shape[0]
    w_ih = params["gru_w_ih"]            # (3H, 2S), gate order r, z, n
    w_hh = params["gru_w_hh"]            # (3H, H)
    b_ih = params["gru_b_ih"]
    b_hh = params["gru_b_hh"]
    wx, wp = w_ih[:, :S], w_ih[:, S:]

    def gate(m, g):
        return m[g * H:(g + 1) * H]

    prep = {
        "wx_r": gate(wx, 0).T, "wx_z": gate(wx, 1).T, "wx_n": gate(wx, 2).T,      # (S, H)
        "wp_r": gate(wp, 0).T, "wp_z": gate(wp, 1).T, "wp_n": gate(wp, 2).T,      # (S, H)
        "wh_r": gate(w_hh, 0).T, "wh_z": gate(w_hh, 1).T, "wh_n": gate(w_hh, 2).T,  # (H, H)
        "b_r": (b_ih[:H] + b_hh[:H]).reshape(1, H),
        "b_z": (b_ih[H:2 * H] + b_hh[H:2 * H]).reshape(1, H),
        "b_nx": b_ih[2 * H:].reshape(1, H),
        "b_nh": b_hh[2 * H:].reshape(1, H),                    # multiplied by r -> kept separate
        "cb1_w": params["cb_w1"].T, "cb1_b": params["cb_b1"].reshape(1, -1),
        "cb2_w": params["cb_w2"].T, "cb2_b": params["cb_b2"].reshape(1, -1),
        "fc_w": params["fc_w"].T, "fc_b": params["fc_b"].reshape(1, -1),
        "out_w": params["out_w"].T, "out_b": params["out_b"].reshape(1, -1),
    }
    return jax.tree_util.tree_map(lambda a: jnp.asarray(a, jnp.float32), prep)


def _full_spec(shape):
    return pl.BlockSpec(shape, lambda i: (0,) * len(shape))


@jax.jit
def recurrent_qnet_forward(x, prep):
    """x: (B, T, state_dim) batch-first, like the PyTorch module.
    Returns (q, cb_preds, hidden, ca1_out): (B,T,A), (B,T,S), (1,B,H), (B,T,H)."""
    f32 = jnp.float32
    B, T, S = x.shape
    H = prep["fc_w"].shape[0]
    A = prep["out_w"].shape[1]
    Bp = ((B + 7) // 8) * 8                      # pad batch to a sublane multiple

    xf = x.astype(f32)
    if Bp != B:
        xf = jnp.pad(xf, ((0, Bp - B), (0, 0), (0, 0)))
    x2d = jnp.transpose(xf, (1, 0, 2)).reshape(T * Bp, S)    # time-major rows

    weights = [prep[k] for k in _WEIGHT_KEYS]
    kernel = functools.partial(_rqnet_kernel, T=T, Bp=Bp)

    q2d, cb2d, hid, ca12d = pl.pallas_call(
        kernel,
        out_shape=(
            jax.ShapeDtypeStruct((T * Bp, A), f32),
            jax.ShapeDtypeStruct((T * Bp, S), f32),
            jax.ShapeDtypeStruct((Bp, H), f32),
            jax.ShapeDtypeStruct((T * Bp, H), f32),
        ),
        grid_spec=pltpu.PrefetchScalarGridSpec(
            num_scalar_prefetch=0,
            grid=(1,),
            in_specs=[_full_spec(x2d.shape)] + [_full_spec(w.shape) for w in weights],
            out_specs=[
                _full_spec((T * Bp, A)),
                _full_spec((T * Bp, S)),
                _full_spec((Bp, H)),
                _full_spec((T * Bp, H)),
            ],
            scratch_shapes=[pltpu.VMEM((T * Bp, H), f32)],   # hidden-state slab
        ),
        compiler_params=pltpu.CompilerParams(
            dimension_semantics=("arbitrary",)),
    )(x2d, *weights)

    def unpack(y2d, D):
        y = y2d.reshape(T, Bp, D)[:, :B, :]
        return jnp.transpose(y, (1, 0, 2))                   # (B, T, D)

    q = unpack(q2d, A)
    cb_preds = unpack(cb2d, S)
    ca1_out = unpack(ca12d, H)
    hidden = hid[:B][None]                                   # (1, B, H) like PyTorch GRU
    return q, cb_preds, hidden, ca1_out


def _reference_forward(x, params):
    """Pure-JAX reference of the PyTorch forward (correctness check)."""
    B, T, S = x.shape
    H = params["fc_w"].shape[0]
    h = jnp.zeros((B, H), jnp.float32)
    pred = jnp.zeros((B, S), jnp.float32)
    outs, preds = [], []
    for t in range(T):
        gin = jnp.concatenate([x[:, t, :], pred], axis=1)
        gx = gin @ params["gru_w_ih"].T + params["gru_b_ih"]
        gh = h @ params["gru_w_hh"].T + params["gru_b_hh"]
        r = jax.nn.sigmoid(gx[:, :H] + gh[:, :H])
        z = jax.nn.sigmoid(gx[:, H:2 * H] + gh[:, H:2 * H])
        n = jnp.tanh(gx[:, 2 * H:] + r * gh[:, 2 * H:])
        h = (1 - z) * n + z * h
        cb_h = jax.nn.relu(h @ params["cb_w1"].T + params["cb_b1"])
        pred = cb_h @ params["cb_w2"].T + params["cb_b2"]
        outs.append(h)
        preds.append(pred)
    out = jnp.stack(outs, axis=1)
    cb_preds = jnp.stack(preds, axis=1)
    ca1 = jax.nn.relu(out @ params["fc_w"].T + params["fc_b"])
    q = ca1 @ params["out_w"].T + params["out_b"]
    return q, cb_preds, h[None], ca1


def make_params(key, state_dim, hidden_dim, action_dim):
    ks = jax.random.split(key, 12)
    nrm = lambda k, shp, s=0.1: (s * jax.random.normal(k, shp)).astype(jnp.float32)
    return {
        "gru_w_ih": nrm(ks[0], (3 * hidden_dim, 2 * state_dim)),
        "gru_w_hh": nrm(ks[1], (3 * hidden_dim, hidden_dim)),
        "gru_b_ih": nrm(ks[2], (3 * hidden_dim,)),
        "gru_b_hh": nrm(ks[3], (3 * hidden_dim,)),
        "fc_w": nrm(ks[4], (hidden_dim, hidden_dim)),
        "fc_b": nrm(ks[5], (hidden_dim,)),
        "out_w": nrm(ks[6], (action_dim, hidden_dim)),
        "out_b": nrm(ks[7], (action_dim,)),
        "cb_w1": nrm(ks[8], (hidden_dim, hidden_dim)),
        "cb_b1": nrm(ks[9], (hidden_dim,)),
        "cb_w2": nrm(ks[10], (state_dim, hidden_dim)),
        "cb_b2": nrm(ks[11], (state_dim,)),
    }


if __name__ == "__main__":
    key = jax.random.PRNGKey(0)
    B, T = 4, 8
    state_dim, hidden_dim, action_dim = 8, 32, 4

    kx, kp = jax.random.split(key)
    x = jax.random.normal(kx, (B, T, state_dim), dtype=jnp.float32)
    params = make_params(kp, state_dim, hidden_dim, action_dim)
    prep = prepare_params(params)          # one-time weight prep, outside the jitted forward

    q, cb_preds, hidden, ca1_out = recurrent_qnet_forward(x, prep)
    jax.block_until_ready((q, cb_preds, hidden, ca1_out))

    # correctness sanity check against the pure-JAX reference of the PyTorch forward
    q_r, cb_r, h_r, ca1_r = _reference_forward(x, params)
    assert q.shape == (B, T, action_dim)
    assert cb_preds.shape == (B, T, state_dim)
    assert hidden.shape == (1, B, hidden_dim)
    assert ca1_out.shape == (B, T, hidden_dim)
    assert jnp.allclose(q, q_r, atol=1e-4, rtol=1e-4)
    assert jnp.allclose(cb_preds, cb_r, atol=1e-4, rtol=1e-4)
    assert jnp.allclose(hidden, h_r, atol=1e-4, rtol=1e-4)
    assert jnp.allclose(ca1_out, ca1_r, atol=1e-4, rtol=1e-4)

    print("KERNEL_OK")
</pallas_src>

<mosaic_0001>
module attributes {stable_mosaic.version = 11 : i64} {
  func.func @_rqnet_kernel(%arg0: i32, %arg1: memref<64x8xf32, #tpu.memory_space<vmem>>, %arg2: memref<8x32xf32, #tpu.memory_space<vmem>>, %arg3: memref<8x32xf32, #tpu.memory_space<vmem>>, %arg4: memref<8x32xf32, #tpu.memory_space<vmem>>, %arg5: memref<8x32xf32, #tpu.memory_space<vmem>>, %arg6: memref<8x32xf32, #tpu.memory_space<vmem>>, %arg7: memref<8x32xf32, #tpu.memory_space<vmem>>, %arg8: memref<32x32xf32, #tpu.memory_space<vmem>>, %arg9: memref<32x32xf32, #tpu.memory_space<vmem>>, %arg10: memref<32x32xf32, #tpu.memory_space<vmem>>, %arg11: memref<1x32xf32, #tpu.memory_space<vmem>>, %arg12: memref<1x32xf32, #tpu.memory_space<vmem>>, %arg13: memref<1x32xf32, #tpu.memory_space<vmem>>, %arg14: memref<1x32xf32, #tpu.memory_space<vmem>>, %arg15: memref<32x32xf32, #tpu.memory_space<vmem>>, %arg16: memref<1x32xf32, #tpu.memory_space<vmem>>, %arg17: memref<32x8xf32, #tpu.memory_space<vmem>>, %arg18: memref<1x8xf32, #tpu.memory_space<vmem>>, %arg19: memref<32x32xf32, #tpu.memory_space<vmem>>, %arg20: memref<1x32xf32, #tpu.memory_space<vmem>>, %arg21: memref<32x4xf32, #tpu.memory_space<vmem>>, %arg22: memref<1x4xf32, #tpu.memory_space<vmem>>, %arg23: memref<64x4xf32, #tpu.memory_space<vmem>>, %arg24: memref<64x8xf32, #tpu.memory_space<vmem>>, %arg25: memref<8x32xf32, #tpu.memory_space<vmem>>, %arg26: memref<64x32xf32, #tpu.memory_space<vmem>>, %arg27: memref<64x32xf32, #tpu.memory_space<vmem>>) attributes {dimension_semantics = [#tpu.dimension_semantics<arbitrary>], iteration_bounds = array<i64: 1>, scalar_prefetch = 0 : i64, scratch_operands = 1 : i64, tpu.core_type = #tpu.core_type<tc>, window_params = [{pipeline_mode = #tpu.pipeline_mode<synchronous>, transform_indices = @transform_0, window_bounds = array<i64: 64, 8>}, {pipeline_mode = #tpu.pipeline_mode<synchronous>, transform_indices = @transform_1, window_bounds = array<i64: 8, 32>}, {pipeline_mode = #tpu.pipeline_mode<synchronous>, transform_indices = @transform_2, window_bounds = array<i64: 8, 32>}, {pipeline_mode = #tpu.pipeline_mode<synchronous>, transform_indices = @transform_3, window_bounds = array<i64: 8, 32>}, {pipeline_mode = #tpu.pipeline_mode<synchronous>, transform_indices = @transform_4, window_bounds = array<i64: 8, 32>}, {pipeline_mode = #tpu.pipeline_mode<synchronous>, transform_indices = @transform_5, window_bounds = array<i64: 8, 32>}, {pipeline_mode = #tpu.pipeline_mode<synchronous>, transform_indices = @transform_6, window_bounds = array<i64: 8, 32>}, {pipeline_mode = #tpu.pipeline_mode<synchronous>, transform_indices = @transform_7, window_bounds = array<i64: 32, 32>}, {pipeline_mode = #tpu.pipeline_mode<synchronous>, transform_indices = @transform_8, window_bounds = array<i64: 32, 32>}, {pipeline_mode = #tpu.pipeline_mode<synchronous>, transform_indices = @transform_9, window_bounds = array<i64: 32, 32>}, {pipeline_mode = #tpu.pipeline_mode<synchronous>, transform_indices = @transform_10, window_bounds = array<i64: 1, 32>}, {pipeline_mode = #tpu.pipeline_mode<synchronous>, transform_indices = @transform_11, window_bounds = array<i64: 1, 32>}, {pipeline_mode = #tpu.pipeline_mode<synchronous>, transform_indices = @transform_12, window_bounds = array<i64: 1, 32>}, {pipeline_mode = #tpu.pipeline_mode<synchronous>, transform_indices = @transform_13, window_bounds = array<i64: 1, 32>}, {pipeline_mode = #tpu.pipeline_mode<synchronous>, transform_indices = @transform_14, window_bounds = array<i64: 32, 32>}, {pipeline_mode = #tpu.pipeline_mode<synchronous>, transform_indices = @transform_15, window_bounds = array<i64: 1, 32>}, {pipeline_mode = #tpu.pipeline_mode<synchronous>, transform_indices = @transform_16, window_bounds = array<i64: 32, 8>}, {pipeline_mode = #tpu.pipeline_mode<synchronous>, transform_indices = @transform_17, window_bounds = array<i64: 1, 8>}, {pipeline_mode = #tpu.pipeline_mode<synchronous>, transform_indices = @transform_18, window_bounds = array<i64: 32, 32>}, {pipeline_mode = #tpu.pipeline_mode<synchronous>, transform_indices = @transform_19, window_bounds = array<i64: 1, 32>}, {pipeline_mode = #tpu.pipeline_mode<synchronous>, transform_indices = @transform_20, window_bounds = array<i64: 32, 4>}, {pipeline_mode = #tpu.pipeline_mode<synchronous>, transform_indices = @transform_21, window_bounds = array<i64: 1, 4>}, {pipeline_mode = #tpu.pipeline_mode<synchronous>, transform_indices = @transform_22, window_bounds = array<i64: 64, 4>}, {pipeline_mode = #tpu.pipeline_mode<synchronous>, transform_indices = @transform_23, window_bounds = array<i64: 64, 8>}, {pipeline_mode = #tpu.pipeline_mode<synchronous>, transform_indices = @transform_24, window_bounds = array<i64: 8, 32>}, {pipeline_mode = #tpu.pipeline_mode<synchronous>, transform_indices = @transform_25, window_bounds = array<i64: 64, 32>}]} {
    %c0 = arith.constant 0 : index
    %c0_0 = arith.constant 0 : index
    %0 = vector.load %arg1[%c0, %c0_0] : memref<64x8xf32, #tpu.memory_space<vmem>>, vector<64x8xf32>
    %c0_1 = arith.constant 0 : index
    %c0_2 = arith.constant 0 : index
    %1 = vector.load %arg2[%c0_1, %c0_2] : memref<8x32xf32, #tpu.memory_space<vmem>>, vector<8x32xf32>
    %cst = arith.constant dense<0.000000e+00> : vector<64x32xf32>
    %2 = tpu.matmul %0, %1, %cst {dimension_numbers = #tpu.dot_dimension_numbers<[1], [0], [0], [1], [0, 0, 1, 1], [], []>} : vector<64x8xf32>, vector<8x32xf32>, vector<64x32xf32> -> vector<64x32xf32>
    %c0_3 = arith.constant 0 : index
    %c0_4 = arith.constant 0 : index
    %3 = vector.load %arg11[%c0_3, %c0_4] : memref<1x32xf32, #tpu.memory_space<vmem>>, vector<1x32xf32>
    %4 = vector.broadcast %3 : vector<1x32xf32> to vector<64x32xf32>
    %5 = arith.addf %2, %4 : vector<64x32xf32>
    %c0_5 = arith.constant 0 : index
    %c0_6 = arith.constant 0 : index
    %6 = vector.load %arg3[%c0_5, %c0_6] : memref<8x32xf32, #tpu.memory_space<vmem>>, vector<8x32xf32>
    %cst_7 = arith.constant dense<0.000000e+00> : vector<64x32xf32>
    %7 = tpu.matmul %0, %6, %cst_7 {dimension_numbers = #tpu.dot_dimension_numbers<[1], [0], [0], [1], [0, 0, 1, 1], [], []>} : vector<64x8xf32>, vector<8x32xf32>, vector<64x32xf32> -> vector<64x32xf32>
    %c0_8 = arith.constant 0 : index
    %c0_9 = arith.constant 0 : index
    %8 = vector.load %arg12[%c0_8, %c0_9] : memref<1x32xf32, #tpu.memory_space<vmem>>, vector<1x32xf32>
    %9 = vector.broadcast %8 : vector<1x32xf32> to vector<64x32xf32>
    %10 = arith.addf %7, %9 : vector<64x32xf32>
    %c0_10 = arith.constant 0 : index
    %c0_11 = arith.constant 0 : index
    %11 = vector.load %arg4[%c0_10, %c0_11] : memref<8x32xf32, #tpu.memory_space<vmem>>, vector<8x32xf32>
    %cst_12 = arith.constant dense<0.000000e+00> : vector<64x32xf32>
    %12 = tpu.matmul %0, %11, %cst_12 {dimension_numbers = #tpu.dot_dimension_numbers<[1], [0], [0], [1], [0, 0, 1, 1], [], []>} : vector<64x8xf32>, vector<8x32xf32>, vector<64x32xf32> -> vector<64x32xf32>
    %c0_13 = arith.constant 0 : index
    %c0_14 = arith.constant 0 : index
    %13 = vector.load %arg13[%c0_13, %c0_14] : memref<1x32xf32, #tpu.memory_space<vmem>>, vector<1x32xf32>
    %14 = vector.broadcast %13 : vector<1x32xf32> to vector<64x32xf32>
    %15 = arith.addf %12, %14 : vector<64x32xf32>
    %c0_15 = arith.constant 0 : index
    %c0_16 = arith.constant 0 : index
    %16 = vector.load %arg8[%c0_15, %c0_16] : memref<32x32xf32, #tpu.memory_space<vmem>>, vector<32x32xf32>
    %c0_17 = arith.constant 0 : index
    %c0_18 = arith.constant 0 : index
    %17 = vector.load %arg9[%c0_17, %c0_18] : memref<32x32xf32, #tpu.memory_space<vmem>>, vector<32x32xf32>
    %c0_19 = arith.constant 0 : index
    %c0_20 = arith.constant 0 : index
    %18 = vector.load %arg10[%c0_19, %c0_20] : memref<32x32xf32, #tpu.memory_space<vmem>>, vector<32x32xf32>
    %c0_21 = arith.constant 0 : index
    %c0_22 = arith.constant 0 : index
    %19 = vector.load %arg5[%c0_21, %c0_22] : memref<8x32xf32, #tpu.memory_space<vmem>>, vector<8x32xf32>
    %c0_23 = arith.constant 0 : index
    %c0_24 = arith.constant 0 : index
    %20 = vector.load %arg6[%c0_23, %c0_24] : memref<8x32xf32, #tpu.memory_space<vmem>>, vector<8x32xf32>
    %c0_25 = arith.constant 0 : index
    %c0_26 = arith.constant 0 : index
    %21 = vector.load %arg7[%c0_25, %c0_26] : memref<8x32xf32, #tpu.memory_space<vmem>>, vector<8x32xf32>
    %c0_27 = arith.constant 0 : index
    %c0_28 = arith.constant 0 : index
    %22 = vector.load %arg15[%c0_27, %c0_28] : memref<32x32xf32, #tpu.memory_space<vmem>>, vector<32x32xf32>
    %c0_29 = arith.constant 0 : index
    %c0_30 = arith.constant 0 : index
    %23 = vector.load %arg16[%c0_29, %c0_30] : memref<1x32xf32, #tpu.memory_space<vmem>>, vector<1x32xf32>
    %c0_31 = arith.constant 0 : index
    %c0_32 = arith.constant 0 : index
    %24 = vector.load %arg17[%c0_31, %c0_32] : memref<32x8xf32, #tpu.memory_space<vmem>>, vector<32x8xf32>
    %c0_33 = arith.constant 0 : index
    %c0_34 = arith.constant 0 : index
    %25 = vector.load %arg18[%c0_33, %c0_34] : memref<1x8xf32, #tpu.memory_space<vmem>>, vector<1x8xf32>
    %c0_35 = arith.constant 0 : index
    %c0_36 = arith.constant 0 : index
    %26 = vector.load %arg14[%c0_35, %c0_36] : memref<1x32xf32, #tpu.memory_space<vmem>>, vector<1x32xf32>
    %cst_37 = arith.constant 0.000000e+00 : f32
    %27 = vector.broadcast %cst_37 : f32 to vector<8x32xf32>
    %cst_38 = arith.constant 0.000000e+00 : f32
    %28 = vector.broadcast %cst_38 : f32 to vector<8x8xf32>
    %cst_39 = arith.constant dense<0.000000e+00> : vector<8x32xf32>
    %29 = tpu.matmul %27, %16, %cst_39 {dimension_numbers = #tpu.dot_dimension_numbers<[1], [0], [0], [1], [0, 0, 1, 1], [], []>} : vector<8x32xf32>, vector<32x32xf32>, vector<8x32xf32> -> vector<8x32xf32>
    %cst_40 = arith.constant dense<0.000000e+00> : vector<8x32xf32>
    %30 = tpu.matmul %27, %17, %cst_40 {dimension_numbers = #tpu.dot_dimension_numbers<[1], [0], [0], [1], [0, 0, 1, 1], [], []>} : vector<8x32xf32>, vector<32x32xf32>, vector<8x32xf32> -> vector<8x32xf32>
    %cst_41 = arith.constant dense<0.000000e+00> : vector<8x32xf32>
    %31 = tpu.matmul %27, %18, %cst_41 {dimension_numbers = #tpu.dot_dimension_numbers<[1], [0], [0], [1], [0, 0, 1, 1], [], []>} : vector<8x32xf32>, vector<32x32xf32>, vector<8x32xf32> -> vector<8x32xf32>
    %32 = vector.broadcast %26 : vector<1x32xf32> to vector<8x32xf32>
    %33 = arith.addf %31, %32 : vector<8x32xf32>
    %cst_42 = arith.constant dense<0.000000e+00> : vector<8x32xf32>
    %34 = tpu.matmul %28, %19, %cst_42 {dimension_numbers = #tpu.dot_dimension_numbers<[1], [0], [0], [1], [0, 0, 1, 1], [], []>} : vector<8x8xf32>, vector<8x32xf32>, vector<8x32xf32> -> vector<8x32xf32>
    %cst_43 = arith.constant dense<0.000000e+00> : vector<8x32xf32>
    %35 = tpu.matmul %28, %20, %cst_43 {dimension_numbers = #tpu.dot_dimension_numbers<[1], [0], [0], [1], [0, 0, 1, 1], [], []>} : vector<8x8xf32>, vector<8x32xf32>, vector<8x32xf32> -> vector<8x32xf32>
    %cst_44 = arith.constant dense<0.000000e+00> : vector<8x32xf32>
    %36 = tpu.matmul %28, %21, %cst_44 {dimension_numbers = #tpu.dot_dimension_numbers<[1], [0], [0], [1], [0, 0, 1, 1], [], []>} : vector<8x8xf32>, vector<8x32xf32>, vector<8x32xf32> -> vector<8x32xf32>
    %37 = vector.extract_strided_slice %5 {offsets = [0, 0], sizes = [8, 32], strides = [1, 1]} : vector<64x32xf32> to vector<8x32xf32>
    %38 = arith.addf %37, %34 : vector<8x32xf32>
    %39 = arith.addf %38, %29 : vector<8x32xf32>
    %40 = arith.negf %39 : vector<8x32xf32>
    %41 = math.exp %40 : vector<8x32xf32>
    %cst_45 = arith.constant 1.000000e+00 : f32
    %42 = vector.broadcast %cst_45 : f32 to vector<8x32xf32>
    %43 = arith.addf %42, %41 : vector<8x32xf32>
    %44 = arith.divf %42, %43 : vector<8x32xf32>
    %45 = vector.extract_strided_slice %10 {offsets = [0, 0], sizes = [8, 32], strides = [1, 1]} : vector<64x32xf32> to vector<8x32xf32>
    %46 = arith.addf %45, %35 : vector<8x32xf32>
    %47 = arith.addf %46, %30 : vector<8x32xf32>
    %48 = arith.negf %47 : vector<8x32xf32>
    %49 = math.exp %48 : vector<8x32xf32>
    %cst_46 = arith.constant 1.000000e+00 : f32
    %50 = vector.broadcast %cst_46 : f32 to vector<8x32xf32>
    %51 = arith.addf %50, %49 : vector<8x32xf32>
    %52 = arith.divf %50, %51 : vector<8x32xf32>
    %53 = vector.extract_strided_slice %15 {offsets = [0, 0], sizes = [8, 32], strides = [1, 1]} : vector<64x32xf32> to vector<8x32xf32>
    %54 = arith.addf %53, %36 : vector<8x32xf32>
    %55 = arith.mulf %44, %33 : vector<8x32xf32>
    %56 = arith.addf %54, %55 : vector<8x32xf32>
    %57 = math.tanh %56 : vector<8x32xf32>
    %cst_47 = arith.constant 1.000000e+00 : f32
    %58 = vector.broadcast %cst_47 : f32 to vector<8x32xf32>
    %59 = arith.subf %58, %52 : vector<8x32xf32>
    %60 = arith.mulf %59, %57 : vector<8x32xf32>
    %61 = arith.mulf %52, %27 : vector<8x32xf32>
    %62 = arith.addf %60, %61 : vector<8x32xf32>
    %cst_48 = arith.constant dense<0.000000e+00> : vector<8x32xf32>
    %63 = tpu.matmul %62, %22, %cst_48 {dimension_numbers = #tpu.dot_dimension_numbers<[1], [0], [0], [1], [0, 0, 1, 1], [], []>} : vector<8x32xf32>, vector<32x32xf32>, vector<8x32xf32> -> vector<8x32xf32>
    %64 = vector.broadcast %23 : vector<1x32xf32> to vector<8x32xf32>
    %65 = arith.addf %63, %64 : vector<8x32xf32>
    %cst_49 = arith.constant 0.000000e+00 : f32
    %66 = vector.broadcast %cst_49 : f32 to vector<8x32xf32>
    %67 = arith.maximumf %65, %66 : vector<8x32xf32>
    %cst_50 = arith.constant dense<0.000000e+00> : vector<8x8xf32>
    %68 = tpu.matmul %67, %24, %cst_50 {dimension_numbers = #tpu.dot_dimension_numbers<[1], [0], [0], [1], [0, 0, 1, 1], [], []>} : vector<8x32xf32>, vector<32x8xf32>, vector<8x8xf32> -> vector<8x8xf32>
    %69 = vector.broadcast %25 : vector<1x8xf32> to vector<8x8xf32>
    %70 = arith.addf %68, %69 : vector<8x8xf32>
    %c0_51 = arith.constant 0 : index
    %c0_52 = arith.constant 0 : index
    %71 = vector.load %arg27[%c0_51, %c0_52] : memref<64x32xf32, #tpu.memory_space<vmem>>, vector<8x32xf32>
    tpu.vector_store %arg27[%c0_51, %c0_52], %62 {strides = array<i32>} : memref<64x32xf32, #tpu.memory_space<vmem>>, vector<8x32xf32>,
    %c0_53 = arith.constant 0 : index
    %c0_54 = arith.constant 0 : index
    %72 = vector.load %arg24[%c0_53, %c0_54] : memref<64x8xf32, #tpu.memory_space<vmem>>, vector<8x8xf32>
    tpu.vector_store %arg24[%c0_53, %c0_54], %70 {strides = array<i32>} : memref<64x8xf32, #tpu.memory_space<vmem>>, vector<8x8xf32>,
    %cst_55 = arith.constant dense<0.000000e+00> : vector<8x32xf32>
    %73 = tpu.matmul %62, %16, %cst_55 {dimension_numbers = #tpu.dot_dimension_numbers<[1], [0], [0], [1], [0, 0, 1, 1], [], []>} : vector<8x32xf32>, vector<32x32xf32>, vector<8x32xf32> -> vector<8x32xf32>
    %cst_56 = arith.constant dense<0.000000e+00> : vector<8x32xf32>
    %74 = tpu.matmul %62, %17, %cst_56 {dimension_numbers = #tpu.dot_dimension_numbers<[1], [0], [0], [1], [0, 0, 1, 1], [], []>} : vector<8x32xf32>, vector<32x32xf32>, vector<8x32xf32> -> vector<8x32xf32>
    %cst_57 = arith.constant dense<0.000000e+00> : vector<8x32xf32>
    %75 = tpu.matmul %62, %18, %cst_57 {dimension_numbers = #tpu.dot_dimension_numbers<[1], [0], [0], [1], [0, 0, 1, 1], [], []>} : vector<8x32xf32>, vector<32x32xf32>, vector<8x32xf32> -> vector<8x32xf32>
    %76 = vector.broadcast %26 : vector<1x32xf32> to vector<8x32xf32>
    %77 = arith.addf %75, %76 : vector<8x32xf32>
    %cst_58 = arith.constant dense<0.000000e+00> : vector<8x32xf32>
    %78 = tpu.matmul %70, %19, %cst_58 {dimension_numbers = #tpu.dot_dimension_numbers<[1], [0], [0], [1], [0, 0, 1, 1], [], []>} : vector<8x8xf32>, vector<8x32xf32>, vector<8x32xf32> -> vector<8x32xf32>
    %cst_59 = arith.constant dense<0.000000e+00> : vector<8x32xf32>
    %79 = tpu.matmul %70, %20, %cst_59 {dimension_numbers = #tpu.dot_dimension_numbers<[1], [0], [0], [1], [0, 0, 1, 1], [], []>} : vector<8x8xf32>, vector<8x32xf32>, vector<8x32xf32> -> vector<8x32xf32>
    %cst_60 = arith.constant dense<0.000000e+00> : vector<8x32xf32>
    %80 = tpu.matmul %70, %21, %cst_60 {dimension_numbers = #tpu.dot_dimension_numbers<[1], [0], [0], [1], [0, 0, 1, 1], [], []>} : vector<8x8xf32>, vector<8x32xf32>, vector<8x32xf32> -> vector<8x32xf32>
    %81 = vector.extract_strided_slice %5 {offsets = [8, 0], sizes = [8, 32], strides = [1, 1]} : vector<64x32xf32> to vector<8x32xf32>
    %82 = arith.addf %81, %78 : vector<8x32xf32>
    %83 = arith.addf %82, %73 : vector<8x32xf32>
    %84 = arith.negf %83 : vector<8x32xf32>
    %85 = math.exp %84 : vector<8x32xf32>
    %cst_61 = arith.constant 1.000000e+00 : f32
    %86 = vector.broadcast %cst_61 : f32 to vector<8x32xf32>
    %87 = arith.addf %86, %85 : vector<8x32xf32>
    %88 = arith.divf %86, %87 : vector<8x32xf32>
    %89 = vector.extract_strided_slice %10 {offsets = [8, 0], sizes = [8, 32], strides = [1, 1]} : vector<64x32xf32> to vector<8x32xf32>
    %90 = arith.addf %89, %79 : vector<8x32xf32>
    %91 = arith.addf %90, %74 : vector<8x32xf32>
    %92 = arith.negf %91 : vector<8x32xf32>
    %93 = math.exp %92 : vector<8x32xf32>
    %cst_62 = arith.constant 1.000000e+00 : f32
    %94 = vector.broadcast %cst_62 : f32 to vector<8x32xf32>
    %95 = arith.addf %94, %93 : vector<8x32xf32>
    %96 = arith.divf %94, %95 : vector<8x32xf32>
    %97 = vector.extract_strided_slice %15 {offsets = [8, 0], sizes = [8, 32], strides = [1, 1]} : vector<64x32xf32> to vector<8x32xf32>
    %98 = arith.addf %97, %80 : vector<8x32xf32>
    %99 = arith.mulf %88, %77 : vector<8x32xf32>
    %100 = arith.addf %98, %99 : vector<8x32xf32>
    %101 = math.tanh %100 : vector<8x32xf32>
    %cst_63 = arith.constant 1.000000e+00 : f32
    %102 = vector.broadcast %cst_63 : f32 to vector<8x32xf32>
    %103 = arith.subf %102, %96 : vector<8x32xf32>
    %104 = arith.mulf %103, %101 : vector<8x32xf32>
    %105 = arith.mulf %96, %62 : vector<8x32xf32>
    %106 = arith.addf %104, %105 : vector<8x32xf32>
    %cst_64 = arith.constant dense<0.000000e+00> : vector<8x32xf32>
    %107 = tpu.matmul %106, %22, %cst_64 {dimension_numbers = #tpu.dot_dimension_numbers<[1], [0], [0], [1], [0, 0, 1, 1], [], []>} : vector<8x32xf32>, vector<32x32xf32>, vector<8x32xf32> -> vector<8x32xf32>
    %108 = vector.broadcast %23 : vector<1x32xf32> to vector<8x32xf32>
    %109 = arith.addf %107, %108 : vector<8x32xf32>
    %cst_65 = arith.constant 0.000000e+00 : f32
    %110 = vector.broadcast %cst_65 : f32 to vector<8x32xf32>
    %111 = arith.maximumf %109, %110 : vector<8x32xf32>
    %cst_66 = arith.constant dense<0.000000e+00> : vector<8x8xf32>
    %112 = tpu.matmul %111, %24, %cst_66 {dimension_numbers = #tpu.dot_dimension_numbers<[1], [0], [0], [1], [0, 0, 1, 1], [], []>} : vector<8x32xf32>, vector<32x8xf32>, vector<8x8xf32> -> vector<8x8xf32>
    %113 = vector.broadcast %25 : vector<1x8xf32> to vector<8x8xf32>
    %114 = arith.addf %112, %113 : vector<8x8xf32>
    %c8 = arith.constant 8 : index
    %c0_67 = arith.constant 0 : index
    %115 = vector.load %arg27[%c8, %c0_67] : memref<64x32xf32, #tpu.memory_space<vmem>>, vector<8x32xf32>
    tpu.vector_store %arg27[%c8, %c0_67], %106 {strides = array<i32>} : memref<64x32xf32, #tpu.memory_space<vmem>>, vector<8x32xf32>,
    %c8_68 = arith.constant 8 : index
    %c0_69 = arith.constant 0 : index
    %116 = vector.load %arg24[%c8_68, %c0_69] : memref<64x8xf32, #tpu.memory_space<vmem>>, vector<8x8xf32>
    tpu.vector_store %arg24[%c8_68, %c0_69], %114 {strides = array<i32>} : memref<64x8xf32, #tpu.memory_space<vmem>>, vector<8x8xf32>,
    %cst_70 = arith.constant dense<0.000000e+00> : vector<8x32xf32>
    %117 = tpu.matmul %106, %16, %cst_70 {dimension_numbers = #tpu.dot_dimension_numbers<[1], [0], [0], [1], [0, 0, 1, 1], [], []>} : vector<8x32xf32>, vector<32x32xf32>, vector<8x32xf32> -> vector<8x32xf32>
    %cst_71 = arith.constant dense<0.000000e+00> : vector<8x32xf32>
    %118 = tpu.matmul %106, %17, %cst_71 {dimension_numbers = #tpu.dot_dimension_numbers<[1], [0], [0], [1], [0, 0, 1, 1], [], []>} : vector<8x32xf32>, vector<32x32xf32>, vector<8x32xf32> -> vector<8x32xf32>
    %cst_72 = arith.constant dense<0.000000e+00> : vector<8x32xf32>
    %119 = tpu.matmul %106, %18, %cst_72 {dimension_numbers = #tpu.dot_dimension_numbers<[1], [0], [0], [1], [0, 0, 1, 1], [], []>} : vector<8x32xf32>, vector<32x32xf32>, vector<8x32xf32> -> vector<8x32xf32>
    %120 = vector.broadcast %26 : vector<1x32xf32> to vector<8x32xf32>
    %121 = arith.addf %119, %120 : vector<8x32xf32>
    %cst_73 = arith.constant dense<0.000000e+00> : vector<8x32xf32>
    %122 = tpu.matmul %114, %19, %cst_73 {dimension_numbers = #tpu.dot_dimension_numbers<[1], [0], [0], [1], [0, 0, 1, 1], [], []>} : vector<8x8xf32>, vector<8x32xf32>, vector<8x32xf32> -> vector<8x32xf32>
    %cst_74 = arith.constant dense<0.000000e+00> : vector<8x32xf32>
    %123 = tpu.matmul %114, %20, %cst_74 {dimension_numbers = #tpu.dot_dimension_numbers<[1], [0], [0], [1], [0, 0, 1, 1], [], []>} : vector<8x8xf32>, vector<8x32xf32>, vector<8x32xf32> -> vector<8x32xf32>
    %cst_75 = arith.constant dense<0.000000e+00> : vector<8x32xf32>
    %124 = tpu.matmul %114, %21, %cst_75 {dimension_numbers = #tpu.dot_dimension_numbers<[1], [0], [0], [1], [0, 0, 1, 1], [], []>} : vector<8x8xf32>, vector<8x32xf32>, vector<8x32xf32> -> vector<8x32xf32>
    %125 = vector.extract_strided_slice %5 {offsets = [16, 0], sizes = [8, 32], strides = [1, 1]} : vector<64x32xf32> to vector<8x32xf32>
    %126 = arith.addf %125, %122 : vector<8x32xf32>
    %127 = arith.addf %126, %117 : vector<8x32xf32>
    %128 = arith.negf %127 : vector<8x32xf32>
    %129 = math.exp %128 : vector<8x32xf32>
    %cst_76 = arith.constant 1.000000e+00 : f32
    %130 = vector.broadcast %cst_76 : f32 to vector<8x32xf32>
    %131 = arith.addf %130, %129 : vector<8x32xf32>
    %132 = arith.divf %130, %131 : vector<8x32xf32>
    %133 = vector.extract_strided_slice %10 {offsets = [16, 0], sizes = [8, 32], strides = [1, 1]} : vector<64x32xf32> to vector<8x32xf32>
    %134 = arith.addf %133, %123 : vector<8x32xf32>
    %135 = arith.addf %134, %118 : vector<8x32xf32>
    %136 = arith.negf %135 : vector<8x32xf32>
    %137 = math.exp %136 : vector<8x32xf32>
    %cst_77 = arith.constant 1.000000e+00 : f32
    %138 = vector.broadcast %cst_77 : f32 to vector<8x32xf32>
    %139 = arith.addf %138, %137 : vector<8x32xf32>
    %140 = arith.divf %138, %139 : vector<8x32xf32>
    %141 = vector.extract_strided_slice %15 {offsets = [16, 0], sizes = [8, 32], strides = [1, 1]} : vector<64x32xf32> to vector<8x32xf32>
    %142 = arith.addf %141, %124 : vector<8x32xf32>
    %143 = arith.mulf %132, %121 : vector<8x32xf32>
    %144 = arith.addf %142, %143 : vector<8x32xf32>
    %145 = math.tanh %144 : vector<8x32xf32>
    %cst_78 = arith.constant 1.000000e+00 : f32
    %146 = vector.broadcast %cst_78 : f32 to vector<8x32xf32>
    %147 = arith.subf %146, %140 : vector<8x32xf32>
    %148 = arith.mulf %147, %145 : vector<8x32xf32>
    %149 = arith.mulf %140, %106 : vector<8x32xf32>
    %150 = arith.addf %148, %149 : vector<8x32xf32>
    %cst_79 = arith.constant dense<0.000000e+00> : vector<8x32xf32>
    %151 = tpu.matmul %150, %22, %cst_79 {dimension_numbers = #tpu.dot_dimension_numbers<[1], [0], [0], [1], [0, 0, 1, 1], [], []>} : vector<8x32xf32>, vector<32x32xf32>, vector<8x32xf32> -> vector<8x32xf32>
    %152 = vector.broadcast %23 : vector<1x32xf32> to vector<8x32xf32>
    %153 = arith.addf %151, %152 : vector<8x32xf32>
    %cst_80 = arith.constant 0.000000e+00 : f32
    %154 = vector.broadcast %cst_80 : f32 to vector<8x32xf32>
    %155 = arith.maximumf %153, %154 : vector<8x32xf32>
    %cst_81 = arith.constant dense<0.000000e+00> : vector<8x8xf32>
    %156 = tpu.matmul %155, %24, %cst_81 {dimension_numbers = #tpu.dot_dimension_numbers<[1], [0], [0], [1], [0, 0, 1, 1], [], []>} : vector<8x32xf32>, vector<32x8xf32>, vector<8x8xf32> -> vector<8x8xf32>
    %157 = vector.broadcast %25 : vector<1x8xf32> to vector<8x8xf32>
    %158 = arith.addf %156, %157 : vector<8x8xf32>
    %c16 = arith.constant 16 : index
    %c0_82 = arith.constant 0 : index
    %159 = vector.load %arg27[%c16, %c0_82] : memref<64x32xf32, #tpu.memory_space<vmem>>, vector<8x32xf32>
    tpu.vector_store %arg27[%c16, %c0_82], %150 {strides = array<i32>} : memref<64x32xf32, #tpu.memory_space<vmem>>, vector<8x32xf32>,
    %c16_83 = arith.constant 16 : index
    %c0_84 = arith.constant 0 : index
    %160 = vector.load %arg24[%c16_83, %c0_84] : memref<64x8xf32, #tpu.memory_space<vmem>>, vector<8x8xf32>
    tpu.vector_store %arg24[%c16_83, %c0_84], %158 {strides = array<i32>} : memref<64x8xf32, #tpu.memory_space<vmem>>, vector<8x8xf32>,
    %cst_85 = arith.constant dense<0.000000e+00> : vector<8x32xf32>
    %161 = tpu.matmul %150, %16, %cst_85 {dimension_numbers = #tpu.dot_dimension_numbers<[1], [0], [0], [1], [0, 0, 1, 1], [], []>} : vector<8x32xf32>, vector<32x32xf32>, vector<8x32xf32> -> vector<8x32xf32>
    %cst_86 = arith.constant dense<0.000000e+00> : vector<8x32xf32>
    %162 = tpu.matmul %150, %17, %cst_86 {dimension_numbers = #tpu.dot_dimension_numbers<[1], [0], [0], [1], [0, 0, 1, 1], [], []>} : vector<8x32xf32>, vector<32x32xf32>, vector<8x32xf32> -> vector<8x32xf32>
    %cst_87 = arith.constant dense<0.000000e+00> : vector<8x32xf32>
    %163 = tpu.matmul %150, %18, %cst_87 {dimension_numbers = #tpu.dot_dimension_numbers<[1], [0], [0], [1], [0, 0, 1, 1], [], []>} : vector<8x32xf32>, vector<32x32xf32>, vector<8x32xf32> -> vector<8x32xf32>
    %164 = vector.broadcast %26 : vector<1x32xf32> to vector<8x32xf32>
    %165 = arith.addf %163, %164 : vector<8x32xf32>
    %cst_88 = arith.constant dense<0.000000e+00> : vector<8x32xf32>
    %166 = tpu.matmul %158, %19, %cst_88 {dimension_numbers = #tpu.dot_dimension_numbers<[1], [0], [0], [1], [0, 0, 1, 1], [], []>} : vector<8x8xf32>, vector<8x32xf32>, vector<8x32xf32> -> vector<8x32xf32>
    %cst_89 = arith.constant dense<0.000000e+00> : vector<8x32xf32>
    %167 = tpu.matmul %158, %20, %cst_89 {dimension_numbers = #tpu.dot_dimension_numbers<[1], [0], [0], [1], [0, 0, 1, 1], [], []>} : vector<8x8xf32>, vector<8x32xf32>, vector<8x32xf32> -> vector<8x32xf32>
    %cst_90 = arith.constant dense<0.000000e+00> : vector<8x32xf32>
    %168 = tpu.matmul %158, %21, %cst_90 {dimension_numbers = #tpu.dot_dimension_numbers<[1], [0], [0], [1], [0, 0, 1, 1], [], []>} : vector<8x8xf32>, vector<8x32xf32>, vector<8x32xf32> -> vector<8x32xf32>
    %169 = vector.extract_strided_slice %5 {offsets = [24, 0], sizes = [8, 32], strides = [1, 1]} : vector<64x32xf32> to vector<8x32xf32>
    %170 = arith.addf %169, %166 : vector<8x32xf32>
    %171 = arith.addf %170, %161 : vector<8x32xf32>
    %172 = arith.negf %171 : vector<8x32xf32>
    %173 = math.exp %172 : vector<8x32xf32>
    %cst_91 = arith.constant 1.000000e+00 : f32
    %174 = vector.broadcast %cst_91 : f32 to vector<8x32xf32>
    %175 = arith.addf %174, %173 : vector<8x32xf32>
    %176 = arith.divf %174, %175 : vector<8x32xf32>
    %177 = vector.extract_strided_slice %10 {offsets = [24, 0], sizes = [8, 32], strides = [1, 1]} : vector<64x32xf32> to vector<8x32xf32>
    %178 = arith.addf %177, %167 : vector<8x32xf32>
    %179 = arith.addf %178, %162 : vector<8x32xf32>
    %180 = arith.negf %179 : vector<8x32xf32>
    %181 = math.exp %180 : vector<8x32xf32>
    %cst_92 = arith.constant 1.000000e+00 : f32
    %182 = vector.broadcast %cst_92 : f32 to vector<8x32xf32>
    %183 = arith.addf %182, %181 : vector<8x32xf32>
    %184 = arith.divf %182, %183 : vector<8x32xf32>
    %185 = vector.extract_strided_slice %15 {offsets = [24, 0], sizes = [8, 32], strides = [1, 1]} : vector<64x32xf32> to vector<8x32xf32>
    %186 = arith.addf %185, %168 : vector<8x32xf32>
    %187 = arith.mulf %176, %165 : vector<8x32xf32>
    %188 = arith.addf %186, %187 : vector<8x32xf32>
    %189 = math.tanh %188 : vector<8x32xf32>
    %cst_93 = arith.constant 1.000000e+00 : f32
    %190 = vector.broadcast %cst_93 : f32 to vector<8x32xf32>
    %191 = arith.subf %190, %184 : vector<8x32xf32>
    %192 = arith.mulf %191, %189 : vector<8x32xf32>
    %193 = arith.mulf %184, %150 : vector<8x32xf32>
    %194 = arith.addf %192, %193 : vector<8x32xf32>
    %cst_94 = arith.constant dense<0.000000e+00> : vector<8x32xf32>
    %195 = tpu.matmul %194, %22, %cst_94 {dimension_numbers = #tpu.dot_dimension_numbers<[1], [0], [0], [1], [0, 0, 1, 1], [], []>} : vector<8x32xf32>, vector<32x32xf32>, vector<8x32xf32> -> vector<8x32xf32>
    %196 = vector.broadcast %23 : vector<1x32xf32> to vector<8x32xf32>
    %197 = arith.addf %195, %196 : vector<8x32xf32>
    %cst_95 = arith.constant 0.000000e+00 : f32
    %198 = vector.broadcast %cst_95 : f32 to vector<8x32xf32>
    %199 = arith.maximumf %197, %198 : vector<8x32xf32>
    %cst_96 = arith.constant dense<0.000000e+00> : vector<8x8xf32>
    %200 = tpu.matmul %199, %24, %cst_96 {dimension_numbers = #tpu.dot_dimension_numbers<[1], [0], [0], [1], [0, 0, 1, 1], [], []>} : vector<8x32xf32>, vector<32x8xf32>, vector<8x8xf32> -> vector<8x8xf32>
    %201 = vector.broadcast %25 : vector<1x8xf32> to vector<8x8xf32>
    %202 = arith.addf %200, %201 : vector<8x8xf32>
    %c24 = arith.constant 24 : index
    %c0_97 = arith.constant 0 : index
    %203 = vector.load %arg27[%c24, %c0_97] : memref<64x32xf32, #tpu.memory_space<vmem>>, vector<8x32xf32>
    tpu.vector_store %arg27[%c24, %c0_97], %194 {strides = array<i32>} : memref<64x32xf32, #tpu.memory_space<vmem>>, vector<8x32xf32>,
    %c24_98 = arith.constant 24 : index
    %c0_99 = arith.constant 0 : index
    %204 = vector.load %arg24[%c24_98, %c0_99] : memref<64x8xf32, #tpu.memory_space<vmem>>, vector<8x8xf32>
    tpu.vector_store %arg24[%c24_98, %c0_99], %202 {strides = array<i32>} : memref<64x8xf32, #tpu.memory_space<vmem>>, vector<8x8xf32>,
    %cst_100 = arith.constant dense<0.000000e+00> : vector<8x32xf32>
    %205 = tpu.matmul %194, %16, %cst_100 {dimension_numbers = #tpu.dot_dimension_numbers<[1], [0], [0], [1], [0, 0, 1, 1], [], []>} : vector<8x32xf32>, vector<32x32xf32>, vector<8x32xf32> -> vector<8x32xf32>
    %cst_101 = arith.constant dense<0.000000e+00> : vector<8x32xf32>
    %206 = tpu.matmul %194, %17, %cst_101 {dimension_numbers = #tpu.dot_dimension_numbers<[1], [0], [0], [1], [0, 0, 1, 1], [], []>} : vector<8x32xf32>, vector<32x32xf32>, vector<8x32xf32> -> vector<8x32xf32>
    %cst_102 = arith.constant dense<0.000000e+00> : vector<8x32xf32>
    %207 = tpu.matmul %194, %18, %cst_102 {dimension_numbers = #tpu.dot_dimension_numbers<[1], [0], [0], [1], [0, 0, 1, 1], [], []>} : vector<8x32xf32>, vector<32x32xf32>, vector<8x32xf32> -> vector<8x32xf32>
    %208 = vector.broadcast %26 : vector<1x32xf32> to vector<8x32xf32>
    %209 = arith.addf %207, %208 : vector<8x32xf32>
    %cst_103 = arith.constant dense<0.000000e+00> : vector<8x32xf32>
    %210 = tpu.matmul %202, %19, %cst_103 {dimension_numbers = #tpu.dot_dimension_numbers<[1], [0], [0], [1], [0, 0, 1, 1], [], []>} : vector<8x8xf32>, vector<8x32xf32>, vector<8x32xf32> -> vector<8x32xf32>
    %cst_104 = arith.constant dense<0.000000e+00> : vector<8x32xf32>
    %211 = tpu.matmul %202, %20, %cst_104 {dimension_numbers = #tpu.dot_dimension_numbers<[1], [0], [0], [1], [0, 0, 1, 1], [], []>} : vector<8x8xf32>, vector<8x32xf32>, vector<8x32xf32> -> vector<8x32xf32>
    %cst_105 = arith.constant dense<0.000000e+00> : vector<8x32xf32>
    %212 = tpu.matmul %202, %21, %cst_105 {dimension_numbers = #tpu.dot_dimension_numbers<[1], [0], [0], [1], [0, 0, 1, 1], [], []>} : vector<8x8xf32>, vector<8x32xf32>, vector<8x32xf32> -> vector<8x32xf32>
    %213 = vector.extract_strided_slice %5 {offsets = [32, 0], sizes = [8, 32], strides = [1, 1]} : vector<64x32xf32> to vector<8x32xf32>
    %214 = arith.addf %213, %210 : vector<8x32xf32>
    %215 = arith.addf %214, %205 : vector<8x32xf32>
    %216 = arith.negf %215 : vector<8x32xf32>
    %217 = math.exp %216 : vector<8x32xf32>
    %cst_106 = arith.constant 1.000000e+00 : f32
    %218 = vector.broadcast %cst_106 : f32 to vector<8x32xf32>
    %219 = arith.addf %218, %217 : vector<8x32xf32>
    %220 = arith.divf %218, %219 : vector<8x32xf32>
    %221 = vector.extract_strided_slice %10 {offsets = [32, 0], sizes = [8, 32], strides = [1, 1]} : vector<64x32xf32> to vector<8x32xf32>
    %222 = arith.addf %221, %211 : vector<8x32xf32>
    %223 = arith.addf %222, %206 : vector<8x32xf32>
    %224 = arith.negf %223 : vector<8x32xf32>
    %225 = math.exp %224 : vector<8x32xf32>
    %cst_107 = arith.constant 1.000000e+00 : f32
    %226 = vector.broadcast %cst_107 : f32 to vector<8x32xf32>
    %227 = arith.addf %226, %225 : vector<8x32xf32>
    %228 = arith.divf %226, %227 : vector<8x32xf32>
    %229 = vector.extract_strided_slice %15 {offsets = [32, 0], sizes = [8, 32], strides = [1, 1]} : vector<64x32xf32> to vector<8x32xf32>
    %230 = arith.addf %229, %212 : vector<8x32xf32>
    %231 = arith.mulf %220, %209 : vector<8x32xf32>
    %232 = arith.addf %230, %231 : vector<8x32xf32>
    %233 = math.tanh %232 : vector<8x32xf32>
    %cst_108 = arith.constant 1.000000e+00 : f32
    %234 = vector.broadcast %cst_108 : f32 to vector<8x32xf32>
    %235 = arith.subf %234, %228 : vector<8x32xf32>
    %236 = arith.mulf %235, %233 : vector<8x32xf32>
    %237 = arith.mulf %228, %194 : vector<8x32xf32>
    %238 = arith.addf %236, %237 : vector<8x32xf32>
    %cst_109 = arith.constant dense<0.000000e+00> : vector<8x32xf32>
    %239 = tpu.matmul %238, %22, %cst_109 {dimension_numbers = #tpu.dot_dimension_numbers<[1], [0], [0], [1], [0, 0, 1, 1], [], []>} : vector<8x32xf32>, vector<32x32xf32>, vector<8x32xf32> -> vector<8x32xf32>
    %240 = vector.broadcast %23 : vector<1x32xf32> to vector<8x32xf32>
    %241 = arith.addf %239, %240 : vector<8x32xf32>
    %cst_110 = arith.constant 0.000000e+00 : f32
    %242 = vector.broadcast %cst_110 : f32 to vector<8x32xf32>
    %243 = arith.maximumf %241, %242 : vector<8x32xf32>
    %cst_111 = arith.constant dense<0.000000e+00> : vector<8x8xf32>
    %244 = tpu.matmul %243, %24, %cst_111 {dimension_numbers = #tpu.dot_dimension_numbers<[1], [0], [0], [1], [0, 0, 1, 1], [], []>} : vector<8x32xf32>, vector<32x8xf32>, vector<8x8xf32> -> vector<8x8xf32>
    %245 = vector.broadcast %25 : vector<1x8xf32> to vector<8x8xf32>
    %246 = arith.addf %244, %245 : vector<8x8xf32>
    %c32 = arith.constant 32 : index
    %c0_112 = arith.constant 0 : index
    %247 = vector.load %arg27[%c32, %c0_112] : memref<64x32xf32, #tpu.memory_space<vmem>>, vector<8x32xf32>
    tpu.vector_store %arg27[%c32, %c0_112], %238 {strides = array<i32>} : memref<64x32xf32, #tpu.memory_space<vmem>>, vector<8x32xf32>,
    %c32_113 = arith.constant 32 : index
    %c0_114 = arith.constant 0 : index
    %248 = vector.load %arg24[%c32_113, %c0_114] : memref<64x8xf32, #tpu.memory_space<vmem>>, vector<8x8xf32>
    tpu.vector_store %arg24[%c32_113, %c0_114], %246 {strides = array<i32>} : memref<64x8xf32, #tpu.memory_space<vmem>>, vector<8x8xf32>,
    %cst_115 = arith.constant dense<0.000000e+00> : vector<8x32xf32>
    %249 = tpu.matmul %238, %16, %cst_115 {dimension_numbers = #tpu.dot_dimension_numbers<[1], [0], [0], [1], [0, 0, 1, 1], [], []>} : vector<8x32xf32>, vector<32x32xf32>, vector<8x32xf32> -> vector<8x32xf32>
    %cst_116 = arith.constant dense<0.000000e+00> : vector<8x32xf32>
    %250 = tpu.matmul %238, %17, %cst_116 {dimension_numbers = #tpu.dot_dimension_numbers<[1], [0], [0], [1], [0, 0, 1, 1], [], []>} : vector<8x32xf32>, vector<32x32xf32>, vector<8x32xf32> -> vector<8x32xf32>
    %cst_117 = arith.constant dense<0.000000e+00> : vector<8x32xf32>
    %251 = tpu.matmul %238, %18, %cst_117 {dimension_numbers = #tpu.dot_dimension_numbers<[1], [0], [0], [1], [0, 0, 1, 1], [], []>} : vector<8x32xf32>, vector<32x32xf32>, vector<8x32xf32> -> vector<8x32xf32>
    %252 = vector.broadcast %26 : vector<1x32xf32> to vector<8x32xf32>
    %253 = arith.addf %251, %252 : vector<8x32xf32>
    %cst_118 = arith.constant dense<0.000000e+00> : vector<8x32xf32>
    %254 = tpu.matmul %246, %19, %cst_118 {dimension_numbers = #tpu.dot_dimension_numbers<[1], [0], [0], [1], [0, 0, 1, 1], [], []>} : vector<8x8xf32>, vector<8x32xf32>, vector<8x32xf32> -> vector<8x32xf32>
    %cst_119 = arith.constant dense<0.000000e+00> : vector<8x32xf32>
    %255 = tpu.matmul %246, %20, %cst_119 {dimension_numbers = #tpu.dot_dimension_numbers<[1], [0], [0], [1], [0, 0, 1, 1], [], []>} : vector<8x8xf32>, vector<8x32xf32>, vector<8x32xf32> -> vector<8x32xf32>
    %cst_120 = arith.constant dense<0.000000e+00> : vector<8x32xf32>
    %256 = tpu.matmul %246, %21, %cst_120 {dimension_numbers = #tpu.dot_dimension_numbers<[1], [0], [0], [1], [0, 0, 1, 1], [], []>} : vector<8x8xf32>, vector<8x32xf32>, vector<8x32xf32> -> vector<8x32xf32>
    %257 = vector.extract_strided_slice %5 {offsets = [40, 0], sizes = [8, 32], strides = [1, 1]} : vector<64x32xf32> to vector<8x32xf32>
    %258 = arith.addf %257, %254 : vector<8x32xf32>
    %259 = arith.addf %258, %249 : vector<8x32xf32>
    %260 = arith.negf %259 : vector<8x32xf32>
    %261 = math.exp %260 : vector<8x32xf32>
    %cst_121 = arith.constant 1.000000e+00 : f32
    %262 = vector.broadcast %cst_121 : f32 to vector<8x32xf32>
    %263 = arith.addf %262, %261 : vector<8x32xf32>
    %264 = arith.divf %262, %263 : vector<8x32xf32>
    %265 = vector.extract_strided_slice %10 {offsets = [40, 0], sizes = [8, 32], strides = [1, 1]} : vector<64x32xf32> to vector<8x32xf32>
    %266 = arith.addf %265, %255 : vector<8x32xf32>
    %267 = arith.addf %266, %250 : vector<8x32xf32>
    %268 = arith.negf %267 : vector<8x32xf32>
    %269 = math.exp %268 : vector<8x32xf32>
    %cst_122 = arith.constant 1.000000e+00 : f32
    %270 = vector.broadcast %cst_122 : f32 to vector<8x32xf32>
    %271 = arith.addf %270, %269 : vector<8x32xf32>
    %272 = arith.divf %270, %271 : vector<8x32xf32>
    %273 = vector.extract_strided_slice %15 {offsets = [40, 0], sizes = [8, 32], strides = [1, 1]} : vector<64x32xf32> to vector<8x32xf32>
    %274 = arith.addf %273, %256 : vector<8x32xf32>
    %275 = arith.mulf %264, %253 : vector<8x32xf32>
    %276 = arith.addf %274, %275 : vector<8x32xf32>
    %277 = math.tanh %276 : vector<8x32xf32>
    %cst_123 = arith.constant 1.000000e+00 : f32
    %278 = vector.broadcast %cst_123 : f32 to vector<8x32xf32>
    %279 = arith.subf %278, %272 : vector<8x32xf32>
    %280 = arith.mulf %279, %277 : vector<8x32xf32>
    %281 = arith.mulf %272, %238 : vector<8x32xf32>
    %282 = arith.addf %280, %281 : vector<8x32xf32>
    %cst_124 = arith.constant dense<0.000000e+00> : vector<8x32xf32>
    %283 = tpu.matmul %282, %22, %cst_124 {dimension_numbers = #tpu.dot_dimension_numbers<[1], [0], [0], [1], [0, 0, 1, 1], [], []>} : vector<8x32xf32>, vector<32x32xf32>, vector<8x32xf32> -> vector<8x32xf32>
    %284 = vector.broadcast %23 : vector<1x32xf32> to vector<8x32xf32>
    %285 = arith.addf %283, %284 : vector<8x32xf32>
    %cst_125 = arith.constant 0.000000e+00 : f32
    %286 = vector.broadcast %cst_125 : f32 to vector<8x32xf32>
    %287 = arith.maximumf %285, %286 : vector<8x32xf32>
    %cst_126 = arith.constant dense<0.000000e+00> : vector<8x8xf32>
    %288 = tpu.matmul %287, %24, %cst_126 {dimension_numbers = #tpu.dot_dimension_numbers<[1], [0], [0], [1], [0, 0, 1, 1], [], []>} : vector<8x32xf32>, vector<32x8xf32>, vector<8x8xf32> -> vector<8x8xf32>
    %289 = vector.broadcast %25 : vector<1x8xf32> to vector<8x8xf32>
    %290 = arith.addf %288, %289 : vector<8x8xf32>
    %c40 = arith.constant 40 : index
    %c0_127 = arith.constant 0 : index
    %291 = vector.load %arg27[%c40, %c0_127] : memref<64x32xf32, #tpu.memory_space<vmem>>, vector<8x32xf32>
    tpu.vector_store %arg27[%c40, %c0_127], %282 {strides = array<i32>} : memref<64x32xf32, #tpu.memory_space<vmem>>, vector<8x32xf32>,
    %c40_128 = arith.constant 40 : index
    %c0_129 = arith.constant 0 : index
    %292 = vector.load %arg24[%c40_128, %c0_129] : memref<64x8xf32, #tpu.memory_space<vmem>>, vector<8x8xf32>
    tpu.vector_store %arg24[%c40_128, %c0_129], %290 {strides = array<i32>} : memref<64x8xf32, #tpu.memory_space<vmem>>, vector<8x8xf32>,
    %cst_130 = arith.constant dense<0.000000e+00> : vector<8x32xf32>
    %293 = tpu.matmul %282, %16, %cst_130 {dimension_numbers = #tpu.dot_dimension_numbers<[1], [0], [0], [1], [0, 0, 1, 1], [], []>} : vector<8x32xf32>, vector<32x32xf32>, vector<8x32xf32> -> vector<8x32xf32>
    %cst_131 = arith.constant dense<0.000000e+00> : vector<8x32xf32>
    %294 = tpu.matmul %282, %17, %cst_131 {dimension_numbers = #tpu.dot_dimension_numbers<[1], [0], [0], [1], [0, 0, 1, 1], [], []>} : vector<8x32xf32>, vector<32x32xf32>, vector<8x32xf32> -> vector<8x32xf32>
    %cst_132 = arith.constant dense<0.000000e+00> : vector<8x32xf32>
    %295 = tpu.matmul %282, %18, %cst_132 {dimension_numbers = #tpu.dot_dimension_numbers<[1], [0], [0], [1], [0, 0, 1, 1], [], []>} : vector<8x32xf32>, vector<32x32xf32>, vector<8x32xf32> -> vector<8x32xf32>
    %296 = vector.broadcast %26 : vector<1x32xf32> to vector<8x32xf32>
    %297 = arith.addf %295, %296 : vector<8x32xf32>
    %cst_133 = arith.constant dense<0.000000e+00> : vector<8x32xf32>
    %298 = tpu.matmul %290, %19, %cst_133 {dimension_numbers = #tpu.dot_dimension_numbers<[1], [0], [0], [1], [0, 0, 1, 1], [], []>} : vector<8x8xf32>, vector<8x32xf32>, vector<8x32xf32> -> vector<8x32xf32>
    %cst_134 = arith.constant dense<0.000000e+00> : vector<8x32xf32>
    %299 = tpu.matmul %290, %20, %cst_134 {dimension_numbers = #tpu.dot_dimension_numbers<[1], [0], [0], [1], [0, 0, 1, 1], [], []>} : vector<8x8xf32>, vector<8x32xf32>, vector<8x32xf32> -> vector<8x32xf32>
    %cst_135 = arith.constant dense<0.000000e+00> : vector<8x32xf32>
    %300 = tpu.matmul %290, %21, %cst_135 {dimension_numbers = #tpu.dot_dimension_numbers<[1], [0], [0], [1], [0, 0, 1, 1], [], []>} : vector<8x8xf32>, vector<8x32xf32>, vector<8x32xf32> -> vector<8x32xf32>
    %301 = vector.extract_strided_slice %5 {offsets = [48, 0], sizes = [8, 32], strides = [1, 1]} : vector<64x32xf32> to vector<8x32xf32>
    %302 = arith.addf %301, %298 : vector<8x32xf32>
    %303 = arith.addf %302, %293 : vector<8x32xf32>
    %304 = arith.negf %303 : vector<8x32xf32>
    %305 = math.exp %304 : vector<8x32xf32>
    %cst_136 = arith.constant 1.000000e+00 : f32
    %306 = vector.broadcast %cst_136 : f32 to vector<8x32xf32>
    %307 = arith.addf %306, %305 : vector<8x32xf32>
    %308 = arith.divf %306, %307 : vector<8x32xf32>
    %309 = vector.extract_strided_slice %10 {offsets = [48, 0], sizes = [8, 32], strides = [1, 1]} : vector<64x32xf32> to vector<8x32xf32>
    %310 = arith.addf %309, %299 : vector<8x32xf32>
    %311 = arith.addf %310, %294 : vector<8x32xf32>
    %312 = arith.negf %311 : vector<8x32xf32>
    %313 = math.exp %312 : vector<8x32xf32>
    %cst_137 = arith.constant 1.000000e+00 : f32
    %314 = vector.broadcast %cst_137 : f32 to vector<8x32xf32>
    %315 = arith.addf %314, %313 : vector<8x32xf32>
    %316 = arith.divf %314, %315 : vector<8x32xf32>
    %317 = vector.extract_strided_slice %15 {offsets = [48, 0], sizes = [8, 32], strides = [1, 1]} : vector<64x32xf32> to vector<8x32xf32>
    %318 = arith.addf %317, %300 : vector<8x32xf32>
    %319 = arith.mulf %308, %297 : vector<8x32xf32>
    %320 = arith.addf %318, %319 : vector<8x32xf32>
    %321 = math.tanh %320 : vector<8x32xf32>
    %cst_138 = arith.constant 1.000000e+00 : f32
    %322 = vector.broadcast %cst_138 : f32 to vector<8x32xf32>
    %323 = arith.subf %322, %316 : vector<8x32xf32>
    %324 = arith.mulf %323, %321 : vector<8x32xf32>
    %325 = arith.mulf %316, %282 : vector<8x32xf32>
    %326 = arith.addf %324, %325 : vector<8x32xf32>
    %cst_139 = arith.constant dense<0.000000e+00> : vector<8x32xf32>
    %327 = tpu.matmul %326, %22, %cst_139 {dimension_numbers = #tpu.dot_dimension_numbers<[1], [0], [0], [1], [0, 0, 1, 1], [], []>} : vector<8x32xf32>, vector<32x32xf32>, vector<8x32xf32> -> vector<8x32xf32>
    %328 = vector.broadcast %23 : vector<1x32xf32> to vector<8x32xf32>
    %329 = arith.addf %327, %328 : vector<8x32xf32>
    %cst_140 = arith.constant 0.000000e+00 : f32
    %330 = vector.broadcast %cst_140 : f32 to vector<8x32xf32>
    %331 = arith.maximumf %329, %330 : vector<8x32xf32>
    %cst_141 = arith.constant dense<0.000000e+00> : vector<8x8xf32>
    %332 = tpu.matmul %331, %24, %cst_141 {dimension_numbers = #tpu.dot_dimension_numbers<[1], [0], [0], [1], [0, 0, 1, 1], [], []>} : vector<8x32xf32>, vector<32x8xf32>, vector<8x8xf32> -> vector<8x8xf32>
    %333 = vector.broadcast %25 : vector<1x8xf32> to vector<8x8xf32>
    %334 = arith.addf %332, %333 : vector<8x8xf32>
    %c48 = arith.constant 48 : index
    %c0_142 = arith.constant 0 : index
    %335 = vector.load %arg27[%c48, %c0_142] : memref<64x32xf32, #tpu.memory_space<vmem>>, vector<8x32xf32>
    tpu.vector_store %arg27[%c48, %c0_142], %326 {strides = array<i32>} : memref<64x32xf32, #tpu.memory_space<vmem>>, vector<8x32xf32>,
    %c48_143 = arith.constant 48 : index
    %c0_144 = arith.constant 0 : index
    %336 = vector.load %arg24[%c48_143, %c0_144] : memref<64x8xf32, #tpu.memory_space<vmem>>, vector<8x8xf32>
    tpu.vector_store %arg24[%c48_143, %c0_144], %334 {strides = array<i32>} : memref<64x8xf32, #tpu.memory_space<vmem>>, vector<8x8xf32>,
    %cst_145 = arith.constant dense<0.000000e+00> : vector<8x32xf32>
    %337 = tpu.matmul %326, %16, %cst_145 {dimension_numbers = #tpu.dot_dimension_numbers<[1], [0], [0], [1], [0, 0, 1, 1], [], []>} : vector<8x32xf32>, vector<32x32xf32>, vector<8x32xf32> -> vector<8x32xf32>
    %cst_146 = arith.constant dense<0.000000e+00> : vector<8x32xf32>
    %338 = tpu.matmul %326, %17, %cst_146 {dimension_numbers = #tpu.dot_dimension_numbers<[1], [0], [0], [1], [0, 0, 1, 1], [], []>} : vector<8x32xf32>, vector<32x32xf32>, vector<8x32xf32> -> vector<8x32xf32>
    %cst_147 = arith.constant dense<0.000000e+00> : vector<8x32xf32>
    %339 = tpu.matmul %326, %18, %cst_147 {dimension_numbers = #tpu.dot_dimension_numbers<[1], [0], [0], [1], [0, 0, 1, 1], [], []>} : vector<8x32xf32>, vector<32x32xf32>, vector<8x32xf32> -> vector<8x32xf32>
    %340 = vector.broadcast %26 : vector<1x32xf32> to vector<8x32xf32>
    %341 = arith.addf %339, %340 : vector<8x32xf32>
    %cst_148 = arith.constant dense<0.000000e+00> : vector<8x32xf32>
    %342 = tpu.matmul %334, %19, %cst_148 {dimension_numbers = #tpu.dot_dimension_numbers<[1], [0], [0], [1], [0, 0, 1, 1], [], []>} : vector<8x8xf32>, vector<8x32xf32>, vector<8x32xf32> -> vector<8x32xf32>
    %cst_149 = arith.constant dense<0.000000e+00> : vector<8x32xf32>
    %343 = tpu.matmul %334, %20, %cst_149 {dimension_numbers = #tpu.dot_dimension_numbers<[1], [0], [0], [1], [0, 0, 1, 1], [], []>} : vector<8x8xf32>, vector<8x32xf32>, vector<8x32xf32> -> vector<8x32xf32>
    %cst_150 = arith.constant dense<0.000000e+00> : vector<8x32xf32>
    %344 = tpu.matmul %334, %21, %cst_150 {dimension_numbers = #tpu.dot_dimension_numbers<[1], [0], [0], [1], [0, 0, 1, 1], [], []>} : vector<8x8xf32>, vector<8x32xf32>, vector<8x32xf32> -> vector<8x32xf32>
    %345 = vector.extract_strided_slice %5 {offsets = [56, 0], sizes = [8, 32], strides = [1, 1]} : vector<64x32xf32> to vector<8x32xf32>
    %346 = arith.addf %345, %342 : vector<8x32xf32>
    %347 = arith.addf %346, %337 : vector<8x32xf32>
    %348 = arith.negf %347 : vector<8x32xf32>
    %349 = math.exp %348 : vector<8x32xf32>
    %cst_151 = arith.constant 1.000000e+00 : f32
    %350 = vector.broadcast %cst_151 : f32 to vector<8x32xf32>
    %351 = arith.addf %350, %349 : vector<8x32xf32>
    %352 = arith.divf %350, %351 : vector<8x32xf32>
    %353 = vector.extract_strided_slice %10 {offsets = [56, 0], sizes = [8, 32], strides = [1, 1]} : vector<64x32xf32> to vector<8x32xf32>
    %354 = arith.addf %353, %343 : vector<8x32xf32>
    %355 = arith.addf %354, %338 : vector<8x32xf32>
    %356 = arith.negf %355 : vector<8x32xf32>
    %357 = math.exp %356 : vector<8x32xf32>
    %cst_152 = arith.constant 1.000000e+00 : f32
    %358 = vector.broadcast %cst_152 : f32 to vector<8x32xf32>
    %359 = arith.addf %358, %357 : vector<8x32xf32>
    %360 = arith.divf %358, %359 : vector<8x32xf32>
    %361 = vector.extract_strided_slice %15 {offsets = [56, 0], sizes = [8, 32], strides = [1, 1]} : vector<64x32xf32> to vector<8x32xf32>
    %362 = arith.addf %361, %344 : vector<8x32xf32>
    %363 = arith.mulf %352, %341 : vector<8x32xf32>
    %364 = arith.addf %362, %363 : vector<8x32xf32>
    %365 = math.tanh %364 : vector<8x32xf32>
    %cst_153 = arith.constant 1.000000e+00 : f32
    %366 = vector.broadcast %cst_153 : f32 to vector<8x32xf32>
    %367 = arith.subf %366, %360 : vector<8x32xf32>
    %368 = arith.mulf %367, %365 : vector<8x32xf32>
    %369 = arith.mulf %360, %326 : vector<8x32xf32>
    %370 = arith.addf %368, %369 : vector<8x32xf32>
    %cst_154 = arith.constant dense<0.000000e+00> : vector<8x32xf32>
    %371 = tpu.matmul %370, %22, %cst_154 {dimension_numbers = #tpu.dot_dimension_numbers<[1], [0], [0], [1], [0, 0, 1, 1], [], []>} : vector<8x32xf32>, vector<32x32xf32>, vector<8x32xf32> -> vector<8x32xf32>
    %372 = vector.broadcast %23 : vector<1x32xf32> to vector<8x32xf32>
    %373 = arith.addf %371, %372 : vector<8x32xf32>
    %cst_155 = arith.constant 0.000000e+00 : f32
    %374 = vector.broadcast %cst_155 : f32 to vector<8x32xf32>
    %375 = arith.maximumf %373, %374 : vector<8x32xf32>
    %cst_156 = arith.constant dense<0.000000e+00> : vector<8x8xf32>
    %376 = tpu.matmul %375, %24, %cst_156 {dimension_numbers = #tpu.dot_dimension_numbers<[1], [0], [0], [1], [0, 0, 1, 1], [], []>} : vector<8x32xf32>, vector<32x8xf32>, vector<8x8xf32> -> vector<8x8xf32>
    %377 = vector.broadcast %25 : vector<1x8xf32> to vector<8x8xf32>
    %378 = arith.addf %376, %377 : vector<8x8xf32>
    %c56 = arith.constant 56 : index
    %c0_157 = arith.constant 0 : index
    %379 = vector.load %arg27[%c56, %c0_157] : memref<64x32xf32, #tpu.memory_space<vmem>>, vector<8x32xf32>
    tpu.vector_store %arg27[%c56, %c0_157], %370 {strides = array<i32>} : memref<64x32xf32, #tpu.memory_space<vmem>>, vector<8x32xf32>,
    %c56_158 = arith.constant 56 : index
    %c0_159 = arith.constant 0 : index
    %380 = vector.load %arg24[%c56_158, %c0_159] : memref<64x8xf32, #tpu.memory_space<vmem>>, vector<8x8xf32>
    tpu.vector_store %arg24[%c56_158, %c0_159], %378 {strides = array<i32>} : memref<64x8xf32, #tpu.memory_space<vmem>>, vector<8x8xf32>,
    %c0_160 = arith.constant 0 : index
    %c0_161 = arith.constant 0 : index
    %381 = vector.load %arg25[%c0_160, %c0_161] : memref<8x32xf32, #tpu.memory_space<vmem>>, vector<8x32xf32>
    tpu.vector_store %arg25[%c0_160, %c0_161], %370 {strides = array<i32>} : memref<8x32xf32, #tpu.memory_space<vmem>>, vector<8x32xf32>,
    %c0_162 = arith.constant 0 : index
    %c0_163 = arith.constant 0 : index
    %382 = vector.load %arg27[%c0_162, %c0_163] : memref<64x32xf32, #tpu.memory_space<vmem>>, vector<64x32xf32>
    %c0_164 = arith.constant 0 : index
    %c0_165 = arith.constant 0 : index
    %383 = vector.load %arg19[%c0_164, %c0_165] : memref<32x32xf32, #tpu.memory_space<vmem>>, vector<32x32xf32>
    %cst_166 = arith.constant dense<0.000000e+00> : vector<64x32xf32>
    %384 = tpu.matmul %382, %383, %cst_166 {dimension_numbers = #tpu.dot_dimension_numbers<[1], [0], [0], [1], [0, 0, 1, 1], [], []>} : vector<64x32xf32>, vector<32x32xf32>, vector<64x32xf32> -> vector<64x32xf32>
    %c0_167 = arith.constant 0 : index
    %c0_168 = arith.constant 0 : index
    %385 = vector.load %arg20[%c0_167, %c0_168] : memref<1x32xf32, #tpu.memory_space<vmem>>, vector<1x32xf32>
    %386 = vector.broadcast %385 : vector<1x32xf32> to vector<64x32xf32>
    %387 = arith.addf %384, %386 : vector<64x32xf32>
    %cst_169 = arith.constant 0.000000e+00 : f32
    %388 = vector.broadcast %cst_169 : f32 to vector<64x32xf32>
    %389 = arith.maximumf %387, %388 : vector<64x32xf32>
    %c0_170 = arith.constant 0 : index
    %c0_171 = arith.constant 0 : index
    %390 = vector.load %arg26[%c0_170, %c0_171] : memref<64x32xf32, #tpu.memory_space<vmem>>, vector<64x32xf32>
    tpu.vector_store %arg26[%c0_170, %c0_171], %389 {strides = array<i32>} : memref<64x32xf32, #tpu.memory_space<vmem>>, vector<64x32xf32>,
    %c0_172 = arith.constant 0 : index
    %c0_173 = arith.constant 0 : index
    %391 = vector.load %arg21[%c0_172, %c0_173] : memref<32x4xf32, #tpu.memory_space<vmem>>, vector<32x4xf32>
    %cst_174 = arith.constant dense<0.000000e+00> : vector<64x4xf32>
    %392 = tpu.matmul %389, %391, %cst_174 {dimension_numbers = #tpu.dot_dimension_numbers<[1], [0], [0], [1], [0, 0, 1, 1], [], []>} : vector<64x32xf32>, vector<32x4xf32>, vector<64x4xf32> -> vector<64x4xf32>
    %c0_175 = arith.constant 0 : index
    %c0_176 = arith.constant 0 : index
    %393 = vector.load %arg22[%c0_175, %c0_176] : memref<1x4xf32, #tpu.memory_space<vmem>>, vector<1x4xf32>
    %394 = vector.broadcast %393 : vector<1x4xf32> to vector<64x4xf32>
    %395 = arith.addf %392, %394 : vector<64x4xf32>
    %c0_177 = arith.constant 0 : index
    %c0_178 = arith.constant 0 : index
    %396 = vector.load %arg23[%c0_177, %c0_178] : memref<64x4xf32, #tpu.memory_space<vmem>>, vector<64x4xf32>
    tpu.vector_store %arg23[%c0_177, %c0_178], %395 {strides = array<i32>} : memref<64x4xf32, #tpu.memory_space<vmem>>, vector<64x4xf32>,
    return
  }
  func.func @transform_0(%arg0: i32) -> (i32, i32) {
    %c0_i32 = arith.constant 0 : i32
    %c0_i32_0 = arith.constant 0 : i32
    %c0_i32_1 = arith.constant 0 : i32
    return %c0_i32, %c0_i32_0 : i32, i32
  }
  func.func @transform_1(%arg0: i32) -> (i32, i32) {
    %c0_i32 = arith.constant 0 : i32
    %c0_i32_0 = arith.constant 0 : i32
    %c0_i32_1 = arith.constant 0 : i32
    return %c0_i32, %c0_i32_0 : i32, i32
  }
  func.func @transform_2(%arg0: i32) -> (i32, i32) {
    %c0_i32 = arith.constant 0 : i32
    %c0_i32_0 = arith.constant 0 : i32
    %c0_i32_1 = arith.constant 0 : i32
    return %c0_i32, %c0_i32_0 : i32, i32
  }
  func.func @transform_3(%arg0: i32) -> (i32, i32) {
    %c0_i32 = arith.constant 0 : i32
    %c0_i32_0 = arith.constant 0 : i32
    %c0_i32_1 = arith.constant 0 : i32
    return %c0_i32, %c0_i32_0 : i32, i32
  }
  func.func @transform_4(%arg0: i32) -> (i32, i32) {
    %c0_i32 = arith.constant 0 : i32
    %c0_i32_0 = arith.constant 0 : i32
    %c0_i32_1 = arith.constant 0 : i32
    return %c0_i32, %c0_i32_0 : i32, i32
  }
  func.func @transform_5(%arg0: i32) -> (i32, i32) {
    %c0_i32 = arith.constant 0 : i32
    %c0_i32_0 = arith.constant 0 : i32
    %c0_i32_1 = arith.constant 0 : i32
    return %c0_i32, %c0_i32_0 : i32, i32
  }
  func.func @transform_6(%arg0: i32) -> (i32, i32) {
    %c0_i32 = arith.constant 0 : i32
    %c0_i32_0 = arith.constant 0 : i32
    %c0_i32_1 = arith.constant 0 : i32
    return %c0_i32, %c0_i32_0 : i32, i32
  }
  func.func @transform_7(%arg0: i32) -> (i32, i32) {
    %c0_i32 = arith.constant 0 : i32
    %c0_i32_0 = arith.constant 0 : i32
    %c0_i32_1 = arith.constant 0 : i32
    return %c0_i32, %c0_i32_0 : i32, i32
  }
  func.func @transform_8(%arg0: i32) -> (i32, i32) {
    %c0_i32 = arith.constant 0 : i32
    %c0_i32_0 = arith.constant 0 : i32
    %c0_i32_1 = arith.constant 0 : i32
    return %c0_i32, %c0_i32_0 : i32, i32
  }
  func.func @transform_9(%arg0: i32) -> (i32, i32) {
    %c0_i32 = arith.constant 0 : i32
    %c0_i32_0 = arith.constant 0 : i32
    %c0_i32_1 = arith.constant 0 : i32
    return %c0_i32, %c0_i32_0 : i32, i32
  }
  func.func @transform_10(%arg0: i32) -> (i32, i32) {
    %c0_i32 = arith.constant 0 : i32
    %c0_i32_0 = arith.constant 0 : i32
    %c0_i32_1 = arith.constant 0 : i32
    return %c0_i32, %c0_i32_0 : i32, i32
  }
  func.func @transform_11(%arg0: i32) -> (i32, i32) {
    %c0_i32 = arith.constant 0 : i32
    %c0_i32_0 = arith.constant 0 : i32
    %c0_i32_1 = arith.constant 0 : i32
    return %c0_i32, %c0_i32_0 : i32, i32
  }
  func.func @transform_12(%arg0: i32) -> (i32, i32) {
    %c0_i32 = arith.constant 0 : i32
    %c0_i32_0 = arith.constant 0 : i32
    %c0_i32_1 = arith.constant 0 : i32
    return %c0_i32, %c0_i32_0 : i32, i32
  }
  func.func @transform_13(%arg0: i32) -> (i32, i32) {
    %c0_i32 = arith.constant 0 : i32
    %c0_i32_0 = arith.constant 0 : i32
    %c0_i32_1 = arith.constant 0 : i32
    return %c0_i32, %c0_i32_0 : i32, i32
  }
  func.func @transform_14(%arg0: i32) -> (i32, i32) {
    %c0_i32 = arith.constant 0 : i32
    %c0_i32_0 = arith.constant 0 : i32
    %c0_i32_1 = arith.constant 0 : i32
    return %c0_i32, %c0_i32_0 : i32, i32
  }
  func.func @transform_15(%arg0: i32) -> (i32, i32) {
    %c0_i32 = arith.constant 0 : i32
    %c0_i32_0 = arith.constant 0 : i32
    %c0_i32_1 = arith.constant 0 : i32
    return %c0_i32, %c0_i32_0 : i32, i32
  }
  func.func @transform_16(%arg0: i32) -> (i32, i32) {
    %c0_i32 = arith.constant 0 : i32
    %c0_i32_0 = arith.constant 0 : i32
    %c0_i32_1 = arith.constant 0 : i32
    return %c0_i32, %c0_i32_0 : i32, i32
  }
  func.func @transform_17(%arg0: i32) -> (i32, i32) {
    %c0_i32 = arith.constant 0 : i32
    %c0_i32_0 = arith.constant 0 : i32
    %c0_i32_1 = arith.constant 0 : i32
    return %c0_i32, %c0_i32_0 : i32, i32
  }
  func.func @transform_18(%arg0: i32) -> (i32, i32) {
    %c0_i32 = arith.constant 0 : i32
    %c0_i32_0 = arith.constant 0 : i32
    %c0_i32_1 = arith.constant 0 : i32
    return %c0_i32, %c0_i32_0 : i32, i32
  }
  func.func @transform_19(%arg0: i32) -> (i32, i32) {
    %c0_i32 = arith.constant 0 : i32
    %c0_i32_0 = arith.constant 0 : i32
    %c0_i32_1 = arith.constant 0 : i32
    return %c0_i32, %c0_i32_0 : i32, i32
  }
  func.func @transform_20(%arg0: i32) -> (i32, i32) {
    %c0_i32 = arith.constant 0 : i32
    %c0_i32_0 = arith.constant 0 : i32
    %c0_i32_1 = arith.constant 0 : i32
    return %c0_i32, %c0_i32_0 : i32, i32
  }
  func.func @transform_21(%arg0: i32) -> (i32, i32) {
    %c0_i32 = arith.constant 0 : i32
    %c0_i32_0 = arith.constant 0 : i32
    %c0_i32_1 = arith.constant 0 : i32
    return %c0_i32, %c0_i32_0 : i32, i32
  }
  func.func @transform_22(%arg0: i32) -> (i32, i32) {
    %c0_i32 = arith.constant 0 : i32
    %c0_i32_0 = arith.constant 0 : i32
    %c0_i32_1 = arith.constant 0 : i32
    return %c0_i32, %c0_i32_0 : i32, i32
  }
  func.func @transform_23(%arg0: i32) -> (i32, i32) {
    %c0_i32 = arith.constant 0 : i32
    %c0_i32_0 = arith.constant 0 : i32
    %c0_i32_1 = arith.constant 0 : i32
    return %c0_i32, %c0_i32_0 : i32, i32
  }
  func.func @transform_24(%arg0: i32) -> (i32, i32) {
    %c0_i32 = arith.constant 0 : i32
    %c0_i32_0 = arith.constant 0 : i32
    %c0_i32_1 = arith.constant 0 : i32
    return %c0_i32, %c0_i32_0 : i32, i32
  }
  func.func @transform_25(%arg0: i32) -> (i32, i32) {
    %c0_i32 = arith.constant 0 : i32
    %c0_i32_0 = arith.constant 0 : i32
    %c0_i32_1 = arith.constant 0 : i32
    return %c0_i32, %c0_i32_0 : i32, i32
  }
}

</mosaic_0001>

<llo_original>
// kernel: recurrent_qnet_forward.1
$region0: #{recurrent_qnet_forward.1}
  #allocation0 [shape = 'u32[]', space=smem, size = 0x4, offset = 0x4, fixed_abs, tag = 'smem constant byte address 0x4 - core index']
  #allocation1 [shape = 'u32[72,128]{1,0:T(1,128)}', space=vmem, size = 0x9000, scoped, tag = 'internal scratch']
  #allocation2 [shape = 'f32[64,32]{1,0:T(8,128)}', space=vmem, size = 0x8000, scoped, tag = 'scratch operand']
  %s0 = inlined_call_operand.vmem [shape: f32[64,8], index: 0, kind: input, shape index: {}]
  %s1 = inlined_call_operand.vmem [shape: f32[8,32], index: 1, kind: input, shape index: {}]
  %s2 = inlined_call_operand.vmem [shape: f32[8,32], index: 2, kind: input, shape index: {}]
  %s3 = inlined_call_operand.vmem [shape: f32[8,32], index: 3, kind: input, shape index: {}]
  %s4 = inlined_call_operand.vmem [shape: f32[8,32], index: 4, kind: input, shape index: {}]
  %s5 = inlined_call_operand.vmem [shape: f32[8,32], index: 5, kind: input, shape index: {}]
  %s6 = inlined_call_operand.vmem [shape: f32[8,32], index: 6, kind: input, shape index: {}]
  %s7 = inlined_call_operand.vmem [shape: f32[32,32], index: 7, kind: input, shape index: {}]
  %s8 = inlined_call_operand.vmem [shape: f32[32,32], index: 8, kind: input, shape index: {}]
  %s9 = inlined_call_operand.vmem [shape: f32[32,32], index: 9, kind: input, shape index: {}]
  %s10 = inlined_call_operand.vmem [shape: f32[1,32], index: 10, kind: input, shape index: {}]
  %s11 = inlined_call_operand.vmem [shape: f32[1,32], index: 11, kind: input, shape index: {}]
  %s12 = inlined_call_operand.vmem [shape: f32[1,32], index: 12, kind: input, shape index: {}]
  %s13 = inlined_call_operand.vmem [shape: f32[1,32], index: 13, kind: input, shape index: {}]
  %s14 = inlined_call_operand.vmem [shape: f32[32,32], index: 14, kind: input, shape index: {}]
  %s15 = inlined_call_operand.vmem [shape: f32[1,32], index: 15, kind: input, shape index: {}]
  %s16 = inlined_call_operand.vmem [shape: f32[32,8], index: 16, kind: input, shape index: {}]
  %s17 = inlined_call_operand.vmem [shape: f32[1,8], index: 17, kind: input, shape index: {}]
  %s18 = inlined_call_operand.vmem [shape: f32[32,32], index: 18, kind: input, shape index: {}]
  %s19 = inlined_call_operand.vmem [shape: f32[1,32], index: 19, kind: input, shape index: {}]
  %s20 = inlined_call_operand.vmem [shape: f32[32,4], index: 20, kind: input, shape index: {}]
  %s21 = inlined_call_operand.vmem [shape: f32[1,4], index: 21, kind: input, shape index: {}]
  %s22 = inlined_call_operand.vmem [shape: f32[64,4], index: 22, kind: output, shape index: {0}]
  %s23 = inlined_call_operand.vmem [shape: f32[64,8], index: 23, kind: output, shape index: {1}]
  %s24 = inlined_call_operand.vmem [shape: f32[8,32], index: 24, kind: output, shape index: {2}]
  %s25 = inlined_call_operand.vmem [shape: f32[64,32], index: 25, kind: output, shape index: {3}]
  %26 = xla_tuple %s22, %s23, %s24, %s25
  %s27 = sld [smem:[#allocation0]]
  $region122: #{recurrent_qnet_forward.1} parent=0
    _
  %s29 = ssub.s32 1, %s27
  %s30 = scalar_select 0, %s29, %s27
  // Predicated region
  $region2: #{recurrent_qnet_forward.1} parent=0 // pred_check
    _
  $region3: #{recurrent_qnet_forward.1} parent=0 // pred_check_branch
    %32 = sbr.rel (0) target = $region5
  $region4: #{recurrent_qnet_forward.1} parent=0 // pred_region
    _
  $region5: #{recurrent_qnet_forward.1} parent=0 // pred_fallthru
    _
  // Predicated region
  $region6: #{recurrent_qnet_forward.1} parent=0 // pred_check
    _
  $region7: #{recurrent_qnet_forward.1} parent=0 // pred_check_branch
    %34 = sbr.rel (0) target = $region9
  $region8: #{recurrent_qnet_forward.1} parent=0 // pred_region
    _
  $region9: #{recurrent_qnet_forward.1} parent=0 // pred_fallthru
    _
  // Predicated region
  $region10: #{recurrent_qnet_forward.1} parent=0 // pred_check
    _
  $region11: #{recurrent_qnet_forward.1} parent=0 // pred_check_branch
    %36 = sbr.rel (0) target = $region13
  $region12: #{recurrent_qnet_forward.1} parent=0 // pred_region
    _
  $region13: #{recurrent_qnet_forward.1} parent=0 // pred_fallthru
    _
  // Predicated region
  $region14: #{recurrent_qnet_forward.1} parent=0 // pred_check
    _
  $region15: #{recurrent_qnet_forward.1} parent=0 // pred_check_branch
    %38 = sbr.rel (0) target = $region17
  $region16: #{recurrent_qnet_forward.1} parent=0 // pred_region
    _
  $region17: #{recurrent_qnet_forward.1} parent=0 // pred_fallthru
    _
  // Predicated region
  $region18: #{recurrent_qnet_forward.1} parent=0 // pred_check
    _
  $region19: #{recurrent_qnet_forward.1} parent=0 // pred_check_branch
    %40 = sbr.rel (0) target = $region21
  $region20: #{recurrent_qnet_forward.1} parent=0 // pred_region
    _
  $region21: #{recurrent_qnet_forward.1} parent=0 // pred_fallthru
    _
  // Predicated region
  $region22: #{recurrent_qnet_forward.1} parent=0 // pred_check
    _
  $region23: #{recurrent_qnet_forward.1} parent=0 // pred_check_branch
    %42 = sbr.rel (0) target = $region25
  $region24: #{recurrent_qnet_forward.1} parent=0 // pred_region
    _
  $region25: #{recurrent_qnet_forward.1} parent=0 // pred_fallthru
    _
  // Predicated region
  $region26: #{recurrent_qnet_forward.1} parent=0 // pred_check
    _
  $region27: #{recurrent_qnet_forward.1} parent=0 // pred_check_branch
    %44 = sbr.rel (0) target = $region29
  $region28: #{recurrent_qnet_forward.1} parent=0 // pred_region
    _
  $region29: #{recurrent_qnet_forward.1} parent=0 // pred_fallthru
    _
  // Predicated region
  $region30: #{recurrent_qnet_forward.1} parent=0 // pred_check
    _
  $region31: #{recurrent_qnet_forward.1} parent=0 // pred_check_branch
    %46 = sbr.rel (0) target = $region33
  $region32: #{recurrent_qnet_forward.1} parent=0 // pred_region
    _
  $region33: #{recurrent_qnet_forward.1} parent=0 // pred_fallthru
    _
  // Predicated region
  $region34: #{recurrent_qnet_forward.1} parent=0 // pred_check
    _
  $region35: #{recurrent_qnet_forward.1} parent=0 // pred_check_branch
    %48 = sbr.rel (0) target = $region37
  $region36: #{recurrent_qnet_forward.1} parent=0 // pred_region
    _
  $region37: #{recurrent_qnet_forward.1} parent=0 // pred_fallthru
    _
  // Predicated region
  $region38: #{recurrent_qnet_forward.1} parent=0 // pred_check
    _
  $region39: #{recurrent_qnet_forward.1} parent=0 // pred_check_branch
    %50 = sbr.rel (0) target = $region41
  $region40: #{recurrent_qnet_forward.1} parent=0 // pred_region
    _
  $region41: #{recurrent_qnet_forward.1} parent=0 // pred_fallthru
    _
  // Predicated region
  $region42: #{recurrent_qnet_forward.1} parent=0 // pred_check
    _
  $region43: #{recurrent_qnet_forward.1} parent=0 // pred_check_branch
    %52 = sbr.rel (0) target = $region45
  $region44: #{recurrent_qnet_forward.1} parent=0 // pred_region
    _
  $region45: #{recurrent_qnet_forward.1} parent=0 // pred_fallthru
    _
  // Predicated region
  $region46: #{recurrent_qnet_forward.1} parent=0 // pred_check
    _
  $region47: #{recurrent_qnet_forward.1} parent=0 // pred_check_branch
    %54 = sbr.rel (0) target = $region49
  $region48: #{recurrent_qnet_forward.1} parent=0 // pred_region
    _
  $region49: #{recurrent_qnet_forward.1} parent=0 // pred_fallthru
    _
  // Predicated region
  $region50: #{recurrent_qnet_forward.1} parent=0 // pred_check
    _
  $region51: #{recurrent_qnet_forward.1} parent=0 // pred_check_branch
    %56 = sbr.rel (0) target = $region53
  $region52: #{recurrent_qnet_forward.1} parent=0 // pred_region
    _
  $region53: #{recurrent_qnet_forward.1} parent=0 // pred_fallthru
    _
  // Predicated region
  $region54: #{recurrent_qnet_forward.1} parent=0 // pred_check
    _
  $region55: #{recurrent_qnet_forward.1} parent=0 // pred_check_branch
    %58 = sbr.rel (0) target = $region57
  $region56: #{recurrent_qnet_forward.1} parent=0 // pred_region
    _
  $region57: #{recurrent_qnet_forward.1} parent=0 // pred_fallthru
    _
  // Predicated region
  $region58: #{recurrent_qnet_forward.1} parent=0 // pred_check
    _
  $region59: #{recurrent_qnet_forward.1} parent=0 // pred_check_branch
    %60 = sbr.rel (0) target = $region61
  $region60: #{recurrent_qnet_forward.1} parent=0 // pred_region
    _
  $region61: #{recurrent_qnet_forward.1} parent=0 // pred_fallthru
    _
  // Predicated region
  $region62: #{recurrent_qnet_forward.1} parent=0 // pred_check
    _
  $region63: #{recurrent_qnet_forward.1} parent=0 // pred_check_branch
    %62 = sbr.rel (0) target = $region65
  $region64: #{recurrent_qnet_forward.1} parent=0 // pred_region
    _
  $region65: #{recurrent_qnet_forward.1} parent=0 // pred_fallthru
    _
  // Predicated region
  $region66: #{recurrent_qnet_forward.1} parent=0 // pred_check
    _
  $region67: #{recurrent_qnet_forward.1} parent=0 // pred_check_branch
    %64 = sbr.rel (0) target = $region69
  $region68: #{recurrent_qnet_forward.1} parent=0 // pred_region
    _
  $region69: #{recurrent_qnet_forward.1} parent=0 // pred_fallthru
    _
  // Predicated region
  $region70: #{recurrent_qnet_forward.1} parent=0 // pred_check
    _
  $region71: #{recurrent_qnet_forward.1} parent=0 // pred_check_branch
    %66 = sbr.rel (0) target = $region73
  $region72: #{recurrent_qnet_forward.1} parent=0 // pred_region
    _
  $region73: #{recurrent_qnet_forward.1} parent=0 // pred_fallthru
    _
  // Predicated region
  $region74: #{recurrent_qnet_forward.1} parent=0 // pred_check
    _
  $region75: #{recurrent_qnet_forward.1} parent=0 // pred_check_branch
    %68 = sbr.rel (0) target = $region77
  $region76: #{recurrent_qnet_forward.1} parent=0 // pred_region
    _
  $region77: #{recurrent_qnet_forward.1} parent=0 // pred_fallthru
    _
  // Predicated region
  $region78: #{recurrent_qnet_forward.1} parent=0 // pred_check
    _
  $region79: #{recurrent_qnet_forward.1} parent=0 // pred_check_branch
    %70 = sbr.rel (0) target = $region81
  $region80: #{recurrent_qnet_forward.1} parent=0 // pred_region
    _
  $region81: #{recurrent_qnet_forward.1} parent=0 // pred_fallthru
    _
  // Predicated region
  $region82: #{recurrent_qnet_forward.1} parent=0 // pred_check
    _
  $region83: #{recurrent_qnet_forward.1} parent=0 // pred_check_branch
    %72 = sbr.rel (0) target = $region85
  $region84: #{recurrent_qnet_forward.1} parent=0 // pred_region
    _
  $region85: #{recurrent_qnet_forward.1} parent=0 // pred_fallthru
    _
  // Predicated region
  $region86: #{recurrent_qnet_forward.1} parent=0 // pred_check
    _
  $region87: #{recurrent_qnet_forward.1} parent=0 // pred_check_branch
    %74 = sbr.rel (0) target = $region89
  $region88: #{recurrent_qnet_forward.1} parent=0 // pred_region
    _
  $region89: #{recurrent_qnet_forward.1} parent=0 // pred_fallthru
    _
  %v75 = vld [vmem:[%s0] sm:$0xff]
  %v76 = vld [vmem:[%s0 + $0x8] sm:$0xff]
  %v77 = vld [vmem:[%s0 + $0x10] sm:$0xff]
  %v78 = vld [vmem:[%s0 + $0x18] sm:$0xff]
  %v79 = vld [vmem:[%s0 + $0x20] sm:$0xff]
  %v80 = vld [vmem:[%s0 + $0x28] sm:$0xff]
  %v81 = vld [vmem:[%s0 + $0x30] sm:$0xff]
  %v82 = vld [vmem:[%s0 + $0x38] sm:$0xff]
  %v83 = vld [vmem:[%s1] sm:$0xff]
  %v84 = vld [vmem:[%s10] sm:$0x1]
  %v86 = vperm.slane %v84, 0
  %vm88 = vcmask 64512
  %v90 = vsel %vm88, %v75, 0
  %v93 = vsel %vm88, %v76, 0
  %v96 = vsel %vm88, %v77, 0
  %v99 = vsel %vm88, %v78, 0
  %v102 = vsel %vm88, %v79, 0
  %v105 = vsel %vm88, %v80, 0
  %v108 = vsel %vm88, %v81, 0
  %v111 = vsel %vm88, %v82, 0
  %113 = vmatpush.msra.mxu0 0.0
  %114 = vmatpush.msra.mxu0 0.0
  %115 = vmatpush.msra.mxu0 0.0
  %116 = vmatpush.msra.mxu0 0.0
  %117 = vmatpush.msra.mxu0 0.0
  %118 = vmatpush.msra.mxu0 0.0
  %119 = vmatpush.msra.mxu0 0.0
  %120 = vmatpush.msra.mxu0 0.0
  %121 = vmatpush.msra.mxu0 0.0
  %122 = vmatpush.msra.mxu0 0.0
  %123 = vmatpush.msra.mxu0 0.0
  %124 = vmatpush.msra.mxu0 0.0
  %125 = vmatpush.msra.mxu0 0.0
  %126 = vmatpush.msra.mxu0 0.0
  %127 = vmatpush.msra.mxu0 0.0
  %128 = vmatpush.msra.mxu0 %v83
  %129 = vmatmul.f32.gmra.mxu0 %v90
  %v130 = vpop.f32.mrf.mxu0
  %v131 = vadd.f32 %v86, %v130
  %132 = vmatmul.f32.gmra.mxu0 %v93
  %v133 = vpop.f32.mrf.mxu0
  %v134 = vadd.f32 %v86, %v133
  %135 = vmatmul.f32.gmra.mxu0 %v96
  %v136 = vpop.f32.mrf.mxu0
  %v137 = vadd.f32 %v86, %v136
  %138 = vmatmul.f32.gmra.mxu0 %v99
  %v139 = vpop.f32.mrf.mxu0
  %v140 = vadd.f32 %v86, %v139
  %141 = vmatmul.f32.gmra.mxu0 %v102
  %v142 = vpop.f32.mrf.mxu0
  %v143 = vadd.f32 %v86, %v142
  %144 = vmatmul.f32.gmra.mxu0 %v105
  %v145 = vpop.f32.mrf.mxu0
  %v146 = vadd.f32 %v86, %v145
  %147 = vmatmul.f32.gmra.mxu0 %v108
  %v148 = vpop.f32.mrf.mxu0
  %v149 = vadd.f32 %v86, %v148
  %150 = vmatmul.f32.gmra.mxu0 %v111
  %v151 = vpop.f32.mrf.mxu0
  %v152 = vadd.f32 %v86, %v151
  %153 = vdwg.mxu0
  %v154 = vld [vmem:[%s2] sm:$0xff]
  %v155 = vld [vmem:[%s11] sm:$0x1]
  %v157 = vperm.slane %v155, 0
  %159 = vmatpush.msra.mxu0 0.0
  %160 = vmatpush.msra.mxu0 0.0
  %161 = vmatpush.msra.mxu0 0.0
  %162 = vmatpush.msra.mxu0 0.0
  %163 = vmatpush.msra.mxu0 0.0
  %164 = vmatpush.msra.mxu0 0.0
  %165 = vmatpush.msra.mxu0 0.0
  %166 = vmatpush.msra.mxu0 0.0
  %167 = vmatpush.msra.mxu0 0.0
  %168 = vmatpush.msra.mxu0 0.0
  %169 = vmatpush.msra.mxu0 0.0
  %170 = vmatpush.msra.mxu0 0.0
  %171 = vmatpush.msra.mxu0 0.0
  %172 = vmatpush.msra.mxu0 0.0
  %173 = vmatpush.msra.mxu0 0.0
  %174 = vmatpush.msra.mxu0 %v154
  %175 = vmatmul.f32.gmra.mxu0 %v90
  %v176 = vpop.f32.mrf.mxu0
  %v177 = vadd.f32 %v157, %v176
  %178 = vmatmul.f32.gmra.mxu0 %v93
  %v179 = vpop.f32.mrf.mxu0
  %v180 = vadd.f32 %v157, %v179
  %181 = vmatmul.f32.gmra.mxu0 %v96
  %v182 = vpop.f32.mrf.mxu0
  %v183 = vadd.f32 %v157, %v182
  %184 = vmatmul.f32.gmra.mxu0 %v99
  %v185 = vpop.f32.mrf.mxu0
  %v186 = vadd.f32 %v157, %v185
  %187 = vmatmul.f32.gmra.mxu0 %v102
  %v188 = vpop.f32.mrf.mxu0
  %v189 = vadd.f32 %v157, %v188
  %190 = vmatmul.f32.gmra.mxu0 %v105
  %v191 = vpop.f32.mrf.mxu0
  %v192 = vadd.f32 %v157, %v191
  %193 = vmatmul.f32.gmra.mxu0 %v108
  %v194 = vpop.f32.mrf.mxu0
  %v195 = vadd.f32 %v157, %v194
  %196 = vmatmul.f32.gmra.mxu0 %v111
  %v197 = vpop.f32.mrf.mxu0
  %v198 = vadd.f32 %v157, %v197
  %199 = vdwg.mxu0
  %v200 = vld [vmem:[%s3] sm:$0xff]
  %v201 = vld [vmem:[%s12] sm:$0x1]
  %v203 = vperm.slane %v201, 0
  %205 = vmatpush.msra.mxu0 0.0
  %206 = vmatpush.msra.mxu0 0.0
  %207 = vmatpush.msra.mxu0 0.0
  %208 = vmatpush.msra.mxu0 0.0
  %209 = vmatpush.msra.mxu0 0.0
  %210 = vmatpush.msra.mxu0 0.0
  %211 = vmatpush.msra.mxu0 0.0
  %212 = vmatpush.msra.mxu0 0.0
  %213 = vmatpush.msra.mxu0 0.0
  %214 = vmatpush.msra.mxu0 0.0
  %215 = vmatpush.msra.mxu0 0.0
  %216 = vmatpush.msra.mxu0 0.0
  %217 = vmatpush.msra.mxu0 0.0
  %218 = vmatpush.msra.mxu0 0.0
  %219 = vmatpush.msra.mxu0 0.0
  %220 = vmatpush.msra.mxu0 %v200
  %221 = vmatmul.f32.gmra.mxu0 %v90
  %v222 = vpop.f32.mrf.mxu0
  %v223 = vadd.f32 %v203, %v222
  %224 = vmatmul.f32.gmra.mxu0 %v93
  %v225 = vpop.f32.mrf.mxu0
  %v226 = vadd.f32 %v203, %v225
  %227 = vmatmul.f32.gmra.mxu0 %v96
  %v228 = vpop.f32.mrf.mxu0
  %v229 = vadd.f32 %v203, %v228
  %230 = vmatmul.f32.gmra.mxu0 %v99
  %v231 = vpop.f32.mrf.mxu0
  %v232 = vadd.f32 %v203, %v231
  %233 = vmatmul.f32.gmra.mxu0 %v102
  %v234 = vpop.f32.mrf.mxu0
  %v235 = vadd.f32 %v203, %v234
  %236 = vmatmul.f32.gmra.mxu0 %v105
  %v237 = vpop.f32.mrf.mxu0
  %v238 = vadd.f32 %v203, %v237
  %239 = vmatmul.f32.gmra.mxu0 %v108
  %v240 = vpop.f32.mrf.mxu0
  %v241 = vadd.f32 %v203, %v240
  %242 = vmatmul.f32.gmra.mxu0 %v111
  %v243 = vpop.f32.mrf.mxu0
  %v244 = vadd.f32 %v203, %v243
  %245 = vdwg.mxu0
  %v246 = vld [vmem:[%s7] sm:$0xff]
  %v247 = vld [vmem:[%s7 + $0x8] sm:$0xff]
  %v248 = vld [vmem:[%s7 + $0x10] sm:$0xff]
  %v249 = vld [vmem:[%s7 + $0x18] sm:$0xff]
  %v250 = vld [vmem:[%s8] sm:$0xff]
  %v251 = vld [vmem:[%s8 + $0x8] sm:$0xff]
  %v252 = vld [vmem:[%s8 + $0x10] sm:$0xff]
  %v253 = vld [vmem:[%s8 + $0x18] sm:$0xff]
  %v254 = vld [vmem:[%s9] sm:$0xff]
  %v255 = vld [vmem:[%s9 + $0x8] sm:$0xff]
  %v256 = vld [vmem:[%s9 + $0x10] sm:$0xff]
  %v257 = vld [vmem:[%s9 + $0x18] sm:$0xff]
  %v258 = vld [vmem:[%s4] sm:$0xff]
  %v259 = vld [vmem:[%s5] sm:$0xff]
  %v260 = vld [vmem:[%s6] sm:$0xff]
  %v261 = vld [vmem:[%s14] sm:$0xff]
  %v262 = vld [vmem:[%s14 + $0x8] sm:$0xff]
  %v263 = vld [vmem:[%s14 + $0x10] sm:$0xff]
  %v264 = vld [vmem:[%s14 + $0x18] sm:$0xff]
  %v265 = vld [vmem:[%s15] sm:$0x1]
  %v266 = vld [vmem:[%s16] sm:$0xff]
  %v267 = vld [vmem:[%s16 + $0x8] sm:$0xff]
  %v268 = vld [vmem:[%s16 + $0x10] sm:$0xff]
  %v269 = vld [vmem:[%s16 + $0x18] sm:$0xff]
  %v270 = vld [vmem:[%s17] sm:$0x1]
  %v271 = vld [vmem:[%s13] sm:$0x1]
  %vm272 = vcmask 261120
  %v274 = vsel %vm272, 0.0, 0
  %276 = vmatpush.msra.mxu0 0.0
  %277 = vmatpush.msra.mxu0 0.0
  %278 = vmatpush.msra.mxu0 0.0
  %279 = vmatpush.msra.mxu0 0.0
  %280 = vmatpush.msra.mxu0 0.0
  %281 = vmatpush.msra.mxu0 0.0
  %282 = vmatpush.msra.mxu0 0.0
  %283 = vmatpush.msra.mxu0 0.0
  %284 = vmatpush.msra.mxu0 0.0
  %285 = vmatpush.msra.mxu0 0.0
  %286 = vmatpush.msra.mxu0 0.0
  %287 = vmatpush.msra.mxu0 0.0
  %288 = vmatpush.msra.mxu0 %v249
  %289 = vmatpush.msra.mxu0 %v248
  %290 = vmatpush.msra.mxu0 %v247
  %291 = vmatpush.msra.mxu0 %v246
  %292 = vmatmul.f32.gmra.mxu0 %v274
  %v293 = vpop.f32.mrf.mxu0
  %v294 = vadd.f32 0.0, %v293
  %295 = vdwg.mxu0
  %296 = vmatpush.msra.mxu0 0.0
  %297 = vmatpush.msra.mxu0 0.0
  %298 = vmatpush.msra.mxu0 0.0
  %299 = vmatpush.msra.mxu0 0.0
  %300 = vmatpush.msra.mxu0 0.0
  %301 = vmatpush.msra.mxu0 0.0
  %302 = vmatpush.msra.mxu0 0.0
  %303 = vmatpush.msra.mxu0 0.0
  %304 = vmatpush.msra.mxu0 0.0
  %305 = vmatpush.msra.mxu0 0.0
  %306 = vmatpush.msra.mxu0 0.0
  %307 = vmatpush.msra.mxu0 0.0
  %308 = vmatpush.msra.mxu0 %v253
  %309 = vmatpush.msra.mxu0 %v252
  %310 = vmatpush.msra.mxu0 %v251
  %311 = vmatpush.msra.mxu0 %v250
  %312 = vmatmul.f32.gmra.mxu0 %v274
  %v313 = vpop.f32.mrf.mxu0
  %v314 = vadd.f32 0.0, %v313
  %315 = vdwg.mxu0
  %v317 = vperm.slane %v271, 0
  %319 = vmatpush.msra.mxu0 0.0
  %320 = vmatpush.msra.mxu0 0.0
  %321 = vmatpush.msra.mxu0 0.0
  %322 = vmatpush.msra.mxu0 0.0
  %323 = vmatpush.msra.mxu0 0.0
  %324 = vmatpush.msra.mxu0 0.0
  %325 = vmatpush.msra.mxu0 0.0
  %326 = vmatpush.msra.mxu0 0.0
  %327 = vmatpush.msra.mxu0 0.0
  %328 = vmatpush.msra.mxu0 0.0
  %329 = vmatpush.msra.mxu0 0.0
  %330 = vmatpush.msra.mxu0 0.0
  %331 = vmatpush.msra.mxu0 %v257
  %332 = vmatpush.msra.mxu0 %v256
  %333 = vmatpush.msra.mxu0 %v255
  %334 = vmatpush.msra.mxu0 %v254
  %335 = vmatmul.f32.gmra.mxu0 %v274
  %v336 = vpop.f32.mrf.mxu0
  %v337 = vadd.f32 %v317, %v336
  %338 = vdwg.mxu0
  %v339 = vsel %vm88, 0.0, 0
  %341 = vmatpush.msra.mxu0 0.0
  %342 = vmatpush.msra.mxu0 0.0
  %343 = vmatpush.msra.mxu0 0.0
  %344 = vmatpush.msra.mxu0 0.0
  %345 = vmatpush.msra.mxu0 0.0
  %346 = vmatpush.msra.mxu0 0.0
  %347 = vmatpush.msra.mxu0 0.0
  %348 = vmatpush.msra.mxu0 0.0
  %349 = vmatpush.msra.mxu0 0.0
  %350 = vmatpush.msra.mxu0 0.0
  %351 = vmatpush.msra.mxu0 0.0
  %352 = vmatpush.msra.mxu0 0.0
  %353 = vmatpush.msra.mxu0 0.0
  %354 = vmatpush.msra.mxu0 0.0
  %355 = vmatpush.msra.mxu0 0.0
  %356 = vmatpush.msra.mxu0 %v258
  %357 = vmatmul.f32.gmra.mxu0 %v339
  %v358 = vpop.f32.mrf.mxu0
  %v359 = vadd.f32 0.0, %v358
  %360 = vdwg.mxu0
  %361 = vmatpush.msra.mxu0 0.0
  %362 = vmatpush.msra.mxu0 0.0
  %363 = vmatpush.msra.mxu0 0.0
  %364 = vmatpush.msra.mxu0 0.0
  %365 = vmatpush.msra.mxu0 0.0
  %366 = vmatpush.msra.mxu0 0.0
  %367 = vmatpush.msra.mxu0 0.0
  %368 = vmatpush.msra.mxu0 0.0
  %369 = vmatpush.msra.mxu0 0.0
  %370 = vmatpush.msra.mxu0 0.0
  %371 = vmatpush.msra.mxu0 0.0
  %372 = vmatpush.msra.mxu0 0.0
  %373 = vmatpush.msra.mxu0 0.0
  %374 = vmatpush.msra.mxu0 0.0
  %375 = vmatpush.msra.mxu0 0.0
  %376 = vmatpush.msra.mxu0 %v259
  %377 = vmatmul.f32.gmra.mxu0 %v339
  %v378 = vpop.f32.mrf.mxu0
  %v379 = vadd.f32 0.0, %v378
  %380 = vdwg.mxu0
  %381 = vmatpush.msra.mxu0 0.0
  %382 = vmatpush.msra.mxu0 0.0
  %383 = vmatpush.msra.mxu0 0.0
  %384 = vmatpush.msra.mxu0 0.0
  %385 = vmatpush.msra.mxu0 0.0
  %386 = vmatpush.msra.mxu0 0.0
  %387 = vmatpush.msra.mxu0 0.0
  %388 = vmatpush.msra.mxu0 0.0
  %389 = vmatpush.msra.mxu0 0.0
  %390 = vmatpush.msra.mxu0 0.0
  %391 = vmatpush.msra.mxu0 0.0
  %392 = vmatpush.msra.mxu0 0.0
  %393 = vmatpush.msra.mxu0 0.0
  %394 = vmatpush.msra.mxu0 0.0
  %395 = vmatpush.msra.mxu0 0.0
  %396 = vmatpush.msra.mxu0 %v260
  %397 = vmatmul.f32.gmra.mxu0 %v339
  %v398 = vpop.f32.mrf.mxu0
  %v399 = vadd.f32 0.0, %v398
  %400 = vdwg.mxu0
  %v401 = vadd.f32 %v131, %v359
  %v402 = vadd.f32 %v401, %v294
  %v403 = vxor.u32 %v402, 2147483648
  %v404 = vmul.f32 %v403, 1.442695
  %v405 = vpow.pop %v404
  %v406 = vadd.f32 %v405, 1.0
  %v407 = vrcp.pop %v406
  %v408 = vmul.f32 %v406, %v407
  %v409 = vsub.f32 1.0, %v408
  %v410 = vmul.f32 %v407, %v409
  %v411 = vadd.f32 %v407, %v410
  %vm412 = vweird.f32 %v406
  %vm413 = vweird.f32 %v407
  %vm414 = vmor %vm412, %vm413
  %v415 = vsel %vm414, %v407, %v411
  %v416 = vand.u32 2147483647, %v406
  %vm417 = vcmp.eq.f32.partialorder %v416, 8.507059e+37
  %v418 = vand.u32 %v406, 2147483648
  %v419 = vor.u32 1.1754944e-38, %v418
  %v420 = vsel %vm417, %v419, %v415
  %v421 = vmul.f32 1.0, %v420
  %v422 = vadd.f32 %v177, %v379
  %v423 = vadd.f32 %v422, %v314
  %v424 = vxor.u32 %v423, 2147483648
  %v425 = vmul.f32 %v424, 1.442695
  %v426 = vpow.pop %v425
  %v427 = vadd.f32 %v426, 1.0
  %v428 = vrcp.pop %v427
  %v429 = vmul.f32 %v427, %v428
  %v430 = vsub.f32 1.0, %v429
  %v431 = vmul.f32 %v428, %v430
  %v432 = vadd.f32 %v428, %v431
  %vm433 = vweird.f32 %v427
  %vm434 = vweird.f32 %v428
  %vm435 = vmor %vm433, %vm434
  %v436 = vsel %vm435, %v428, %v432
  %v437 = vand.u32 2147483647, %v427
  %vm438 = vcmp.eq.f32.partialorder %v437, 8.507059e+37
  %v439 = vand.u32 %v427, 2147483648
  %v440 = vor.u32 1.1754944e-38, %v439
  %v441 = vsel %vm438, %v440, %v436
  %v442 = vmul.f32 1.0, %v441
  %v443 = vadd.f32 %v223, %v399
  %v444 = vmul.f32 %v421, %v337
  %v445 = vadd.f32 %v443, %v444
  %v446 = vtanh.pop %v445
  %v447 = vsub.f32 1.0, %v442
  %v448 = vmul.f32 %v447, %v446
  %v449 = vmul.f32 %v442, 0.0
  %v450 = vadd.f32 %v448, %v449
  %v452 = vperm.slane %v265, 0
  %v455 = vsel %vm272, %v450, 0
  %457 = vmatpush.msra.mxu0 0.0
  %458 = vmatpush.msra.mxu0 0.0
  %459 = vmatpush.msra.mxu0 0.0
  %460 = vmatpush.msra.mxu0 0.0
  %461 = vmatpush.msra.mxu0 0.0
  %462 = vmatpush.msra.mxu0 0.0
  %463 = vmatpush.msra.mxu0 0.0
  %464 = vmatpush.msra.mxu0 0.0
  %465 = vmatpush.msra.mxu0 0.0
  %466 = vmatpush.msra.mxu0 0.0
  %467 = vmatpush.msra.mxu0 0.0
  %468 = vmatpush.msra.mxu0 0.0
  %469 = vmatpush.msra.mxu0 %v264
  %470 = vmatpush.msra.mxu0 %v263
  %471 = vmatpush.msra.mxu0 %v262
  %472 = vmatpush.msra.mxu0 %v261
  %473 = vmatmul.f32.gmra.mxu0 %v455
  %v474 = vpop.f32.mrf.mxu0
  %v475 = vadd.f32 %v452, %v474
  %476 = vdwg.mxu0
  %v477 = vmax.f32 %v475, 0.0
  %v479 = vperm.slane %v270, 0
  %v482 = vsel %vm272, %v477, 0
  %484 = vmatpush.msra.mxu0 0.0
  %485 = vmatpush.msra.mxu0 0.0
  %486 = vmatpush.msra.mxu0 0.0
  %487 = vmatpush.msra.mxu0 0.0
  %488 = vmatpush.msra.mxu0 0.0
  %489 = vmatpush.msra.mxu0 0.0
  %490 = vmatpush.msra.mxu0 0.0
  %491 = vmatpush.msra.mxu0 0.0
  %492 = vmatpush.msra.mxu0 0.0
  %493 = vmatpush.msra.mxu0 0.0
  %494 = vmatpush.msra.mxu0 0.0
  %495 = vmatpush.msra.mxu0 0.0
  %496 = vmatpush.msra.mxu0 %v269
  %497 = vmatpush.msra.mxu0 %v268
  %498 = vmatpush.msra.mxu0 %v267
  %499 = vmatpush.msra.mxu0 %v266
  %500 = vmatmul.f32.gmra.mxu0 %v482
  %v501 = vpop.f32.mrf.mxu0
  %v502 = vadd.f32 %v479, %v501
  %503 = vdwg.mxu0
  %504 = vst.msk [vmem:[#allocation2] sm:$0xff] %vm272, %v450
  %505 = vst.msk [vmem:[%s23] sm:$0xff] %vm88, %v502
  %506 = vmatpush.msra.mxu0 0.0
  %507 = vmatpush.msra.mxu0 0.0
  %508 = vmatpush.msra.mxu0 0.0
  %509 = vmatpush.msra.mxu0 0.0
  %510 = vmatpush.msra.mxu0 0.0
  %511 = vmatpush.msra.mxu0 0.0
  %512 = vmatpush.msra.mxu0 0.0
  %513 = vmatpush.msra.mxu0 0.0
  %514 = vmatpush.msra.mxu0 0.0
  %515 = vmatpush.msra.mxu0 0.0
  %516 = vmatpush.msra.mxu0 0.0
  %517 = vmatpush.msra.mxu0 0.0
  %518 = vmatpush.msra.mxu0 %v249
  %519 = vmatpush.msra.mxu0 %v248
  %520 = vmatpush.msra.mxu0 %v247
  %521 = vmatpush.msra.mxu0 %v246
  %522 = vmatmul.f32.gmra.mxu0 %v455
  %v523 = vpop.f32.mrf.mxu0
  %v524 = vadd.f32 0.0, %v523
  %525 = vdwg.mxu0
  %526 = vmatpush.msra.mxu0 0.0
  %527 = vmatpush.msra.mxu0 0.0
  %528 = vmatpush.msra.mxu0 0.0
  %529 = vmatpush.msra.mxu0 0.0
  %530 = vmatpush.msra.mxu0 0.0
  %531 = vmatpush.msra.mxu0 0.0
  %532 = vmatpush.msra.mxu0 0.0
  %533 = vmatpush.msra.mxu0 0.0
  %534 = vmatpush.msra.mxu0 0.0
  %535 = vmatpush.msra.mxu0 0.0
  %536 = vmatpush.msra.mxu0 0.0
  %537 = vmatpush.msra.mxu0 0.0
  %538 = vmatpush.msra.mxu0 %v253
  %539 = vmatpush.msra.mxu0 %v252
  %540 = vmatpush.msra.mxu0 %v251
  %541 = vmatpush.msra.mxu0 %v250
  %542 = vmatmul.f32.gmra.mxu0 %v455
  %v543 = vpop.f32.mrf.mxu0
  %v544 = vadd.f32 0.0, %v543
  %545 = vdwg.mxu0
  %546 = vmatpush.msra.mxu0 0.0
  %547 = vmatpush.msra.mxu0 0.0
  %548 = vmatpush.msra.mxu0 0.0
  %549 = vmatpush.msra.mxu0 0.0
  %550 = vmatpush.msra.mxu0 0.0
  %551 = vmatpush.msra.mxu0 0.0
  %552 = vmatpush.msra.mxu0 0.0
  %553 = vmatpush.msra.mxu0 0.0
  %554 = vmatpush.msra.mxu0 0.0
  %555 = vmatpush.msra.mxu0 0.0
  %556 = vmatpush.msra.mxu0 0.0
  %557 = vmatpush.msra.mxu0 0.0
  %558 = vmatpush.msra.mxu0 %v257
  %559 = vmatpush.msra.mxu0 %v256
  %560 = vmatpush.msra.mxu0 %v255
  %561 = vmatpush.msra.mxu0 %v254
  %562 = vmatmul.f32.gmra.mxu0 %v455
  %v563 = vpop.f32.mrf.mxu0
  %v564 = vadd.f32 %v317, %v563
  %565 = vdwg.mxu0
  %v567 = vsel %vm88, %v502, 0
  %569 = vmatpush.msra.mxu0 0.0
  %570 = vmatpush.msra.mxu0 0.0
  %571 = vmatpush.msra.mxu0 0.0
  %572 = vmatpush.msra.mxu0 0.0
  %573 = vmatpush.msra.mxu0 0.0
  %574 = vmatpush.msra.mxu0 0.0
  %575 = vmatpush.msra.mxu0 0.0
  %576 = vmatpush.msra.mxu0 0.0
  %577 = vmatpush.msra.mxu0 0.0
  %578 = vmatpush.msra.mxu0 0.0
  %579 = vmatpush.msra.mxu0 0.0
  %580 = vmatpush.msra.mxu0 0.0
  %581 = vmatpush.msra.mxu0 0.0
  %582 = vmatpush.msra.mxu0 0.0
  %583 = vmatpush.msra.mxu0 0.0
  %584 = vmatpush.msra.mxu0 %v258
  %585 = vmatmul.f32.gmra.mxu0 %v567
  %v586 = vpop.f32.mrf.mxu0
  %v587 = vadd.f32 0.0, %v586
  %588 = vdwg.mxu0
  %589 = vmatpush.msra.mxu0 0.0
  %590 = vmatpush.msra.mxu0 0.0
  %591 = vmatpush.msra.mxu0 0.0
  %592 = vmatpush.msra.mxu0 0.0
  %593 = vmatpush.msra.mxu0 0.0
  %594 = vmatpush.msra.mxu0 0.0
  %595 = vmatpush.msra.mxu0 0.0
  %596 = vmatpush.msra.mxu0 0.0
  %597 = vmatpush.msra.mxu0 0.0
  %598 = vmatpush.msra.mxu0 0.0
  %599 = vmatpush.msra.mxu0 0.0
  %600 = vmatpush.msra.mxu0 0.0
  %601 = vmatpush.msra.mxu0 0.0
  %602 = vmatpush.msra.mxu0 0.0
  %603 = vmatpush.msra.mxu0 0.0
  %604 = vmatpush.msra.mxu0 %v259
  %605 = vmatmul.f32.gmra.mxu0 %v567
  %v606 = vpop.f32.mrf.mxu0
  %v607 = vadd.f32 0.0, %v606
  %608 = vdwg.mxu0
  %609 = vmatpush.msra.mxu0 0.0
  %610 = vmatpush.msra.mxu0 0.0
  %611 = vmatpush.msra.mxu0 0.0
  %612 = vmatpush.msra.mxu0 0.0
  %613 = vmatpush.msra.mxu0 0.0
  %614 = vmatpush.msra.mxu0 0.0
  %615 = vmatpush.msra.mxu0 0.0
  %616 = vmatpush.msra.mxu0 0.0
  %617 = vmatpush.msra.mxu0 0.0
  %618 = vmatpush.msra.mxu0 0.0
  %619 = vmatpush.msra.mxu0 0.0
  %620 = vmatpush.msra.mxu0 0.0
  %621 = vmatpush.msra.mxu0 0.0
  %622 = vmatpush.msra.mxu0 0.0
  %623 = vmatpush.msra.mxu0 0.0
  %624 = vmatpush.msra.mxu0 %v260
  %625 = vmatmul.f32.gmra.mxu0 %v567
  %v626 = vpop.f32.mrf.mxu0
  %v627 = vadd.f32 0.0, %v626
  %628 = vdwg.mxu0
  %v629 = vadd.f32 %v134, %v587
  %v630 = vadd.f32 %v629, %v524
  %v631 = vxor.u32 %v630, 2147483648
  %v632 = vmul.f32 %v631, 1.442695
  %v633 = vpow.pop %v632
  %v634 = vadd.f32 %v633, 1.0
  %v635 = vrcp.pop %v634
  %v636 = vmul.f32 %v634, %v635
  %v637 = vsub.f32 1.0, %v636
  %v638 = vmul.f32 %v635, %v637
  %v639 = vadd.f32 %v635, %v638
  %vm640 = vweird.f32 %v634
  %vm641 = vweird.f32 %v635
  %vm642 = vmor %vm640, %vm641
  %v643 = vsel %vm642, %v635, %v639
  %v644 = vand.u32 2147483647, %v634
  %vm645 = vcmp.eq.f32.partialorder %v644, 8.507059e+37
  %v646 = vand.u32 %v634, 2147483648
  %v647 = vor.u32 1.1754944e-38, %v646
  %v648 = vsel %vm645, %v647, %v643
  %v649 = vmul.f32 1.0, %v648
  %v650 = vadd.f32 %v180, %v607
  %v651 = vadd.f32 %v650, %v544
  %v652 = vxor.u32 %v651, 2147483648
  %v653 = vmul.f32 %v652, 1.442695
  %v654 = vpow.pop %v653
  %v655 = vadd.f32 %v654, 1.0
  %v656 = vrcp.pop %v655
  %v657 = vmul.f32 %v655, %v656
  %v658 = vsub.f32 1.0, %v657
  %v659 = vmul.f32 %v656, %v658
  %v660 = vadd.f32 %v656, %v659
  %vm661 = vweird.f32 %v655
  %vm662 = vweird.f32 %v656
  %vm663 = vmor %vm661, %vm662
  %v664 = vsel %vm663, %v656, %v660
  %v665 = vand.u32 2147483647, %v655
  %vm666 = vcmp.eq.f32.partialorder %v665, 8.507059e+37
  %v667 = vand.u32 %v655, 2147483648
  %v668 = vor.u32 1.1754944e-38, %v667
  %v669 = vsel %vm666, %v668, %v664
  %v670 = vmul.f32 1.0, %v669
  %v671 = vadd.f32 %v226, %v627
  %v672 = vmul.f32 %v649, %v564
  %v673 = vadd.f32 %v671, %v672
  %v674 = vtanh.pop %v673
  %v675 = vsub.f32 1.0, %v670
  %v676 = vmul.f32 %v675, %v674
  %v677 = vmul.f32 %v670, %v450
  %v678 = vadd.f32 %v676, %v677
  %v680 = vsel %vm272, %v678, 0
  %682 = vmatpush.msra.mxu0 0.0
  %683 = vmatpush.msra.mxu0 0.0
  %684 = vmatpush.msra.mxu0 0.0
  %685 = vmatpush.msra.mxu0 0.0
  %686 = vmatpush.msra.mxu0 0.0
  %687 = vmatpush.msra.mxu0 0.0
  %688 = vmatpush.msra.mxu0 0.0
  %689 = vmatpush.msra.mxu0 0.0
  %690 = vmatpush.msra.mxu0 0.0
  %691 = vmatpush.msra.mxu0 0.0
  %692 = vmatpush.msra.mxu0 0.0
  %693 = vmatpush.msra.mxu0 0.0
  %694 = vmatpush.msra.mxu0 %v264
  %695 = vmatpush.msra.mxu0 %v263
  %696 = vmatpush.msra.mxu0 %v262
  %697 = vmatpush.msra.mxu0 %v261
  %698 = vmatmul.f32.gmra.mxu0 %v680
  %v699 = vpop.f32.mrf.mxu0
  %v700 = vadd.f32 %v452, %v699
  %701 = vdwg.mxu0
  %v702 = vmax.f32 %v700, 0.0
  %v704 = vsel %vm272, %v702, 0
  %706 = vmatpush.msra.mxu0 0.0
  %707 = vmatpush.msra.mxu0 0.0
  %708 = vmatpush.msra.mxu0 0.0
  %709 = vmatpush.msra.mxu0 0.0
  %710 = vmatpush.msra.mxu0 0.0
  %711 = vmatpush.msra.mxu0 0.0
  %712 = vmatpush.msra.mxu0 0.0
  %713 = vmatpush.msra.mxu0 0.0
  %714 = vmatpush.msra.mxu0 0.0
  %715 = vmatpush.msra.mxu0 0.0
  %716 = vmatpush.msra.mxu0 0.0
  %717 = vmatpush.msra.mxu0 0.0
  %718 = vmatpush.msra.mxu0 %v269
  %719 = vmatpush.msra.mxu0 %v268
  %720 = vmatpush.msra.mxu0 %v267
  %721 = vmatpush.msra.mxu0 %v266
  %722 = vmatmul.f32.gmra.mxu0 %v704
  %v723 = vpop.f32.mrf.mxu0
  %v724 = vadd.f32 %v479, %v723
  %725 = vdwg.mxu0
  %726 = vst.msk [vmem:[#allocation2 + $0x8] sm:$0xff] %vm272, %v678
  %727 = vst.msk [vmem:[%s23 + $0x8] sm:$0xff] %vm88, %v724
  %728 = vmatpush.msra.mxu0 0.0
  %729 = vmatpush.msra.mxu0 0.0
  %730 = vmatpush.msra.mxu0 0.0
  %731 = vmatpush.msra.mxu0 0.0
  %732 = vmatpush.msra.mxu0 0.0
  %733 = vmatpush.msra.mxu0 0.0
  %734 = vmatpush.msra.mxu0 0.0
  %735 = vmatpush.msra.mxu0 0.0
  %736 = vmatpush.msra.mxu0 0.0
  %737 = vmatpush.msra.mxu0 0.0
  %738 = vmatpush.msra.mxu0 0.0
  %739 = vmatpush.msra.mxu0 0.0
  %740 = vmatpush.msra.mxu0 %v249
  %741 = vmatpush.msra.mxu0 %v248
  %742 = vmatpush.msra.mxu0 %v247
  %743 = vmatpush.msra.mxu0 %v246
  %744 = vmatmul.f32.gmra.mxu0 %v680
  %v745 = vpop.f32.mrf.mxu0
  %v746 = vadd.f32 0.0, %v745
  %747 = vdwg.mxu0
  %748 = vmatpush.msra.mxu0 0.0
  %749 = vmatpush.msra.mxu0 0.0
  %750 = vmatpush.msra.mxu0 0.0
  %751 = vmatpush.msra.mxu0 0.0
  %752 = vmatpush.msra.mxu0 0.0
  %753 = vmatpush.msra.mxu0 0.0
  %754 = vmatpush.msra.mxu0 0.0
  %755 = vmatpush.msra.mxu0 0.0
  %756 = vmatpush.msra.mxu0 0.0
  %757 = vmatpush.msra.mxu0 0.0
  %758 = vmatpush.msra.mxu0 0.0
  %759 = vmatpush.msra.mxu0 0.0
  %760 = vmatpush.msra.mxu0 %v253
  %761 = vmatpush.msra.mxu0 %v252
  %762 = vmatpush.msra.mxu0 %v251
  %763 = vmatpush.msra.mxu0 %v250
  %764 = vmatmul.f32.gmra.mxu0 %v680
  %v765 = vpop.f32.mrf.mxu0
  %v766 = vadd.f32 0.0, %v765
  %767 = vdwg.mxu0
  %768 = vmatpush.msra.mxu0 0.0
  %769 = vmatpush.msra.mxu0 0.0
  %770 = vmatpush.msra.mxu0 0.0
  %771 = vmatpush.msra.mxu0 0.0
  %772 = vmatpush.msra.mxu0 0.0
  %773 = vmatpush.msra.mxu0 0.0
  %774 = vmatpush.msra.mxu0 0.0
  %775 = vmatpush.msra.mxu0 0.0
  %776 = vmatpush.msra.mxu0 0.0
  %777 = vmatpush.msra.mxu0 0.0
  %778 = vmatpush.msra.mxu0 0.0
  %779 = vmatpush.msra.mxu0 0.0
  %780 = vmatpush.msra.mxu0 %v257
  %781 = vmatpush.msra.mxu0 %v256
  %782 = vmatpush.msra.mxu0 %v255
  %783 = vmatpush.msra.mxu0 %v254
  %784 = vmatmul.f32.gmra.mxu0 %v680
  %v785 = vpop.f32.mrf.mxu0
  %v786 = vadd.f32 %v317, %v785
  %787 = vdwg.mxu0
  %v789 = vsel %vm88, %v724, 0
  %791 = vmatpush.msra.mxu0 0.0
  %792 = vmatpush.msra.mxu0 0.0
  %793 = vmatpush.msra.mxu0 0.0
  %794 = vmatpush.msra.mxu0 0.0
  %795 = vmatpush.msra.mxu0 0.0
  %796 = vmatpush.msra.mxu0 0.0
  %797 = vmatpush.msra.mxu0 0.0
  %798 = vmatpush.msra.mxu0 0.0
  %799 = vmatpush.msra.mxu0 0.0
  %800 = vmatpush.msra.mxu0 0.0
  %801 = vmatpush.msra.mxu0 0.0
  %802 = vmatpush.msra.mxu0 0.0
  %803 = vmatpush.msra.mxu0 0.0
  %804 = vmatpush.msra.mxu0 0.0
  %805 = vmatpush.msra.mxu0 0.0
  %806 = vmatpush.msra.mxu0 %v258
  %807 = vmatmul.f32.gmra.mxu0 %v789
  %v808 = vpop.f32.mrf.mxu0
  %v809 = vadd.f32 0.0, %v808
  %810 = vdwg.mxu0
  %811 = vmatpush.msra.mxu0 0.0
  %812 = vmatpush.msra.mxu0 0.0
  %813 = vmatpush.msra.mxu0 0.0
  %814 = vmatpush.msra.mxu0 0.0
  %815 = vmatpush.msra.mxu0 0.0
  %816 = vmatpush.msra.mxu0 0.0
  %817 = vmatpush.msra.mxu0 0.0
  %818 = vmatpush.msra.mxu0 0.0
  %819 = vmatpush.msra.mxu0 0.0
  %820 = vmatpush.msra.mxu0 0.0
  %821 = vmatpush.msra.mxu0 0.0
  %822 = vmatpush.msra.mxu0 0.0
  %823 = vmatpush.msra.mxu0 0.0
  %824 = vmatpush.msra.mxu0 0.0
  %825 = vmatpush.msra.mxu0 0.0
  %826 = vmatpush.msra.mxu0 %v259
  %827 = vmatmul.f32.gmra.mxu0 %v789
  %v828 = vpop.f32.mrf.mxu0
  %v829 = vadd.f32 0.0, %v828
  %830 = vdwg.mxu0
  %831 = vmatpush.msra.mxu0 0.0
  %832 = vmatpush.msra.mxu0 0.0
  %833 = vmatpush.msra.mxu0 0.0
  %834 = vmatpush.msra.mxu0 0.0
  %835 = vmatpush.msra.mxu0 0.0
  %836 = vmatpush.msra.mxu0 0.0
  %837 = vmatpush.msra.mxu0 0.0
  %838 = vmatpush.msra.mxu0 0.0
  %839 = vmatpush.msra.mxu0 0.0
  %840 = vmatpush.msra.mxu0 0.0
  %841 = vmatpush.msra.mxu0 0.0
  %842 = vmatpush.msra.mxu0 0.0
  %843 = vmatpush.msra.mxu0 0.0
  %844 = vmatpush.msra.mxu0 0.0
  %845 = vmatpush.msra.mxu0 0.0
  %846 = vmatpush.msra.mxu0 %v260
  %847 = vmatmul.f32.gmra.mxu0 %v789
  %v848 = vpop.f32.mrf.mxu0
  %v849 = vadd.f32 0.0, %v848
  %850 = vdwg.mxu0
  %v851 = vadd.f32 %v137, %v809
  %v852 = vadd.f32 %v851, %v746
  %v853 = vxor.u32 %v852, 2147483648
  %v854 = vmul.f32 %v853, 1.442695
  %v855 = vpow.pop %v854
  %v856 = vadd.f32 %v855, 1.0
  %v857 = vrcp.pop %v856
  %v858 = vmul.f32 %v856, %v857
  %v859 = vsub.f32 1.0, %v858
  %v860 = vmul.f32 %v857, %v859
  %v861 = vadd.f32 %v857, %v860
  %vm862 = vweird.f32 %v856
  %vm863 = vweird.f32 %v857
  %vm864 = vmor %vm862, %vm863
  %v865 = vsel %vm864, %v857, %v861
  %v866 = vand.u32 2147483647, %v856
  %vm867 = vcmp.eq.f32.partialorder %v866, 8.507059e+37
  %v868 = vand.u32 %v856, 2147483648
  %v869 = vor.u32 1.1754944e-38, %v868
  %v870 = vsel %vm867, %v869, %v865
  %v871 = vmul.f32 1.0, %v870
  %v872 = vadd.f32 %v183, %v829
  %v873 = vadd.f32 %v872, %v766
  %v874 = vxor.u32 %v873, 2147483648
  %v875 = vmul.f32 %v874, 1.442695
  %v876 = vpow.pop %v875
  %v877 = vadd.f32 %v876, 1.0
  %v878 = vrcp.pop %v877
  %v879 = vmul.f32 %v877, %v878
  %v880 = vsub.f32 1.0, %v879
  %v881 = vmul.f32 %v878, %v880
  %v882 = vadd.f32 %v878, %v881
  %vm883 = vweird.f32 %v877
  %vm884 = vweird.f32 %v878
  %vm885 = vmor %vm883, %vm884
  %v886 = vsel %vm885, %v878, %v882
  %v887 = vand.u32 2147483647, %v877
  %vm888 = vcmp.eq.f32.partialorder %v887, 8.507059e+37
  %v889 = vand.u32 %v877, 2147483648
  %v890 = vor.u32 1.1754944e-38, %v889
  %v891 = vsel %vm888, %v890, %v886
  %v892 = vmul.f32 1.0, %v891
  %v893 = vadd.f32 %v229, %v849
  %v894 = vmul.f32 %v871, %v786
  %v895 = vadd.f32 %v893, %v894
  %v896 = vtanh.pop %v895
  %v897 = vsub.f32 1.0, %v892
  %v898 = vmul.f32 %v897, %v896
  %v899 = vmul.f32 %v892, %v678
  %v900 = vadd.f32 %v898, %v899
  %v902 = vsel %vm272, %v900, 0
  %904 = vmatpush.msra.mxu0 0.0
  %905 = vmatpush.msra.mxu0 0.0
  %906 = vmatpush.msra.mxu0 0.0
  %907 = vmatpush.msra.mxu0 0.0
  %908 = vmatpush.msra.mxu0 0.0
  %909 = vmatpush.msra.mxu0 0.0
  %910 = vmatpush.msra.mxu0 0.0
  %911 = vmatpush.msra.mxu0 0.0
  %912 = vmatpush.msra.mxu0 0.0
  %913 = vmatpush.msra.mxu0 0.0
  %914 = vmatpush.msra.mxu0 0.0
  %915 = vmatpush.msra.mxu0 0.0
  %916 = vmatpush.msra.mxu0 %v264
  %917 = vmatpush.msra.mxu0 %v263
  %918 = vmatpush.msra.mxu0 %v262
  %919 = vmatpush.msra.mxu0 %v261
  %920 = vmatmul.f32.gmra.mxu0 %v902
  %v921 = vpop.f32.mrf.mxu0
  %v922 = vadd.f32 %v452, %v921
  %923 = vdwg.mxu0
  %v924 = vmax.f32 %v922, 0.0
  %v926 = vsel %vm272, %v924, 0
  %928 = vmatpush.msra.mxu0 0.0
  %929 = vmatpush.msra.mxu0 0.0
  %930 = vmatpush.msra.mxu0 0.0
  %931 = vmatpush.msra.mxu0 0.0
  %932 = vmatpush.msra.mxu0 0.0
  %933 = vmatpush.msra.mxu0 0.0
  %934 = vmatpush.msra.mxu0 0.0
  %935 = vmatpush.msra.mxu0 0.0
  %936 = vmatpush.msra.mxu0 0.0
  %937 = vmatpush.msra.mxu0 0.0
  %938 = vmatpush.msra.mxu0 0.0
  %939 = vmatpush.msra.mxu0 0.0
  %940 = vmatpush.msra.mxu0 %v269
  %941 = vmatpush.msra.mxu0 %v268
  %942 = vmatpush.msra.mxu0 %v267
  %943 = vmatpush.msra.mxu0 %v266
  %944 = vmatmul.f32.gmra.mxu0 %v926
  %v945 = vpop.f32.mrf.mxu0
  %v946 = vadd.f32 %v479, %v945
  %947 = vdwg.mxu0
  %948 = vst.msk [vmem:[#allocation2 + $0x10] sm:$0xff] %vm272, %v900
  %949 = vst.msk [vmem:[%s23 + $0x10] sm:$0xff] %vm88, %v946
  %950 = vmatpush.msra.mxu0 0.0
  %951 = vmatpush.msra.mxu0 0.0
  %952 = vmatpush.msra.mxu0 0.0
  %953 = vmatpush.msra.mxu0 0.0
  %954 = vmatpush.msra.mxu0 0.0
  %955 = vmatpush.msra.mxu0 0.0
  %956 = vmatpush.msra.mxu0 0.0
  %957 = vmatpush.msra.mxu0 0.0
  %958 = vmatpush.msra.mxu0 0.0
  %959 = vmatpush.msra.mxu0 0.0
  %960 = vmatpush.msra.mxu0 0.0
  %961 = vmatpush.msra.mxu0 0.0
  %962 = vmatpush.msra.mxu0 %v249
  %963 = vmatpush.msra.mxu0 %v248
  %964 = vmatpush.msra.mxu0 %v247
  %965 = vmatpush.msra.mxu0 %v246
  %966 = vmatmul.f32.gmra.mxu0 %v902
  %v967 = vpop.f32.mrf.mxu0
  %v968 = vadd.f32 0.0, %v967
  %969 = vdwg.mxu0
  %970 = vmatpush.msra.mxu0 0.0
  %971 = vmatpush.msra.mxu0 0.0
  %972 = vmatpush.msra.mxu0 0.0
  %973 = vmatpush.msra.mxu0 0.0
  %974 = vmatpush.msra.mxu0 0.0
  %975 = vmatpush.msra.mxu0 0.0
  %976 = vmatpush.msra.mxu0 0.0
  %977 = vmatpush.msra.mxu0 0.0
  %978 = vmatpush.msra.mxu0 0.0
  %979 = vmatpush.msra.mxu0 0.0
  %980 = vmatpush.msra.mxu0 0.0
  %981 = vmatpush.msra.mxu0 0.0
  %982 = vmatpush.msra.mxu0 %v253
  %983 = vmatpush.msra.mxu0 %v252
  %984 = vmatpush.msra.mxu0 %v251
  %985 = vmatpush.msra.mxu0 %v250
  %986 = vmatmul.f32.gmra.mxu0 %v902
  %v987 = vpop.f32.mrf.mxu0
  %v988 = vadd.f32 0.0, %v987
  %989 = vdwg.mxu0
  %990 = vmatpush.msra.mxu0 0.0
  %991 = vmatpush.msra.mxu0 0.0
  %992 = vmatpush.msra.mxu0 0.0
  %993 = vmatpush.msra.mxu0 0.0
  %994 = vmatpush.msra.mxu0 0.0
  %995 = vmatpush.msra.mxu0 0.0
  %996 = vmatpush.msra.mxu0 0.0
  %997 = vmatpush.msra.mxu0 0.0
  %998 = vmatpush.msra.mxu0 0.0
  %999 = vmatpush.msra.mxu0 0.0
  %1000 = vmatpush.msra.mxu0 0.0
  %1001 = vmatpush.msra.mxu0 0.0
  %1002 = vmatpush.msra.mxu0 %v257
  %1003 = vmatpush.msra.mxu0 %v256
  %1004 = vmatpush.msra.mxu0 %v255
  %1005 = vmatpush.msra.mxu0 %v254
  %1006 = vmatmul.f32.gmra.mxu0 %v902
  %v1007 = vpop.f32.mrf.mxu0
  %v1008 = vadd.f32 %v317, %v1007
  %1009 = vdwg.mxu0
  %v1011 = vsel %vm88, %v946, 0
  %1013 = vmatpush.msra.mxu0 0.0
  %1014 = vmatpush.msra.mxu0 0.0
  %1015 = vmatpush.msra.mxu0 0.0
  %1016 = vmatpush.msra.mxu0 0.0
  %1017 = vmatpush.msra.mxu0 0.0
  %1018 = vmatpush.msra.mxu0 0.0
  %1019 = vmatpush.msra.mxu0 0.0
  %1020 = vmatpush.msra.mxu0 0.0
  %1021 = vmatpush.msra.mxu0 0.0
  %1022 = vmatpush.msra.mxu0 0.0
  %1023 = vmatpush.msra.mxu0 0.0
  %1024 = vmatpush.msra.mxu0 0.0
  %1025 = vmatpush.msra.mxu0 0.0
  %1026 = vmatpush.msra.mxu0 0.0
  %1027 = vmatpush.msra.mxu0 0.0
  %1028 = vmatpush.msra.mxu0 %v258
  %1029 = vmatmul.f32.gmra.mxu0 %v1011
  %v1030 = vpop.f32.mrf.mxu0
  %v1031 = vadd.f32 0.0, %v1030
  %1032 = vdwg.mxu0
  %1033 = vmatpush.msra.mxu0 0.0
  %1034 = vmatpush.msra.mxu0 0.0
  %1035 = vmatpush.msra.mxu0 0.0
  %1036 = vmatpush.msra.mxu0 0.0
  %1037 = vmatpush.msra.mxu0 0.0
  %1038 = vmatpush.msra.mxu0 0.0
  %1039 = vmatpush.msra.mxu0 0.0
  %1040 = vmatpush.msra.mxu0 0.0
  %1041 = vmatpush.msra.mxu0 0.0
  %1042 = vmatpush.msra.mxu0 0.0
  %1043 = vmatpush.msra.mxu0 0.0
  %1044 = vmatpush.msra.mxu0 0.0
  %1045 = vmatpush.msra.mxu0 0.0
  %1046 = vmatpush.msra.mxu0 0.0
  %1047 = vmatpush.msra.mxu0 0.0
  %1048 = vmatpush.msra.mxu0 %v259
  %1049 = vmatmul.f32.gmra.mxu0 %v1011
  %v1050 = vpop.f32.mrf.mxu0
  %v1051 = vadd.f32 0.0, %v1050
  %1052 = vdwg.mxu0
  %1053 = vmatpush.msra.mxu0 0.0
  %1054 = vmatpush.msra.mxu0 0.0
  %1055 = vmatpush.msra.mxu0 0.0
  %1056 = vmatpush.msra.mxu0 0.0
  %1057 = vmatpush.msra.mxu0 0.0
  %1058 = vmatpush.msra.mxu0 0.0
  %1059 = vmatpush.msra.mxu0 0.0
  %1060 = vmatpush.msra.mxu0 0.0
  %1061 = vmatpush.msra.mxu0 0.0
  %1062 = vmatpush.msra.mxu0 0.0
  %1063 = vmatpush.msra.mxu0 0.0
  %1064 = vmatpush.msra.mxu0 0.0
  %1065 = vmatpush.msra.mxu0 0.0
  %1066 = vmatpush.msra.mxu0 0.0
  %1067 = vmatpush.msra.mxu0 0.0
  %1068 = vmatpush.msra.mxu0 %v260
  %1069 = vmatmul.f32.gmra.mxu0 %v1011
  %v1070 = vpop.f32.mrf.mxu0
  %v1071 = vadd.f32 0.0, %v1070
  %1072 = vdwg.mxu0
  %v1073 = vadd.f32 %v140, %v1031
  %v1074 = vadd.f32 %v1073, %v968
  %v1075 = vxor.u32 %v1074, 2147483648
  %v1076 = vmul.f32 %v1075, 1.442695
  %v1077 = vpow.pop %v1076
  %v1078 = vadd.f32 %v1077, 1.0
  %v1079 = vrcp.pop %v1078
  %v1080 = vmul.f32 %v1078, %v1079
  %v1081 = vsub.f32 1.0, %v1080
  %v1082 = vmul.f32 %v1079, %v1081
  %v1083 = vadd.f32 %v1079, %v1082
  %vm1084 = vweird.f32 %v1078
  %vm1085 = vweird.f32 %v1079
  %vm1086 = vmor %vm1084, %vm1085
  %v1087 = vsel %vm1086, %v1079, %v1083
  %v1088 = vand.u32 2147483647, %v1078
  %vm1089 = vcmp.eq.f32.partialorder %v1088, 8.507059e+37
  %v1090 = vand.u32 %v1078, 2147483648
  %v1091 = vor.u32 1.1754944e-38, %v1090
  %v1092 = vsel %vm1089, %v1091, %v1087
  %v1093 = vmul.f32 1.0, %v1092
  %v1094 = vadd.f32 %v186, %v1051
  %v1095 = vadd.f32 %v1094, %v988
  %v1096 = vxor.u32 %v1095, 2147483648
  %v1097 = vmul.f32 %v1096, 1.442695
  %v1098 = vpow.pop %v1097
  %v1099 = vadd.f32 %v1098, 1.0
  %v1100 = vrcp.pop %v1099
  %v1101 = vmul.f32 %v1099, %v1100
  %v1102 = vsub.f32 1.0, %v1101
  %v1103 = vmul.f32 %v1100, %v1102
  %v1104 = vadd.f32 %v1100, %v1103
  %vm1105 = vweird.f32 %v1099
  %vm1106 = vweird.f32 %v1100
  %vm1107 = vmor %vm1105, %vm1106
  %v1108 = vsel %vm1107, %v1100, %v1104
  %v1109 = vand.u32 2147483647, %v1099
  %vm1110 = vcmp.eq.f32.partialorder %v1109, 8.507059e+37
  %v1111 = vand.u32 %v1099, 2147483648
  %v1112 = vor.u32 1.1754944e-38, %v1111
  %v1113 = vsel %vm1110, %v1112, %v1108
  %v1114 = vmul.f32 1.0, %v1113
  %v1115 = vadd.f32 %v232, %v1071
  %v1116 = vmul.f32 %v1093, %v1008
  %v1117 = vadd.f32 %v1115, %v1116
  %v1118 = vtanh.pop %v1117
  %v1119 = vsub.f32 1.0, %v1114
  %v1120 = vmul.f32 %v1119, %v1118
  %v1121 = vmul.f32 %v1114, %v900
  %v1122 = vadd.f32 %v1120, %v1121
  %v1124 = vsel %vm272, %v1122, 0
  %1126 = vmatpush.msra.mxu0 0.0
  %1127 = vmatpush.msra.mxu0 0.0
  %1128 = vmatpush.msra.mxu0 0.0
  %1129 = vmatpush.msra.mxu0 0.0
  %1130 = vmatpush.msra.mxu0 0.0
  %1131 = vmatpush.msra.mxu0 0.0
  %1132 = vmatpush.msra.mxu0 0.0
  %1133 = vmatpush.msra.mxu0 0.0
  %1134 = vmatpush.msra.mxu0 0.0
  %1135 = vmatpush.msra.mxu0 0.0
  %1136 = vmatpush.msra.mxu0 0.0
  %1137 = vmatpush.msra.mxu0 0.0
  %1138 = vmatpush.msra.mxu0 %v264
  %1139 = vmatpush.msra.mxu0 %v263
  %1140 = vmatpush.msra.mxu0 %v262
  %1141 = vmatpush.msra.mxu0 %v261
  %1142 = vmatmul.f32.gmra.mxu0 %v1124
  %v1143 = vpop.f32.mrf.mxu0
  %v1144 = vadd.f32 %v452, %v1143
  %1145 = vdwg.mxu0
  %v1146 = vmax.f32 %v1144, 0.0
  %v1148 = vsel %vm272, %v1146, 0
  %1150 = vmatpush.msra.mxu0 0.0
  %1151 = vmatpush.msra.mxu0 0.0
  %1152 = vmatpush.msra.mxu0 0.0
  %1153 = vmatpush.msra.mxu0 0.0
  %1154 = vmatpush.msra.mxu0 0.0
  %1155 = vmatpush.msra.mxu0 0.0
  %1156 = vmatpush.msra.mxu0 0.0
  %1157 = vmatpush.msra.mxu0 0.0
  %1158 = vmatpush.msra.mxu0 0.0
  %1159 = vmatpush.msra.mxu0 0.0
  %1160 = vmatpush.msra.mxu0 0.0
  %1161 = vmatpush.msra.mxu0 0.0
  %1162 = vmatpush.msra.mxu0 %v269
  %1163 = vmatpush.msra.mxu0 %v268
  %1164 = vmatpush.msra.mxu0 %v267
  %1165 = vmatpush.msra.mxu0 %v266
  %1166 = vmatmul.f32.gmra.mxu0 %v1148
  %v1167 = vpop.f32.mrf.mxu0
  %v1168 = vadd.f32 %v479, %v1167
  %1169 = vdwg.mxu0
  %1170 = vst.msk [vmem:[#allocation2 + $0x18] sm:$0xff] %vm272, %v1122
  %1171 = vst.msk [vmem:[%s23 + $0x18] sm:$0xff] %vm88, %v1168
  %1172 = vmatpush.msra.mxu0 0.0
  %1173 = vmatpush.msra.mxu0 0.0
  %1174 = vmatpush.msra.mxu0 0.0
  %1175 = vmatpush.msra.mxu0 0.0
  %1176 = vmatpush.msra.mxu0 0.0
  %1177 = vmatpush.msra.mxu0 0.0
  %1178 = vmatpush.msra.mxu0 0.0
  %1179 = vmatpush.msra.mxu0 0.0
  %1180 = vmatpush.msra.mxu0 0.0
  %1181 = vmatpush.msra.mxu0 0.0
  %1182 = vmatpush.msra.mxu0 0.0
  %1183 = vmatpush.msra.mxu0 0.0
  %1184 = vmatpush.msra.mxu0 %v249
  %1185 = vmatpush.msra.mxu0 %v248
  %1186 = vmatpush.msra.mxu0 %v247
  %1187 = vmatpush.msra.mxu0 %v246
  %1188 = vmatmul.f32.gmra.mxu0 %v1124
  %v1189 = vpop.f32.mrf.mxu0
  %v1190 = vadd.f32 0.0, %v1189
  %1191 = vdwg.mxu0
  %1192 = vmatpush.msra.mxu0 0.0
  %1193 = vmatpush.msra.mxu0 0.0
  %1194 = vmatpush.msra.mxu0 0.0
  %1195 = vmatpush.msra.mxu0 0.0
  %1196 = vmatpush.msra.mxu0 0.0
  %1197 = vmatpush.msra.mxu0 0.0
  %1198 = vmatpush.msra.mxu0 0.0
  %1199 = vmatpush.msra.mxu0 0.0
  %1200 = vmatpush.msra.mxu0 0.0
  %1201 = vmatpush.msra.mxu0 0.0
  %1202 = vmatpush.msra.mxu0 0.0
  %1203 = vmatpush.msra.mxu0 0.0
  %1204 = vmatpush.msra.mxu0 %v253
  %1205 = vmatpush.msra.mxu0 %v252
  %1206 = vmatpush.msra.mxu0 %v251
  %1207 = vmatpush.msra.mxu0 %v250
  %1208 = vmatmul.f32.gmra.mxu0 %v1124
  %v1209 = vpop.f32.mrf.mxu0
  %v1210 = vadd.f32 0.0, %v1209
  %1211 = vdwg.mxu0
  %1212 = vmatpush.msra.mxu0 0.0
  %1213 = vmatpush.msra.mxu0 0.0
  %1214 = vmatpush.msra.mxu0 0.0
  %1215 = vmatpush.msra.mxu0 0.0
  %1216 = vmatpush.msra.mxu0 0.0
  %1217 = vmatpush.msra.mxu0 0.0
  %1218 = vmatpush.msra.mxu0 0.0
  %1219 = vmatpush.msra.mxu0 0.0
  %1220 = vmatpush.msra.mxu0 0.0
  %1221 = vmatpush.msra.mxu0 0.0
  %1222 = vmatpush.msra.mxu0 0.0
  %1223 = vmatpush.msra.mxu0 0.0
  %1224 = vmatpush.msra.mxu0 %v257
  %1225 = vmatpush.msra.mxu0 %v256
  %1226 = vmatpush.msra.mxu0 %v255
  %1227 = vmatpush.msra.mxu0 %v254
  %1228 = vmatmul.f32.gmra.mxu0 %v1124
  %v1229 = vpop.f32.mrf.mxu0
  %v1230 = vadd.f32 %v317, %v1229
  %1231 = vdwg.mxu0
  %v1233 = vsel %vm88, %v1168, 0
  %1235 = vmatpush.msra.mxu0 0.0
  %1236 = vmatpush.msra.mxu0 0.0
  %1237 = vmatpush.msra.mxu0 0.0
  %1238 = vmatpush.msra.mxu0 0.0
  %1239 = vmatpush.msra.mxu0 0.0
  %1240 = vmatpush.msra.mxu0 0.0
  %1241 = vmatpush.msra.mxu0 0.0
  %1242 = vmatpush.msra.mxu0 0.0
  %1243 = vmatpush.msra.mxu0 0.0
  %1244 = vmatpush.msra.mxu0 0.0
  %1245 = vmatpush.msra.mxu0 0.0
  %1246 = vmatpush.msra.mxu0 0.0
  %1247 = vmatpush.msra.mxu0 0.0
  %1248 = vmatpush.msra.mxu0 0.0
  %1249 = vmatpush.msra.mxu0 0.0
  %1250 = vmatpush.msra.mxu0 %v258
  %1251 = vmatmul.f32.gmra.mxu0 %v1233
  %v1252 = vpop.f32.mrf.mxu0
  %v1253 = vadd.f32 0.0, %v1252
  %1254 = vdwg.mxu0
  %1255 = vmatpush.msra.mxu0 0.0
  %1256 = vmatpush.msra.mxu0 0.0
  %1257 = vmatpush.msra.mxu0 0.0
  %1258 = vmatpush.msra.mxu0 0.0
  %1259 = vmatpush.msra.mxu0 0.0
  %1260 = vmatpush.msra.mxu0 0.0
  %1261 = vmatpush.msra.mxu0 0.0
  %1262 = vmatpush.msra.mxu0 0.0
  %1263 = vmatpush.msra.mxu0 0.0
  %1264 = vmatpush.msra.mxu0 0.0
  %1265 = vmatpush.msra.mxu0 0.0
  %1266 = vmatpush.msra.mxu0 0.0
  %1267 = vmatpush.msra.mxu0 0.0
  %1268 = vmatpush.msra.mxu0 0.0
  %1269 = vmatpush.msra.mxu0 0.0
  %1270 = vmatpush.msra.mxu0 %v259
  %1271 = vmatmul.f32.gmra.mxu0 %v1233
  %v1272 = vpop.f32.mrf.mxu0
  %v1273 = vadd.f32 0.0, %v1272
  %1274 = vdwg.mxu0
  %1275 = vmatpush.msra.mxu0 0.0
  %1276 = vmatpush.msra.mxu0 0.0
  %1277 = vmatpush.msra.mxu0 0.0
  %1278 = vmatpush.msra.mxu0 0.0
  %1279 = vmatpush.msra.mxu0 0.0
  %1280 = vmatpush.msra.mxu0 0.0
  %1281 = vmatpush.msra.mxu0 0.0
  %1282 = vmatpush.msra.mxu0 0.0
  %1283 = vmatpush.msra.mxu0 0.0
  %1284 = vmatpush.msra.mxu0 0.0
  %1285 = vmatpush.msra.mxu0 0.0
  %1286 = vmatpush.msra.mxu0 0.0
  %1287 = vmatpush.msra.mxu0 0.0
  %1288 = vmatpush.msra.mxu0 0.0
  %1289 = vmatpush.msra.mxu0 0.0
  %1290 = vmatpush.msra.mxu0 %v260
  %1291 = vmatmul.f32.gmra.mxu0 %v1233
  %v1292 = vpop.f32.mrf.mxu0
  %v1293 = vadd.f32 0.0, %v1292
  %1294 = vdwg.mxu0
  %v1295 = vadd.f32 %v143, %v1253
  %v1296 = vadd.f32 %v1295, %v1190
  %v1297 = vxor.u32 %v1296, 2147483648
  %v1298 = vmul.f32 %v1297, 1.442695
  %v1299 = vpow.pop %v1298
  %v1300 = vadd.f32 %v1299, 1.0
  %v1301 = vrcp.pop %v1300
  %v1302 = vmul.f32 %v1300, %v1301
  %v1303 = vsub.f32 1.0, %v1302
  %v1304 = vmul.f32 %v1301, %v1303
  %v1305 = vadd.f32 %v1301, %v1304
  %vm1306 = vweird.f32 %v1300
  %vm1307 = vweird.f32 %v1301
  %vm1308 = vmor %vm1306, %vm1307
  %v1309 = vsel %vm1308, %v1301, %v1305
  %v1310 = vand.u32 2147483647, %v1300
  %vm1311 = vcmp.eq.f32.partialorder %v1310, 8.507059e+37
  %v1312 = vand.u32 %v1300, 2147483648
  %v1313 = vor.u32 1.1754944e-38, %v1312
  %v1314 = vsel %vm1311, %v1313, %v1309
  %v1315 = vmul.f32 1.0, %v1314
  %v1316 = vadd.f32 %v189, %v1273
  %v1317 = vadd.f32 %v1316, %v1210
  %v1318 = vxor.u32 %v1317, 2147483648
  %v1319 = vmul.f32 %v1318, 1.442695
  %v1320 = vpow.pop %v1319
  %v1321 = vadd.f32 %v1320, 1.0
  %v1322 = vrcp.pop %v1321
  %v1323 = vmul.f32 %v1321, %v1322
  %v1324 = vsub.f32 1.0, %v1323
  %v1325 = vmul.f32 %v1322, %v1324
  %v1326 = vadd.f32 %v1322, %v1325
  %vm1327 = vweird.f32 %v1321
  %vm1328 = vweird.f32 %v1322
  %vm1329 = vmor %vm1327, %vm1328
  %v1330 = vsel %vm1329, %v1322, %v1326
  %v1331 = vand.u32 2147483647, %v1321
  %vm1332 = vcmp.eq.f32.partialorder %v1331, 8.507059e+37
  %v1333 = vand.u32 %v1321, 2147483648
  %v1334 = vor.u32 1.1754944e-38, %v1333
  %v1335 = vsel %vm1332, %v1334, %v1330
  %v1336 = vmul.f32 1.0, %v1335
  %v1337 = vadd.f32 %v235, %v1293
  %v1338 = vmul.f32 %v1315, %v1230
  %v1339 = vadd.f32 %v1337, %v1338
  %v1340 = vtanh.pop %v1339
  %v1341 = vsub.f32 1.0, %v1336
  %v1342 = vmul.f32 %v1341, %v1340
  %v1343 = vmul.f32 %v1336, %v1122
  %v1344 = vadd.f32 %v1342, %v1343
  %v1346 = vsel %vm272, %v1344, 0
  %1348 = vmatpush.msra.mxu0 0.0
  %1349 = vmatpush.msra.mxu0 0.0
  %1350 = vmatpush.msra.mxu0 0.0
  %1351 = vmatpush.msra.mxu0 0.0
  %1352 = vmatpush.msra.mxu0 0.0
  %1353 = vmatpush.msra.mxu0 0.0
  %1354 = vmatpush.msra.mxu0 0.0
  %1355 = vmatpush.msra.mxu0 0.0
  %1356 = vmatpush.msra.mxu0 0.0
  %1357 = vmatpush.msra.mxu0 0.0
  %1358 = vmatpush.msra.mxu0 0.0
  %1359 = vmatpush.msra.mxu0 0.0
  %1360 = vmatpush.msra.mxu0 %v264
  %1361 = vmatpush.msra.mxu0 %v263
  %1362 = vmatpush.msra.mxu0 %v262
  %1363 = vmatpush.msra.mxu0 %v261
  %1364 = vmatmul.f32.gmra.mxu0 %v1346
  %v1365 = vpop.f32.mrf.mxu0
  %v1366 = vadd.f32 %v452, %v1365
  %1367 = vdwg.mxu0
  %v1368 = vmax.f32 %v1366, 0.0
  %v1370 = vsel %vm272, %v1368, 0
  %1372 = vmatpush.msra.mxu0 0.0
  %1373 = vmatpush.msra.mxu0 0.0
  %1374 = vmatpush.msra.mxu0 0.0
  %1375 = vmatpush.msra.mxu0 0.0
  %1376 = vmatpush.msra.mxu0 0.0
  %1377 = vmatpush.msra.mxu0 0.0
  %1378 = vmatpush.msra.mxu0 0.0
  %1379 = vmatpush.msra.mxu0 0.0
  %1380 = vmatpush.msra.mxu0 0.0
  %1381 = vmatpush.msra.mxu0 0.0
  %1382 = vmatpush.msra.mxu0 0.0
  %1383 = vmatpush.msra.mxu0 0.0
  %1384 = vmatpush.msra.mxu0 %v269
  %1385 = vmatpush.msra.mxu0 %v268
  %1386 = vmatpush.msra.mxu0 %v267
  %1387 = vmatpush.msra.mxu0 %v266
  %1388 = vmatmul.f32.gmra.mxu0 %v1370
  %v1389 = vpop.f32.mrf.mxu0
  %v1390 = vadd.f32 %v479, %v1389
  %1391 = vdwg.mxu0
  %1392 = vst.msk [vmem:[#allocation2 + $0x20] sm:$0xff] %vm272, %v1344
  %1393 = vst.msk [vmem:[%s23 + $0x20] sm:$0xff] %vm88, %v1390
  %1394 = vmatpush.msra.mxu0 0.0
  %1395 = vmatpush.msra.mxu0 0.0
  %1396 = vmatpush.msra.mxu0 0.0
  %1397 = vmatpush.msra.mxu0 0.0
  %1398 = vmatpush.msra.mxu0 0.0
  %1399 = vmatpush.msra.mxu0 0.0
  %1400 = vmatpush.msra.mxu0 0.0
  %1401 = vmatpush.msra.mxu0 0.0
  %1402 = vmatpush.msra.mxu0 0.0
  %1403 = vmatpush.msra.mxu0 0.0
  %1404 = vmatpush.msra.mxu0 0.0
  %1405 = vmatpush.msra.mxu0 0.0
  %1406 = vmatpush.msra.mxu0 %v249
  %1407 = vmatpush.msra.mxu0 %v248
  %1408 = vmatpush.msra.mxu0 %v247
  %1409 = vmatpush.msra.mxu0 %v246
  %1410 = vmatmul.f32.gmra.mxu0 %v1346
  %v1411 = vpop.f32.mrf.mxu0
  %v1412 = vadd.f32 0.0, %v1411
  %1413 = vdwg.mxu0
  %1414 = vmatpush.msra.mxu0 0.0
  %1415 = vmatpush.msra.mxu0 0.0
  %1416 = vmatpush.msra.mxu0 0.0
  %1417 = vmatpush.msra.mxu0 0.0
  %1418 = vmatpush.msra.mxu0 0.0
  %1419 = vmatpush.msra.mxu0 0.0
  %1420 = vmatpush.msra.mxu0 0.0
  %1421 = vmatpush.msra.mxu0 0.0
  %1422 = vmatpush.msra.mxu0 0.0
  %1423 = vmatpush.msra.mxu0 0.0
  %1424 = vmatpush.msra.mxu0 0.0
  %1425 = vmatpush.msra.mxu0 0.0
  %1426 = vmatpush.msra.mxu0 %v253
  %1427 = vmatpush.msra.mxu0 %v252
  %1428 = vmatpush.msra.mxu0 %v251
  %1429 = vmatpush.msra.mxu0 %v250
  %1430 = vmatmul.f32.gmra.mxu0 %v1346
  %v1431 = vpop.f32.mrf.mxu0
  %v1432 = vadd.f32 0.0, %v1431
  %1433 = vdwg.mxu0
  %1434 = vmatpush.msra.mxu0 0.0
  %1435 = vmatpush.msra.mxu0 0.0
  %1436 = vmatpush.msra.mxu0 0.0
  %1437 = vmatpush.msra.mxu0 0.0
  %1438 = vmatpush.msra.mxu0 0.0
  %1439 = vmatpush.msra.mxu0 0.0
  %1440 = vmatpush.msra.mxu0 0.0
  %1441 = vmatpush.msra.mxu0 0.0
  %1442 = vmatpush.msra.mxu0 0.0
  %1443 = vmatpush.msra.mxu0 0.0
  %1444 = vmatpush.msra.mxu0 0.0
  %1445 = vmatpush.msra.mxu0 0.0
  %1446 = vmatpush.msra.mxu0 %v257
  %1447 = vmatpush.msra.mxu0 %v256
  %1448 = vmatpush.msra.mxu0 %v255
  %1449 = vmatpush.msra.mxu0 %v254
  %1450 = vmatmul.f32.gmra.mxu0 %v1346
  %v1451 = vpop.f32.mrf.mxu0
  %v1452 = vadd.f32 %v317, %v1451
  %1453 = vdwg.mxu0
  %v1455 = vsel %vm88, %v1390, 0
  %1457 = vmatpush.msra.mxu0 0.0
  %1458 = vmatpush.msra.mxu0 0.0
  %1459 = vmatpush.msra.mxu0 0.0
  %1460 = vmatpush.msra.mxu0 0.0
  %1461 = vmatpush.msra.mxu0 0.0
  %1462 = vmatpush.msra.mxu0 0.0
  %1463 = vmatpush.msra.mxu0 0.0
  %1464 = vmatpush.msra.mxu0 0.0
  %1465 = vmatpush.msra.mxu0 0.0
  %1466 = vmatpush.msra.mxu0 0.0
  %1467 = vmatpush.msra.mxu0 0.0
  %1468 = vmatpush.msra.mxu0 0.0
  %1469 = vmatpush.msra.mxu0 0.0
  %1470 = vmatpush.msra.mxu0 0.0
  %1471 = vmatpush.msra.mxu0 0.0
  %1472 = vmatpush.msra.mxu0 %v258
  %1473 = vmatmul.f32.gmra.mxu0 %v1455
  %v1474 = vpop.f32.mrf.mxu0
  %v1475 = vadd.f32 0.0, %v1474
  %1476 = vdwg.mxu0
  %1477 = vmatpush.msra.mxu0 0.0
  %1478 = vmatpush.msra.mxu0 0.0
  %1479 = vmatpush.msra.mxu0 0.0
  %1480 = vmatpush.msra.mxu0 0.0
  %1481 = vmatpush.msra.mxu0 0.0
  %1482 = vmatpush.msra.mxu0 0.0
  %1483 = vmatpush.msra.mxu0 0.0
  %1484 = vmatpush.msra.mxu0 0.0
  %1485 = vmatpush.msra.mxu0 0.0
  %1486 = vmatpush.msra.mxu0 0.0
  %1487 = vmatpush.msra.mxu0 0.0
  %1488 = vmatpush.msra.mxu0 0.0
  %1489 = vmatpush.msra.mxu0 0.0
  %1490 = vmatpush.msra.mxu0 0.0
  %1491 = vmatpush.msra.mxu0 0.0
  %1492 = vmatpush.msra.mxu0 %v259
  %1493 = vmatmul.f32.gmra.mxu0 %v1455
  %v1494 = vpop.f32.mrf.mxu0
  %v1495 = vadd.f32 0.0, %v1494
  %1496 = vdwg.mxu0
  %1497 = vmatpush.msra.mxu0 0.0
  %1498 = vmatpush.msra.mxu0 0.0
  %1499 = vmatpush.msra.mxu0 0.0
  %1500 = vmatpush.msra.mxu0 0.0
  %1501 = vmatpush.msra.mxu0 0.0
  %1502 = vmatpush.msra.mxu0 0.0
  %1503 = vmatpush.msra.mxu0 0.0
  %1504 = vmatpush.msra.mxu0 0.0
  %1505 = vmatpush.msra.mxu0 0.0
  %1506 = vmatpush.msra.mxu0 0.0
  %1507 = vmatpush.msra.mxu0 0.0
  %1508 = vmatpush.msra.mxu0 0.0
  %1509 = vmatpush.msra.mxu0 0.0
  %1510 = vmatpush.msra.mxu0 0.0
  %1511 = vmatpush.msra.mxu0 0.0
  %1512 = vmatpush.msra.mxu0 %v260
  %1513 = vmatmul.f32.gmra.mxu0 %v1455
  %v1514 = vpop.f32.mrf.mxu0
  %v1515 = vadd.f32 0.0, %v1514
  %1516 = vdwg.mxu0
  %v1517 = vadd.f32 %v146, %v1475
  %v1518 = vadd.f32 %v1517, %v1412
  %v1519 = vxor.u32 %v1518, 2147483648
  %v1520 = vmul.f32 %v1519, 1.442695
  %v1521 = vpow.pop %v1520
  %v1522 = vadd.f32 %v1521, 1.0
  %v1523 = vrcp.pop %v1522
  %v1524 = vmul.f32 %v1522, %v1523
  %v1525 = vsub.f32 1.0, %v1524
  %v1526 = vmul.f32 %v1523, %v1525
  %v1527 = vadd.f32 %v1523, %v1526
  %vm1528 = vweird.f32 %v1522
  %vm1529 = vweird.f32 %v1523
  %vm1530 = vmor %vm1528, %vm1529
  %v1531 = vsel %vm1530, %v1523, %v1527
  %v1532 = vand.u32 2147483647, %v1522
  %vm1533 = vcmp.eq.f32.partialorder %v1532, 8.507059e+37
  %v1534 = vand.u32 %v1522, 2147483648
  %v1535 = vor.u32 1.1754944e-38, %v1534
  %v1536 = vsel %vm1533, %v1535, %v1531
  %v1537 = vmul.f32 1.0, %v1536
  %v1538 = vadd.f32 %v192, %v1495
  %v1539 = vadd.f32 %v1538, %v1432
  %v1540 = vxor.u32 %v1539, 2147483648
  %v1541 = vmul.f32 %v1540, 1.442695
  %v1542 = vpow.pop %v1541
  %v1543 = vadd.f32 %v1542, 1.0
  %v1544 = vrcp.pop %v1543
  %v1545 = vmul.f32 %v1543, %v1544
  %v1546 = vsub.f32 1.0, %v1545
  %v1547 = vmul.f32 %v1544, %v1546
  %v1548 = vadd.f32 %v1544, %v1547
  %vm1549 = vweird.f32 %v1543
  %vm1550 = vweird.f32 %v1544
  %vm1551 = vmor %vm1549, %vm1550
  %v1552 = vsel %vm1551, %v1544, %v1548
  %v1553 = vand.u32 2147483647, %v1543
  %vm1554 = vcmp.eq.f32.partialorder %v1553, 8.507059e+37
  %v1555 = vand.u32 %v1543, 2147483648
  %v1556 = vor.u32 1.1754944e-38, %v1555
  %v1557 = vsel %vm1554, %v1556, %v1552
  %v1558 = vmul.f32 1.0, %v1557
  %v1559 = vadd.f32 %v238, %v1515
  %v1560 = vmul.f32 %v1537, %v1452
  %v1561 = vadd.f32 %v1559, %v1560
  %v1562 = vtanh.pop %v1561
  %v1563 = vsub.f32 1.0, %v1558
  %v1564 = vmul.f32 %v1563, %v1562
  %v1565 = vmul.f32 %v1558, %v1344
  %v1566 = vadd.f32 %v1564, %v1565
  %v1568 = vsel %vm272, %v1566, 0
  %1570 = vmatpush.msra.mxu0 0.0
  %1571 = vmatpush.msra.mxu0 0.0
  %1572 = vmatpush.msra.mxu0 0.0
  %1573 = vmatpush.msra.mxu0 0.0
  %1574 = vmatpush.msra.mxu0 0.0
  %1575 = vmatpush.msra.mxu0 0.0
  %1576 = vmatpush.msra.mxu0 0.0
  %1577 = vmatpush.msra.mxu0 0.0
  %1578 = vmatpush.msra.mxu0 0.0
  %1579 = vmatpush.msra.mxu0 0.0
  %1580 = vmatpush.msra.mxu0 0.0
  %1581 = vmatpush.msra.mxu0 0.0
  %1582 = vmatpush.msra.mxu0 %v264
  %1583 = vmatpush.msra.mxu0 %v263
  %1584 = vmatpush.msra.mxu0 %v262
  %1585 = vmatpush.msra.mxu0 %v261
  %1586 = vmatmul.f32.gmra.mxu0 %v1568
  %v1587 = vpop.f32.mrf.mxu0
  %v1588 = vadd.f32 %v452, %v1587
  %1589 = vdwg.mxu0
  %v1590 = vmax.f32 %v1588, 0.0
  %v1592 = vsel %vm272, %v1590, 0
  %1594 = vmatpush.msra.mxu0 0.0
  %1595 = vmatpush.msra.mxu0 0.0
  %1596 = vmatpush.msra.mxu0 0.0
  %1597 = vmatpush.msra.mxu0 0.0
  %1598 = vmatpush.msra.mxu0 0.0
  %1599 = vmatpush.msra.mxu0 0.0
  %1600 = vmatpush.msra.mxu0 0.0
  %1601 = vmatpush.msra.mxu0 0.0
  %1602 = vmatpush.msra.mxu0 0.0
  %1603 = vmatpush.msra.mxu0 0.0
  %1604 = vmatpush.msra.mxu0 0.0
  %1605 = vmatpush.msra.mxu0 0.0
  %1606 = vmatpush.msra.mxu0 %v269
  %1607 = vmatpush.msra.mxu0 %v268
  %1608 = vmatpush.msra.mxu0 %v267
  %1609 = vmatpush.msra.mxu0 %v266
  %1610 = vmatmul.f32.gmra.mxu0 %v1592
  %v1611 = vpop.f32.mrf.mxu0
  %v1612 = vadd.f32 %v479, %v1611
  %1613 = vdwg.mxu0
  %1614 = vst.msk [vmem:[#allocation2 + $0x28] sm:$0xff] %vm272, %v1566
  %1615 = vst.msk [vmem:[%s23 + $0x28] sm:$0xff] %vm88, %v1612
  %1616 = vmatpush.msra.mxu0 0.0
  %1617 = vmatpush.msra.mxu0 0.0
  %1618 = vmatpush.msra.mxu0 0.0
  %1619 = vmatpush.msra.mxu0 0.0
  %1620 = vmatpush.msra.mxu0 0.0
  %1621 = vmatpush.msra.mxu0 0.0
  %1622 = vmatpush.msra.mxu0 0.0
  %1623 = vmatpush.msra.mxu0 0.0
  %1624 = vmatpush.msra.mxu0 0.0
  %1625 = vmatpush.msra.mxu0 0.0
  %1626 = vmatpush.msra.mxu0 0.0
  %1627 = vmatpush.msra.mxu0 0.0
  %1628 = vmatpush.msra.mxu0 %v249
  %1629 = vmatpush.msra.mxu0 %v248
  %1630 = vmatpush.msra.mxu0 %v247
  %1631 = vmatpush.msra.mxu0 %v246
  %1632 = vmatmul.f32.gmra.mxu0 %v1568
  %v1633 = vpop.f32.mrf.mxu0
  %v1634 = vadd.f32 0.0, %v1633
  %1635 = vdwg.mxu0
  %1636 = vmatpush.msra.mxu0 0.0
  %1637 = vmatpush.msra.mxu0 0.0
  %1638 = vmatpush.msra.mxu0 0.0
  %1639 = vmatpush.msra.mxu0 0.0
  %1640 = vmatpush.msra.mxu0 0.0
  %1641 = vmatpush.msra.mxu0 0.0
  %1642 = vmatpush.msra.mxu0 0.0
  %1643 = vmatpush.msra.mxu0 0.0
  %1644 = vmatpush.msra.mxu0 0.0
  %1645 = vmatpush.msra.mxu0 0.0
  %1646 = vmatpush.msra.mxu0 0.0
  %1647 = vmatpush.msra.mxu0 0.0
  %1648 = vmatpush.msra.mxu0 %v253
  %1649 = vmatpush.msra.mxu0 %v252
  %1650 = vmatpush.msra.mxu0 %v251
  %1651 = vmatpush.msra.mxu0 %v250
  %1652 = vmatmul.f32.gmra.mxu0 %v1568
  %v1653 = vpop.f32.mrf.mxu0
  %v1654 = vadd.f32 0.0, %v1653
  %1655 = vdwg.mxu0
  %1656 = vmatpush.msra.mxu0 0.0
  %1657 = vmatpush.msra.mxu0 0.0
  %1658 = vmatpush.msra.mxu0 0.0
  %1659 = vmatpush.msra.mxu0 0.0
  %1660 = vmatpush.msra.mxu0 0.0
  %1661 = vmatpush.msra.mxu0 0.0
  %1662 = vmatpush.msra.mxu0 0.0
  %1663 = vmatpush.msra.mxu0 0.0
  %1664 = vmatpush.msra.mxu0 0.0
  %1665 = vmatpush.msra.mxu0 0.0
  %1666 = vmatpush.msra.mxu0 0.0
  %1667 = vmatpush.msra.mxu0 0.0
  %1668 = vmatpush.msra.mxu0 %v257
  %1669 = vmatpush.msra.mxu0 %v256
  %1670 = vmatpush.msra.mxu0 %v255
  %1671 = vmatpush.msra.mxu0 %v254
  %1672 = vmatmul.f32.gmra.mxu0 %v1568
  %v1673 = vpop.f32.mrf.mxu0
  %v1674 = vadd.f32 %v317, %v1673
  %1675 = vdwg.mxu0
  %v1677 = vsel %vm88, %v1612, 0
  %1679 = vmatpush.msra.mxu0 0.0
  %1680 = vmatpush.msra.mxu0 0.0
  %1681 = vmatpush.msra.mxu0 0.0
  %1682 = vmatpush.msra.mxu0 0.0
  %1683 = vmatpush.msra.mxu0 0.0
  %1684 = vmatpush.msra.mxu0 0.0
  %1685 = vmatpush.msra.mxu0 0.0
  %1686 = vmatpush.msra.mxu0 0.0
  %1687 = vmatpush.msra.mxu0 0.0
  %1688 = vmatpush.msra.mxu0 0.0
  %1689 = vmatpush.msra.mxu0 0.0
  %1690 = vmatpush.msra.mxu0 0.0
  %1691 = vmatpush.msra.mxu0 0.0
  %1692 = vmatpush.msra.mxu0 0.0
  %1693 = vmatpush.msra.mxu0 0.0
  %1694 = vmatpush.msra.mxu0 %v258
  %1695 = vmatmul.f32.gmra.mxu0 %v1677
  %v1696 = vpop.f32.mrf.mxu0
  %v1697 = vadd.f32 0.0, %v1696
  %1698 = vdwg.mxu0
  %1699 = vmatpush.msra.mxu0 0.0
  %1700 = vmatpush.msra.mxu0 0.0
  %1701 = vmatpush.msra.mxu0 0.0
  %1702 = vmatpush.msra.mxu0 0.0
  %1703 = vmatpush.msra.mxu0 0.0
  %1704 = vmatpush.msra.mxu0 0.0
  %1705 = vmatpush.msra.mxu0 0.0
  %1706 = vmatpush.msra.mxu0 0.0
  %1707 = vmatpush.msra.mxu0 0.0
  %1708 = vmatpush.msra.mxu0 0.0
  %1709 = vmatpush.msra.mxu0 0.0
  %1710 = vmatpush.msra.mxu0 0.0
  %1711 = vmatpush.msra.mxu0 0.0
  %1712 = vmatpush.msra.mxu0 0.0
  %1713 = vmatpush.msra.mxu0 0.0
  %1714 = vmatpush.msra.mxu0 %v259
  %1715 = vmatmul.f32.gmra.mxu0 %v1677
  %v1716 = vpop.f32.mrf.mxu0
  %v1717 = vadd.f32 0.0, %v1716
  %1718 = vdwg.mxu0
  %1719 = vmatpush.msra.mxu0 0.0
  %1720 = vmatpush.msra.mxu0 0.0
  %1721 = vmatpush.msra.mxu0 0.0
  %1722 = vmatpush.msra.mxu0 0.0
  %1723 = vmatpush.msra.mxu0 0.0
  %1724 = vmatpush.msra.mxu0 0.0
  %1725 = vmatpush.msra.mxu0 0.0
  %1726 = vmatpush.msra.mxu0 0.0
  %1727 = vmatpush.msra.mxu0 0.0
  %1728 = vmatpush.msra.mxu0 0.0
  %1729 = vmatpush.msra.mxu0 0.0
  %1730 = vmatpush.msra.mxu0 0.0
  %1731 = vmatpush.msra.mxu0 0.0
  %1732 = vmatpush.msra.mxu0 0.0
  %1733 = vmatpush.msra.mxu0 0.0
  %1734 = vmatpush.msra.mxu0 %v260
  %1735 = vmatmul.f32.gmra.mxu0 %v1677
  %v1736 = vpop.f32.mrf.mxu0
  %v1737 = vadd.f32 0.0, %v1736
  %1738 = vdwg.mxu0
  %v1739 = vadd.f32 %v149, %v1697
  %v1740 = vadd.f32 %v1739, %v1634
  %v1741 = vxor.u32 %v1740, 2147483648
  %v1742 = vmul.f32 %v1741, 1.442695
  %v1743 = vpow.pop %v1742
  %v1744 = vadd.f32 %v1743, 1.0
  %v1745 = vrcp.pop %v1744
  %v1746 = vmul.f32 %v1744, %v1745
  %v1747 = vsub.f32 1.0, %v1746
  %v1748 = vmul.f32 %v1745, %v1747
  %v1749 = vadd.f32 %v1745, %v1748
  %vm1750 = vweird.f32 %v1744
  %vm1751 = vweird.f32 %v1745
  %vm1752 = vmor %vm1750, %vm1751
  %v1753 = vsel %vm1752, %v1745, %v1749
  %v1754 = vand.u32 2147483647, %v1744
  %vm1755 = vcmp.eq.f32.partialorder %v1754, 8.507059e+37
  %v1756 = vand.u32 %v1744, 2147483648
  %v1757 = vor.u32 1.1754944e-38, %v1756
  %v1758 = vsel %vm1755, %v1757, %v1753
  %v1759 = vmul.f32 1.0, %v1758
  %v1760 = vadd.f32 %v195, %v1717
  %v1761 = vadd.f32 %v1760, %v1654
  %v1762 = vxor.u32 %v1761, 2147483648
  %v1763 = vmul.f32 %v1762, 1.442695
  %v1764 = vpow.pop %v1763
  %v1765 = vadd.f32 %v1764, 1.0
  %v1766 = vrcp.pop %v1765
  %v1767 = vmul.f32 %v1765, %v1766
  %v1768 = vsub.f32 1.0, %v1767
  %v1769 = vmul.f32 %v1766, %v1768
  %v1770 = vadd.f32 %v1766, %v1769
  %vm1771 = vweird.f32 %v1765
  %vm1772 = vweird.f32 %v1766
  %vm1773 = vmor %vm1771, %vm1772
  %v1774 = vsel %vm1773, %v1766, %v1770
  %v1775 = vand.u32 2147483647, %v1765
  %vm1776 = vcmp.eq.f32.partialorder %v1775, 8.507059e+37
  %v1777 = vand.u32 %v1765, 2147483648
  %v1778 = vor.u32 1.1754944e-38, %v1777
  %v1779 = vsel %vm1776, %v1778, %v1774
  %v1780 = vmul.f32 1.0, %v1779
  %v1781 = vadd.f32 %v241, %v1737
  %v1782 = vmul.f32 %v1759, %v1674
  %v1783 = vadd.f32 %v1781, %v1782
  %v1784 = vtanh.pop %v1783
  %v1785 = vsub.f32 1.0, %v1780
  %v1786 = vmul.f32 %v1785, %v1784
  %v1787 = vmul.f32 %v1780, %v1566
  %v1788 = vadd.f32 %v1786, %v1787
  %v1790 = vsel %vm272, %v1788, 0
  %1792 = vmatpush.msra.mxu0 0.0
  %1793 = vmatpush.msra.mxu0 0.0
  %1794 = vmatpush.msra.mxu0 0.0
  %1795 = vmatpush.msra.mxu0 0.0
  %1796 = vmatpush.msra.mxu0 0.0
  %1797 = vmatpush.msra.mxu0 0.0
  %1798 = vmatpush.msra.mxu0 0.0
  %1799 = vmatpush.msra.mxu0 0.0
  %1800 = vmatpush.msra.mxu0 0.0
  %1801 = vmatpush.msra.mxu0 0.0
  %1802 = vmatpush.msra.mxu0 0.0
  %1803 = vmatpush.msra.mxu0 0.0
  %1804 = vmatpush.msra.mxu0 %v264
  %1805 = vmatpush.msra.mxu0 %v263
  %1806 = vmatpush.msra.mxu0 %v262
  %1807 = vmatpush.msra.mxu0 %v261
  %1808 = vmatmul.f32.gmra.mxu0 %v1790
  %v1809 = vpop.f32.mrf.mxu0
  %v1810 = vadd.f32 %v452, %v1809
  %1811 = vdwg.mxu0
  %v1812 = vmax.f32 %v1810, 0.0
  %v1814 = vsel %vm272, %v1812, 0
  %1816 = vmatpush.msra.mxu0 0.0
  %1817 = vmatpush.msra.mxu0 0.0
  %1818 = vmatpush.msra.mxu0 0.0
  %1819 = vmatpush.msra.mxu0 0.0
  %1820 = vmatpush.msra.mxu0 0.0
  %1821 = vmatpush.msra.mxu0 0.0
  %1822 = vmatpush.msra.mxu0 0.0
  %1823 = vmatpush.msra.mxu0 0.0
  %1824 = vmatpush.msra.mxu0 0.0
  %1825 = vmatpush.msra.mxu0 0.0
  %1826 = vmatpush.msra.mxu0 0.0
  %1827 = vmatpush.msra.mxu0 0.0
  %1828 = vmatpush.msra.mxu0 %v269
  %1829 = vmatpush.msra.mxu0 %v268
  %1830 = vmatpush.msra.mxu0 %v267
  %1831 = vmatpush.msra.mxu0 %v266
  %1832 = vmatmul.f32.gmra.mxu0 %v1814
  %v1833 = vpop.f32.mrf.mxu0
  %v1834 = vadd.f32 %v479, %v1833
  %1835 = vdwg.mxu0
  %1836 = vst.msk [vmem:[#allocation2 + $0x30] sm:$0xff] %vm272, %v1788
  %1837 = vst.msk [vmem:[%s23 + $0x30] sm:$0xff] %vm88, %v1834
  %1838 = vmatpush.msra.mxu0 0.0
  %1839 = vmatpush.msra.mxu0 0.0
  %1840 = vmatpush.msra.mxu0 0.0
  %1841 = vmatpush.msra.mxu0 0.0
  %1842 = vmatpush.msra.mxu0 0.0
  %1843 = vmatpush.msra.mxu0 0.0
  %1844 = vmatpush.msra.mxu0 0.0
  %1845 = vmatpush.msra.mxu0 0.0
  %1846 = vmatpush.msra.mxu0 0.0
  %1847 = vmatpush.msra.mxu0 0.0
  %1848 = vmatpush.msra.mxu0 0.0
  %1849 = vmatpush.msra.mxu0 0.0
  %1850 = vmatpush.msra.mxu0 %v249
  %1851 = vmatpush.msra.mxu0 %v248
  %1852 = vmatpush.msra.mxu0 %v247
  %1853 = vmatpush.msra.mxu0 %v246
  %1854 = vmatmul.f32.gmra.mxu0 %v1790
  %v1855 = vpop.f32.mrf.mxu0
  %v1856 = vadd.f32 0.0, %v1855
  %1857 = vdwg.mxu0
  %1858 = vmatpush.msra.mxu0 0.0
  %1859 = vmatpush.msra.mxu0 0.0
  %1860 = vmatpush.msra.mxu0 0.0
  %1861 = vmatpush.msra.mxu0 0.0
  %1862 = vmatpush.msra.mxu0 0.0
  %1863 = vmatpush.msra.mxu0 0.0
  %1864 = vmatpush.msra.mxu0 0.0
  %1865 = vmatpush.msra.mxu0 0.0
  %1866 = vmatpush.msra.mxu0 0.0
  %1867 = vmatpush.msra.mxu0 0.0
  %1868 = vmatpush.msra.mxu0 0.0
  %1869 = vmatpush.msra.mxu0 0.0
  %1870 = vmatpush.msra.mxu0 %v253
  %1871 = vmatpush.msra.mxu0 %v252
  %1872 = vmatpush.msra.mxu0 %v251
  %1873 = vmatpush.msra.mxu0 %v250
  %1874 = vmatmul.f32.gmra.mxu0 %v1790
  %v1875 = vpop.f32.mrf.mxu0
  %v1876 = vadd.f32 0.0, %v1875
  %1877 = vdwg.mxu0
  %1878 = vmatpush.msra.mxu0 0.0
  %1879 = vmatpush.msra.mxu0 0.0
  %1880 = vmatpush.msra.mxu0 0.0
  %1881 = vmatpush.msra.mxu0 0.0
  %1882 = vmatpush.msra.mxu0 0.0
  %1883 = vmatpush.msra.mxu0 0.0
  %1884 = vmatpush.msra.mxu0 0.0
  %1885 = vmatpush.msra.mxu0 0.0
  %1886 = vmatpush.msra.mxu0 0.0
  %1887 = vmatpush.msra.mxu0 0.0
  %1888 = vmatpush.msra.mxu0 0.0
  %1889 = vmatpush.msra.mxu0 0.0
  %1890 = vmatpush.msra.mxu0 %v257
  %1891 = vmatpush.msra.mxu0 %v256
  %1892 = vmatpush.msra.mxu0 %v255
  %1893 = vmatpush.msra.mxu0 %v254
  %1894 = vmatmul.f32.gmra.mxu0 %v1790
  %v1895 = vpop.f32.mrf.mxu0
  %v1896 = vadd.f32 %v317, %v1895
  %1897 = vdwg.mxu0
  %v1899 = vsel %vm88, %v1834, 0
  %1901 = vmatpush.msra.mxu0 0.0
  %1902 = vmatpush.msra.mxu0 0.0
  %1903 = vmatpush.msra.mxu0 0.0
  %1904 = vmatpush.msra.mxu0 0.0
  %1905 = vmatpush.msra.mxu0 0.0
  %1906 = vmatpush.msra.mxu0 0.0
  %1907 = vmatpush.msra.mxu0 0.0
  %1908 = vmatpush.msra.mxu0 0.0
  %1909 = vmatpush.msra.mxu0 0.0
  %1910 = vmatpush.msra.mxu0 0.0
  %1911 = vmatpush.msra.mxu0 0.0
  %1912 = vmatpush.msra.mxu0 0.0
  %1913 = vmatpush.msra.mxu0 0.0
  %1914 = vmatpush.msra.mxu0 0.0
  %1915 = vmatpush.msra.mxu0 0.0
  %1916 = vmatpush.msra.mxu0 %v258
  %1917 = vmatmul.f32.gmra.mxu0 %v1899
  %v1918 = vpop.f32.mrf.mxu0
  %v1919 = vadd.f32 0.0, %v1918
  %1920 = vdwg.mxu0
  %1921 = vmatpush.msra.mxu0 0.0
  %1922 = vmatpush.msra.mxu0 0.0
  %1923 = vmatpush.msra.mxu0 0.0
  %1924 = vmatpush.msra.mxu0 0.0
  %1925 = vmatpush.msra.mxu0 0.0
  %1926 = vmatpush.msra.mxu0 0.0
  %1927 = vmatpush.msra.mxu0 0.0
  %1928 = vmatpush.msra.mxu0 0.0
  %1929 = vmatpush.msra.mxu0 0.0
  %1930 = vmatpush.msra.mxu0 0.0
  %1931 = vmatpush.msra.mxu0 0.0
  %1932 = vmatpush.msra.mxu0 0.0
  %1933 = vmatpush.msra.mxu0 0.0
  %1934 = vmatpush.msra.mxu0 0.0
  %1935 = vmatpush.msra.mxu0 0.0
  %1936 = vmatpush.msra.mxu0 %v259
  %1937 = vmatmul.f32.gmra.mxu0 %v1899
  %v1938 = vpop.f32.mrf.mxu0
  %v1939 = vadd.f32 0.0, %v1938
  %1940 = vdwg.mxu0
  %1941 = vmatpush.msra.mxu0 0.0
  %1942 = vmatpush.msra.mxu0 0.0
  %1943 = vmatpush.msra.mxu0 0.0
  %1944 = vmatpush.msra.mxu0 0.0
  %1945 = vmatpush.msra.mxu0 0.0
  %1946 = vmatpush.msra.mxu0 0.0
  %1947 = vmatpush.msra.mxu0 0.0
  %1948 = vmatpush.msra.mxu0 0.0
  %1949 = vmatpush.msra.mxu0 0.0
  %1950 = vmatpush.msra.mxu0 0.0
  %1951 = vmatpush.msra.mxu0 0.0
  %1952 = vmatpush.msra.mxu0 0.0
  %1953 = vmatpush.msra.mxu0 0.0
  %1954 = vmatpush.msra.mxu0 0.0
  %1955 = vmatpush.msra.mxu0 0.0
  %1956 = vmatpush.msra.mxu0 %v260
  %1957 = vmatmul.f32.gmra.mxu0 %v1899
  %v1958 = vpop.f32.mrf.mxu0
  %v1959 = vadd.f32 0.0, %v1958
  %1960 = vdwg.mxu0
  %v1961 = vadd.f32 %v152, %v1919
  %v1962 = vadd.f32 %v1961, %v1856
  %v1963 = vxor.u32 %v1962, 2147483648
  %v1964 = vmul.f32 %v1963, 1.442695
  %v1965 = vpow.pop %v1964
  %v1966 = vadd.f32 %v1965, 1.0
  %v1967 = vrcp.pop %v1966
  %v1968 = vmul.f32 %v1966, %v1967
  %v1969 = vsub.f32 1.0, %v1968
  %v1970 = vmul.f32 %v1967, %v1969
  %v1971 = vadd.f32 %v1967, %v1970
  %vm1972 = vweird.f32 %v1966
  %vm1973 = vweird.f32 %v1967
  %vm1974 = vmor %vm1972, %vm1973
  %v1975 = vsel %vm1974, %v1967, %v1971
  %v1976 = vand.u32 2147483647, %v1966
  %vm1977 = vcmp.eq.f32.partialorder %v1976, 8.507059e+37
  %v1978 = vand.u32 %v1966, 2147483648
  %v1979 = vor.u32 1.1754944e-38, %v1978
  %v1980 = vsel %vm1977, %v1979, %v1975
  %v1981 = vmul.f32 1.0, %v1980
  %v1982 = vadd.f32 %v198, %v1939
  %v1983 = vadd.f32 %v1982, %v1876
  %v1984 = vxor.u32 %v1983, 2147483648
  %v1985 = vmul.f32 %v1984, 1.442695
  %v1986 = vpow.pop %v1985
  %v1987 = vadd.f32 %v1986, 1.0
  %v1988 = vrcp.pop %v1987
  %v1989 = vmul.f32 %v1987, %v1988
  %v1990 = vsub.f32 1.0, %v1989
  %v1991 = vmul.f32 %v1988, %v1990
  %v1992 = vadd.f32 %v1988, %v1991
  %vm1993 = vweird.f32 %v1987
  %vm1994 = vweird.f32 %v1988
  %vm1995 = vmor %vm1993, %vm1994
  %v1996 = vsel %vm1995, %v1988, %v1992
  %v1997 = vand.u32 2147483647, %v1987
  %vm1998 = vcmp.eq.f32.partialorder %v1997, 8.507059e+37
  %v1999 = vand.u32 %v1987, 2147483648
  %v2000 = vor.u32 1.1754944e-38, %v1999
  %v2001 = vsel %vm1998, %v2000, %v1996
  %v2002 = vmul.f32 1.0, %v2001
  %v2003 = vadd.f32 %v244, %v1959
  %v2004 = vmul.f32 %v1981, %v1896
  %v2005 = vadd.f32 %v2003, %v2004
  %v2006 = vtanh.pop %v2005
  %v2007 = vsub.f32 1.0, %v2002
  %v2008 = vmul.f32 %v2007, %v2006
  %v2009 = vmul.f32 %v2002, %v1788
  %v2010 = vadd.f32 %v2008, %v2009
  %v2012 = vsel %vm272, %v2010, 0
  %2014 = vmatpush.msra.mxu0 0.0
  %2015 = vmatpush.msra.mxu0 0.0
  %2016 = vmatpush.msra.mxu0 0.0
  %2017 = vmatpush.msra.mxu0 0.0
  %2018 = vmatpush.msra.mxu0 0.0
  %2019 = vmatpush.msra.mxu0 0.0
  %2020 = vmatpush.msra.mxu0 0.0
  %2021 = vmatpush.msra.mxu0 0.0
  %2022 = vmatpush.msra.mxu0 0.0
  %2023 = vmatpush.msra.mxu0 0.0
  %2024 = vmatpush.msra.mxu0 0.0
  %2025 = vmatpush.msra.mxu0 0.0
  %2026 = vmatpush.msra.mxu0 %v264
  %2027 = vmatpush.msra.mxu0 %v263
  %2028 = vmatpush.msra.mxu0 %v262
  %2029 = vmatpush.msra.mxu0 %v261
  %2030 = vmatmul.f32.gmra.mxu0 %v2012
  %v2031 = vpop.f32.mrf.mxu0
  %v2032 = vadd.f32 %v452, %v2031
  %2033 = vdwg.mxu0
  %v2034 = vmax.f32 %v2032, 0.0
  %v2036 = vsel %vm272, %v2034, 0
  %2038 = vmatpush.msra.mxu0 0.0
  %2039 = vmatpush.msra.mxu0 0.0
  %2040 = vmatpush.msra.mxu0 0.0
  %2041 = vmatpush.msra.mxu0 0.0
  %2042 = vmatpush.msra.mxu0 0.0
  %2043 = vmatpush.msra.mxu0 0.0
  %2044 = vmatpush.msra.mxu0 0.0
  %2045 = vmatpush.msra.mxu0 0.0
  %2046 = vmatpush.msra.mxu0 0.0
  %2047 = vmatpush.msra.mxu0 0.0
  %2048 = vmatpush.msra.mxu0 0.0
  %2049 = vmatpush.msra.mxu0 0.0
  %2050 = vmatpush.msra.mxu0 %v269
  %2051 = vmatpush.msra.mxu0 %v268
  %2052 = vmatpush.msra.mxu0 %v267
  %2053 = vmatpush.msra.mxu0 %v266
  %2054 = vmatmul.f32.gmra.mxu0 %v2036
  %v2055 = vpop.f32.mrf.mxu0
  %v2056 = vadd.f32 %v479, %v2055
  %2057 = vdwg.mxu0
  %2058 = vst.msk [vmem:[#allocation2 + $0x38] sm:$0xff] %vm272, %v2010
  %2059 = vst.msk [vmem:[%s23 + $0x38] sm:$0xff] %vm88, %v2056
  %2060 = vst.msk [vmem:[%s24] sm:$0xff] %vm272, %v2010
  %v2061 = vld [vmem:[#allocation2] sm:$0xff]
  %v2062 = vld [vmem:[#allocation2 + $0x8] sm:$0xff]
  %v2063 = vld [vmem:[#allocation2 + $0x10] sm:$0xff]
  %v2064 = vld [vmem:[#allocation2 + $0x18] sm:$0xff]
  %v2065 = vld [vmem:[#allocation2 + $0x20] sm:$0xff]
  %v2066 = vld [vmem:[#allocation2 + $0x28] sm:$0xff]
  %v2067 = vld [vmem:[#allocation2 + $0x30] sm:$0xff]
  %v2068 = vld [vmem:[#allocation2 + $0x38] sm:$0xff]
  %v2069 = vld [vmem:[%s18] sm:$0xff]
  %v2070 = vld [vmem:[%s18 + $0x8] sm:$0xff]
  %v2071 = vld [vmem:[%s18 + $0x10] sm:$0xff]
  %v2072 = vld [vmem:[%s18 + $0x18] sm:$0xff]
  %v2073 = vld [vmem:[%s19] sm:$0x1]
  %v2075 = vperm.slane %v2073, 0
  %v2078 = vsel %vm272, %v2061, 0
  %v2081 = vsel %vm272, %v2062, 0
  %v2084 = vsel %vm272, %v2063, 0
  %v2087 = vsel %vm272, %v2064, 0
  %v2090 = vsel %vm272, %v2065, 0
  %v2093 = vsel %vm272, %v2066, 0
  %v2096 = vsel %vm272, %v2067, 0
  %v2099 = vsel %vm272, %v2068, 0
  %2101 = vmatpush.msra.mxu0 0.0
  %2102 = vmatpush.msra.mxu0 0.0
  %2103 = vmatpush.msra.mxu0 0.0
  %2104 = vmatpush.msra.mxu0 0.0
  %2105 = vmatpush.msra.mxu0 0.0
  %2106 = vmatpush.msra.mxu0 0.0
  %2107 = vmatpush.msra.mxu0 0.0
  %2108 = vmatpush.msra.mxu0 0.0
  %2109 = vmatpush.msra.mxu0 0.0
  %2110 = vmatpush.msra.mxu0 0.0
  %2111 = vmatpush.msra.mxu0 0.0
  %2112 = vmatpush.msra.mxu0 0.0
  %2113 = vmatpush.msra.mxu0 %v2072
  %2114 = vmatpush.msra.mxu0 %v2071
  %2115 = vmatpush.msra.mxu0 %v2070
  %2116 = vmatpush.msra.mxu0 %v2069
  %2117 = vmatmul.f32.gmra.mxu0 %v2078
  %v2118 = vpop.f32.mrf.mxu0
  %v2119 = vadd.f32 %v2075, %v2118
  %2120 = vmatmul.f32.gmra.mxu0 %v2081
  %v2121 = vpop.f32.mrf.mxu0
  %v2122 = vadd.f32 %v2075, %v2121
  %2123 = vmatmul.f32.gmra.mxu0 %v2084
  %v2124 = vpop.f32.mrf.mxu0
  %v2125 = vadd.f32 %v2075, %v2124
  %2126 = vmatmul.f32.gmra.mxu0 %v2087
  %v2127 = vpop.f32.mrf.mxu0
  %v2128 = vadd.f32 %v2075, %v2127
  %2129 = vmatmul.f32.gmra.mxu0 %v2090
  %v2130 = vpop.f32.mrf.mxu0
  %v2131 = vadd.f32 %v2075, %v2130
  %2132 = vmatmul.f32.gmra.mxu0 %v2093
  %v2133 = vpop.f32.mrf.mxu0
  %v2134 = vadd.f32 %v2075, %v2133
  %2135 = vmatmul.f32.gmra.mxu0 %v2096
  %v2136 = vpop.f32.mrf.mxu0
  %v2137 = vadd.f32 %v2075, %v2136
  %2138 = vmatmul.f32.gmra.mxu0 %v2099
  %v2139 = vpop.f32.mrf.mxu0
  %v2140 = vadd.f32 %v2075, %v2139
  %2141 = vdwg.mxu0
  %v2142 = vmax.f32 %v2119, 0.0
  %v2143 = vmax.f32 %v2122, 0.0
  %v2144 = vmax.f32 %v2125, 0.0
  %v2145 = vmax.f32 %v2128, 0.0
  %v2146 = vmax.f32 %v2131, 0.0
  %v2147 = vmax.f32 %v2134, 0.0
  %v2148 = vmax.f32 %v2137, 0.0
  %v2149 = vmax.f32 %v2140, 0.0
  %2150 = vst.msk [vmem:[%s25] sm:$0xff] %vm272, %v2142
  %2151 = vst.msk [vmem:[%s25 + $0x8] sm:$0xff] %vm272, %v2143
  %2152 = vst.msk [vmem:[%s25 + $0x10] sm:$0xff] %vm272, %v2144
  %2153 = vst.msk [vmem:[%s25 + $0x18] sm:$0xff] %vm272, %v2145
  %2154 = vst.msk [vmem:[%s25 + $0x20] sm:$0xff] %vm272, %v2146
  %2155 = vst.msk [vmem:[%s25 + $0x28] sm:$0xff] %vm272, %v2147
  %2156 = vst.msk [vmem:[%s25 + $0x30] sm:$0xff] %vm272, %v2148
  %2157 = vst.msk [vmem:[%s25 + $0x38] sm:$0xff] %vm272, %v2149
  %v2158 = vld [vmem:[%s20] sm:$0xff]
  %v2159 = vld [vmem:[%s20 + $0x8] sm:$0xff]
  %v2160 = vld [vmem:[%s20 + $0x10] sm:$0xff]
  %v2161 = vld [vmem:[%s20 + $0x18] sm:$0xff]
  %v2162 = vld [vmem:[%s21] sm:$0x1]
  %v2164 = vperm.slane %v2162, 0
  %v2167 = vsel %vm272, %v2142, 0
  %v2170 = vsel %vm272, %v2143, 0
  %v2173 = vsel %vm272, %v2144, 0
  %v2176 = vsel %vm272, %v2145, 0
  %v2179 = vsel %vm272, %v2146, 0
  %v2182 = vsel %vm272, %v2147, 0
  %v2185 = vsel %vm272, %v2148, 0
  %v2188 = vsel %vm272, %v2149, 0
  %2190 = vmatpush.msra.mxu0 0.0
  %2191 = vmatpush.msra.mxu0 0.0
  %2192 = vmatpush.msra.mxu0 0.0
  %2193 = vmatpush.msra.mxu0 0.0
  %2194 = vmatpush.msra.mxu0 0.0
  %2195 = vmatpush.msra.mxu0 0.0
  %2196 = vmatpush.msra.mxu0 0.0
  %2197 = vmatpush.msra.mxu0 0.0
  %2198 = vmatpush.msra.mxu0 0.0
  %2199 = vmatpush.msra.mxu0 0.0
  %2200 = vmatpush.msra.mxu0 0.0
  %2201 = vmatpush.msra.mxu0 0.0
  %2202 = vmatpush.msra.mxu0 %v2161
  %2203 = vmatpush.msra.mxu0 %v2160
  %2204 = vmatpush.msra.mxu0 %v2159
  %2205 = vmatpush.msra.mxu0 %v2158
  %2206 = vmatmul.f32.gmra.mxu0 %v2167
  %v2207 = vpop.f32.mrf.mxu0
  %v2208 = vadd.f32 %v2164, %v2207
  %2209 = vmatmul.f32.gmra.mxu0 %v2170
  %v2210 = vpop.f32.mrf.mxu0
  %v2211 = vadd.f32 %v2164, %v2210
  %2212 = vmatmul.f32.gmra.mxu0 %v2173
  %v2213 = vpop.f32.mrf.mxu0
  %v2214 = vadd.f32 %v2164, %v2213
  %2215 = vmatmul.f32.gmra.mxu0 %v2176
  %v2216 = vpop.f32.mrf.mxu0
  %v2217 = vadd.f32 %v2164, %v2216
  %2218 = vmatmul.f32.gmra.mxu0 %v2179
  %v2219 = vpop.f32.mrf.mxu0
  %v2220 = vadd.f32 %v2164, %v2219
  %2221 = vmatmul.f32.gmra.mxu0 %v2182
  %v2222 = vpop.f32.mrf.mxu0
  %v2223 = vadd.f32 %v2164, %v2222
  %2224 = vmatmul.f32.gmra.mxu0 %v2185
  %v2225 = vpop.f32.mrf.mxu0
  %v2226 = vadd.f32 %v2164, %v2225
  %2227 = vmatmul.f32.gmra.mxu0 %v2188
  %v2228 = vpop.f32.mrf.mxu0
  %v2229 = vadd.f32 %v2164, %v2228
  %2230 = vdwg.mxu0
  %vm2231 = vcmask 31744
  %2232 = vst.msk [vmem:[%s22] sm:$0xff] %vm2231, %v2208
  %2233 = vst.msk [vmem:[%s22 + $0x8] sm:$0xff] %vm2231, %v2211
  %2234 = vst.msk [vmem:[%s22 + $0x10] sm:$0xff] %vm2231, %v2214
  %2235 = vst.msk [vmem:[%s22 + $0x18] sm:$0xff] %vm2231, %v2217
  %2236 = vst.msk [vmem:[%s22 + $0x20] sm:$0xff] %vm2231, %v2220
  %2237 = vst.msk [vmem:[%s22 + $0x28] sm:$0xff] %vm2231, %v2223
  %2238 = vst.msk [vmem:[%s22 + $0x30] sm:$0xff] %vm2231, %v2226
  %2239 = vst.msk [vmem:[%s22 + $0x38] sm:$0xff] %vm2231, %v2229
  // Predicated region
  $region90: #{recurrent_qnet_forward.1} parent=0 // pred_check
    _
  $region91: #{recurrent_qnet_forward.1} parent=0 // pred_check_branch
    %2241 = sbr.rel (0) target = $region93
  $region92: #{recurrent_qnet_forward.1} parent=0 // pred_region
    _
  $region93: #{recurrent_qnet_forward.1} parent=0 // pred_fallthru
    _
  // Predicated region
  $region94: #{recurrent_qnet_forward.1} parent=0 // pred_check
    _
  $region95: #{recurrent_qnet_forward.1} parent=0 // pred_check_branch
    %2243 = sbr.rel (0) target = $region97
  $region96: #{recurrent_qnet_forward.1} parent=0 // pred_region
    _
  $region97: #{recurrent_qnet_forward.1} parent=0 // pred_fallthru
    _
  // Predicated region
  $region98: #{recurrent_qnet_forward.1} parent=0 // pred_check
    _
  $region99: #{recurrent_qnet_forward.1} parent=0 // pred_check_branch
    %2245 = sbr.rel (0) target = $region101
  $region100: #{recurrent_qnet_forward.1} parent=0 // pred_region
    _
  $region101: #{recurrent_qnet_forward.1} parent=0 // pred_fallthru
    _
  // Predicated region
  $region102: #{recurrent_qnet_forward.1} parent=0 // pred_check
    _
  $region103: #{recurrent_qnet_forward.1} parent=0 // pred_check_branch
    %2247 = sbr.rel (0) target = $region105
  $region104: #{recurrent_qnet_forward.1} parent=0 // pred_region
    _
  $region105: #{recurrent_qnet_forward.1} parent=0 // pred_fallthru
    _
  // Predicated region
  $region106: #{recurrent_qnet_forward.1} parent=0 // pred_check
    _
  $region107: #{recurrent_qnet_forward.1} parent=0 // pred_check_branch
    %2249 = sbr.rel (0) target = $region109
  $region108: #{recurrent_qnet_forward.1} parent=0 // pred_region
    _
  $region109: #{recurrent_qnet_forward.1} parent=0 // pred_fallthru
    _
  // Predicated region
  $region110: #{recurrent_qnet_forward.1} parent=0 // pred_check
    _
  $region111: #{recurrent_qnet_forward.1} parent=0 // pred_check_branch
    %2251 = sbr.rel (0) target = $region113
  $region112: #{recurrent_qnet_forward.1} parent=0 // pred_region
    _
  $region113: #{recurrent_qnet_forward.1} parent=0 // pred_fallthru
    _
  // Predicated region
  $region114: #{recurrent_qnet_forward.1} parent=0 // pred_check
    _
  $region115: #{recurrent_qnet_forward.1} parent=0 // pred_check_branch
    %2253 = sbr.rel (0) target = $region117
  $region116: #{recurrent_qnet_forward.1} parent=0 // pred_region
    _
  $region117: #{recurrent_qnet_forward.1} parent=0 // pred_fallthru
    _
  // Predicated region
  $region118: #{recurrent_qnet_forward.1} parent=0 // pred_check
    _
  $region119: #{recurrent_qnet_forward.1} parent=0 // pred_check_branch
    %2255 = sbr.rel (0) target = $region121
  $region120: #{recurrent_qnet_forward.1} parent=0 // pred_region
    _
  $region121: #{recurrent_qnet_forward.1} parent=0 // pred_fallthru
    _

</llo_original>
